<compile_context>
chip_gen: v7x
topology: tpu7x:2x2x1
jax: 0.10.0
libtpu: 0.0.40
codegen_flags: <defaults>
</compile_context>

<pallas_src>
import jax
import jax.numpy as jnp
from jax.experimental import pallas as pl
from jax.experimental.pallas import tpu as pltpu

BN_EPS = 1e-5
HIDDEN = 512
LANE = 128


def _round_up(n, m):
    return ((n + m - 1) // m) * m


# ---------------------------------------------------------------------------
# Fused kernel: the whole 5-layer MLP in one pallas_call.
# ---------------------------------------------------------------------------
def fused_mlp_kernel(x_ref,
                     w1_ref, g1_ref, be1_ref,
                     w2_ref, g2_ref, be2_ref,
                     w3_ref, g3_ref, be3_ref,
                     w4_ref, g4_ref, be4_ref,
                     w5_ref, b5_ref,
                     o_ref):
    """Layers 1..4: h = relu(batchnorm(h @ W))  (training-mode batch stats;
    the Linear bias is omitted because mean subtraction cancels any
    per-feature constant exactly).
    Layer 5:      y = h @ W5 + b5, written into a lane-dense 128-wide slab.

    Matmuls: bf16 operands, f32 accumulation on the MXU.
    BatchNorm statistics / elementwise math: f32.
    """

    def lin_bn_relu(h, w_ref, g_ref, be_ref):
        y = jnp.dot(h.astype(jnp.bfloat16), w_ref[...],
                    preferred_element_type=jnp.float32)
        mean = jnp.mean(y, axis=0, keepdims=True)
        centered = y - mean
        var = jnp.mean(centered * centered, axis=0, keepdims=True)  # biased
        # Fold gamma into the rsqrt: one [1,OUT] mul + one [B,OUT] mul.
        scale = g_ref[...] * jax.lax.rsqrt(var + BN_EPS)
        z = centered * scale + be_ref[...]
        return jnp.maximum(z, 0.0)

    h = x_ref[...]
    h = lin_bn_relu(h, w1_ref, g1_ref, be1_ref)
    h = lin_bn_relu(h, w2_ref, g2_ref, be2_ref)
    h = lin_bn_relu(h, w3_ref, g3_ref, be3_ref)
    h = lin_bn_relu(h, w4_ref, g4_ref, be4_ref)
    y = jnp.dot(h.astype(jnp.bfloat16), w5_ref[...],
                preferred_element_type=jnp.float32)
    o_ref[...] = y + b5_ref[...]


# ---------------------------------------------------------------------------
# Wrapper
# ---------------------------------------------------------------------------
def _vmem_spec():
    return pl.BlockSpec(memory_space=pltpu.MemorySpace.VMEM)


def cnn_forward_pallas(x, params):
    B = x.shape[0]
    pad_out = params[4]["w_pad"].shape[1]
    args = [x]
    for layer in params[:4]:
        args += [layer["w"], layer["gamma"], layer["beta"]]
    args += [params[4]["w_pad"], params[4]["b_pad"]]
    return pl.pallas_call(
        fused_mlp_kernel,
        out_shape=jax.ShapeDtypeStruct((B, pad_out), jnp.float32),
        in_specs=[_vmem_spec() for _ in args],
        out_specs=_vmem_spec(),
    )(*args)


@jax.jit
def cnn_forward(x, params):
    out_dim = params[4]["w"].shape[1]
    out_pad = cnn_forward_pallas(x, params)
    return out_pad[:, :out_dim]


# ---------------------------------------------------------------------------
# Parameter init (deterministic, mimics PyTorch nn.Linear default:
# U(-1/sqrt(fan_in), 1/sqrt(fan_in)); BatchNorm1d: gamma=1, beta=0).
# Weights are stored as bf16 [IN, OUT]; the last layer is additionally padded
# to a lane-dense (multiple of 128) output width.
# ---------------------------------------------------------------------------
def init_params(key, input_dim, output_dim, hidden=HIDDEN):
    dims = [(input_dim, hidden), (hidden, hidden), (hidden, hidden),
            (hidden, hidden), (hidden, output_dim)]
    params = []
    for idx, (fan_in, fan_out) in enumerate(dims):
        key, kw, kb = jax.random.split(key, 3)
        bound = 1.0 / jnp.sqrt(fan_in)
        w = jax.random.uniform(kw, (fan_in, fan_out), jnp.float32, -bound, bound)
        b = jax.random.uniform(kb, (1, fan_out), jnp.float32, -bound, bound)
        layer = {
            "w": w.astype(jnp.bfloat16),     # bf16 MXU operands, half the DMA
            "b": b,                          # layers 1-4: reference only (BN cancels it)
            "gamma": jnp.ones((1, fan_out), jnp.float32),
            "beta": jnp.zeros((1, fan_out), jnp.float32),
        }
        if idx == len(dims) - 1:
            pad = _round_up(fan_out, LANE) - fan_out
            layer["w_pad"] = jnp.pad(layer["w"], ((0, 0), (0, pad)))
            layer["b_pad"] = jnp.pad(b, ((0, 0), (0, pad)))
        params.append(layer)
    return params


# ---------------------------------------------------------------------------
# Reference (pure JAX, same bf16-operand / f32-accumulate matmul path) used
# for correctness checking.  It DOES include the pre-BN biases, verifying
# that dropping them in the kernel is exact.
# ---------------------------------------------------------------------------
def cnn_forward_ref(x, params):
    h = x
    for layer in params[:4]:
        y = jnp.dot(h.astype(jnp.bfloat16), layer["w"],
                    preferred_element_type=jnp.float32) + layer["b"]
        mean = jnp.mean(y, axis=0, keepdims=True)
        var = jnp.mean((y - mean) ** 2, axis=0, keepdims=True)
        y = (y - mean) * jax.lax.rsqrt(var + BN_EPS) * layer["gamma"] + layer["beta"]
        h = jnp.maximum(y, 0.0)
    last = params[4]
    return jnp.dot(h.astype(jnp.bfloat16), last["w"],
                   preferred_element_type=jnp.float32) + last["b"]


if __name__ == "__main__":
    # Small, deterministic example: batch=8, INPUTDIM=32, OUTPUTDIM=8
    # (hidden width is 512 as hard-coded in the PyTorch module).
    # NOTE: at B=8 this is latency-bound; real workloads should batch >= 128
    # rows to occupy the MXU.
    B, INPUTDIM, OUTPUTDIM = 8, 32, 8
    key = jax.random.PRNGKey(0)
    key, kx = jax.random.split(key)
    x = jax.random.normal(kx, (B, INPUTDIM), jnp.float32)
    params = init_params(key, INPUTDIM, OUTPUTDIM)

    out = jax.block_until_ready(cnn_forward(x, params))
    ref = cnn_forward_ref(x, params)

    assert out.shape == (B, OUTPUTDIM)
    assert jnp.allclose(out, ref, atol=2e-2, rtol=2e-2), "mismatch vs reference"

    # TODO(synk): BatchNorm1d running_mean/running_var updates (training-side
    # buffers) are not modeled; only the forward output is produced.
    print("KERNEL_OK")
</pallas_src>

<mosaic_0001>
module attributes {stable_mosaic.version = 11 : i64} {
  func.func @fused_mlp_kernel(%arg0: memref<8x32xf32, #tpu.memory_space<vmem>>, %arg1: memref<32x512xbf16, #tpu.memory_space<vmem>>, %arg2: memref<1x512xf32, #tpu.memory_space<vmem>>, %arg3: memref<1x512xf32, #tpu.memory_space<vmem>>, %arg4: memref<512x512xbf16, #tpu.memory_space<vmem>>, %arg5: memref<1x512xf32, #tpu.memory_space<vmem>>, %arg6: memref<1x512xf32, #tpu.memory_space<vmem>>, %arg7: memref<512x512xbf16, #tpu.memory_space<vmem>>, %arg8: memref<1x512xf32, #tpu.memory_space<vmem>>, %arg9: memref<1x512xf32, #tpu.memory_space<vmem>>, %arg10: memref<512x512xbf16, #tpu.memory_space<vmem>>, %arg11: memref<1x512xf32, #tpu.memory_space<vmem>>, %arg12: memref<1x512xf32, #tpu.memory_space<vmem>>, %arg13: memref<512x128xbf16, #tpu.memory_space<vmem>>, %arg14: memref<1x128xf32, #tpu.memory_space<vmem>>, %arg15: memref<8x128xf32, #tpu.memory_space<vmem>>) attributes {dimension_semantics = [], scalar_prefetch = 0 : i64, scratch_operands = 0 : i64, tpu.core_type = #tpu.core_type<tc>} {
    %c0 = arith.constant 0 : index
    %c0_0 = arith.constant 0 : index
    %0 = vector.load %arg0[%c0, %c0_0] : memref<8x32xf32, #tpu.memory_space<vmem>>, vector<8x32xf32>
    %1 = arith.truncf %0 : vector<8x32xf32> to vector<8x32xbf16>
    %c0_1 = arith.constant 0 : index
    %c0_2 = arith.constant 0 : index
    %2 = vector.load %arg1[%c0_1, %c0_2] : memref<32x512xbf16, #tpu.memory_space<vmem>>, vector<32x512xbf16>
    %cst = arith.constant dense<0.000000e+00> : vector<8x512xf32>
    %3 = tpu.matmul %1, %2, %cst {dimension_numbers = #tpu.dot_dimension_numbers<[1], [0], [0], [1], [0, 0, 1, 1], [], []>} : vector<8x32xbf16>, vector<32x512xbf16>, vector<8x512xf32> -> vector<8x512xf32>
    %cst_3 = arith.constant dense<0.000000e+00> : vector<512xf32>
    %4 = vector.multi_reduction <add>, %3, %cst_3 [0] : vector<8x512xf32> to vector<512xf32>
    %5 = vector.shape_cast %4 : vector<512xf32> to vector<1x512xf32>
    %cst_4 = arith.constant 8.000000e+00 : f32
    %6 = vector.broadcast %cst_4 : f32 to vector<1x512xf32>
    %7 = arith.divf %5, %6 : vector<1x512xf32>
    %8 = vector.broadcast %7 : vector<1x512xf32> to vector<8x512xf32>
    %9 = arith.subf %3, %8 : vector<8x512xf32>
    %10 = arith.mulf %9, %9 : vector<8x512xf32>
    %cst_5 = arith.constant dense<0.000000e+00> : vector<512xf32>
    %11 = vector.multi_reduction <add>, %10, %cst_5 [0] : vector<8x512xf32> to vector<512xf32>
    %12 = vector.shape_cast %11 : vector<512xf32> to vector<1x512xf32>
    %cst_6 = arith.constant 8.000000e+00 : f32
    %13 = vector.broadcast %cst_6 : f32 to vector<1x512xf32>
    %14 = arith.divf %12, %13 : vector<1x512xf32>
    %c0_7 = arith.constant 0 : index
    %c0_8 = arith.constant 0 : index
    %15 = vector.load %arg2[%c0_7, %c0_8] : memref<1x512xf32, #tpu.memory_space<vmem>>, vector<1x512xf32>
    %cst_9 = arith.constant 9.99999974E-6 : f32
    %16 = vector.broadcast %cst_9 : f32 to vector<1x512xf32>
    %17 = arith.addf %14, %16 : vector<1x512xf32>
    %18 = math.rsqrt %17 : vector<1x512xf32>
    %19 = arith.mulf %15, %18 : vector<1x512xf32>
    %20 = vector.broadcast %19 : vector<1x512xf32> to vector<8x512xf32>
    %21 = arith.mulf %9, %20 : vector<8x512xf32>
    %c0_10 = arith.constant 0 : index
    %c0_11 = arith.constant 0 : index
    %22 = vector.load %arg3[%c0_10, %c0_11] : memref<1x512xf32, #tpu.memory_space<vmem>>, vector<1x512xf32>
    %23 = vector.broadcast %22 : vector<1x512xf32> to vector<8x512xf32>
    %24 = arith.addf %21, %23 : vector<8x512xf32>
    %cst_12 = arith.constant 0.000000e+00 : f32
    %25 = vector.broadcast %cst_12 : f32 to vector<8x512xf32>
    %26 = arith.maximumf %24, %25 : vector<8x512xf32>
    %27 = arith.truncf %26 : vector<8x512xf32> to vector<8x512xbf16>
    %c0_13 = arith.constant 0 : index
    %c0_14 = arith.constant 0 : index
    %28 = vector.load %arg4[%c0_13, %c0_14] : memref<512x512xbf16, #tpu.memory_space<vmem>>, vector<512x512xbf16>
    %cst_15 = arith.constant dense<0.000000e+00> : vector<8x512xf32>
    %29 = tpu.matmul %27, %28, %cst_15 {dimension_numbers = #tpu.dot_dimension_numbers<[1], [0], [0], [1], [0, 0, 1, 1], [], []>} : vector<8x512xbf16>, vector<512x512xbf16>, vector<8x512xf32> -> vector<8x512xf32>
    %cst_16 = arith.constant dense<0.000000e+00> : vector<512xf32>
    %30 = vector.multi_reduction <add>, %29, %cst_16 [0] : vector<8x512xf32> to vector<512xf32>
    %31 = vector.shape_cast %30 : vector<512xf32> to vector<1x512xf32>
    %cst_17 = arith.constant 8.000000e+00 : f32
    %32 = vector.broadcast %cst_17 : f32 to vector<1x512xf32>
    %33 = arith.divf %31, %32 : vector<1x512xf32>
    %34 = vector.broadcast %33 : vector<1x512xf32> to vector<8x512xf32>
    %35 = arith.subf %29, %34 : vector<8x512xf32>
    %36 = arith.mulf %35, %35 : vector<8x512xf32>
    %cst_18 = arith.constant dense<0.000000e+00> : vector<512xf32>
    %37 = vector.multi_reduction <add>, %36, %cst_18 [0] : vector<8x512xf32> to vector<512xf32>
    %38 = vector.shape_cast %37 : vector<512xf32> to vector<1x512xf32>
    %cst_19 = arith.constant 8.000000e+00 : f32
    %39 = vector.broadcast %cst_19 : f32 to vector<1x512xf32>
    %40 = arith.divf %38, %39 : vector<1x512xf32>
    %c0_20 = arith.constant 0 : index
    %c0_21 = arith.constant 0 : index
    %41 = vector.load %arg5[%c0_20, %c0_21] : memref<1x512xf32, #tpu.memory_space<vmem>>, vector<1x512xf32>
    %cst_22 = arith.constant 9.99999974E-6 : f32
    %42 = vector.broadcast %cst_22 : f32 to vector<1x512xf32>
    %43 = arith.addf %40, %42 : vector<1x512xf32>
    %44 = math.rsqrt %43 : vector<1x512xf32>
    %45 = arith.mulf %41, %44 : vector<1x512xf32>
    %46 = vector.broadcast %45 : vector<1x512xf32> to vector<8x512xf32>
    %47 = arith.mulf %35, %46 : vector<8x512xf32>
    %c0_23 = arith.constant 0 : index
    %c0_24 = arith.constant 0 : index
    %48 = vector.load %arg6[%c0_23, %c0_24] : memref<1x512xf32, #tpu.memory_space<vmem>>, vector<1x512xf32>
    %49 = vector.broadcast %48 : vector<1x512xf32> to vector<8x512xf32>
    %50 = arith.addf %47, %49 : vector<8x512xf32>
    %cst_25 = arith.constant 0.000000e+00 : f32
    %51 = vector.broadcast %cst_25 : f32 to vector<8x512xf32>
    %52 = arith.maximumf %50, %51 : vector<8x512xf32>
    %53 = arith.truncf %52 : vector<8x512xf32> to vector<8x512xbf16>
    %c0_26 = arith.constant 0 : index
    %c0_27 = arith.constant 0 : index
    %54 = vector.load %arg7[%c0_26, %c0_27] : memref<512x512xbf16, #tpu.memory_space<vmem>>, vector<512x512xbf16>
    %cst_28 = arith.constant dense<0.000000e+00> : vector<8x512xf32>
    %55 = tpu.matmul %53, %54, %cst_28 {dimension_numbers = #tpu.dot_dimension_numbers<[1], [0], [0], [1], [0, 0, 1, 1], [], []>} : vector<8x512xbf16>, vector<512x512xbf16>, vector<8x512xf32> -> vector<8x512xf32>
    %cst_29 = arith.constant dense<0.000000e+00> : vector<512xf32>
    %56 = vector.multi_reduction <add>, %55, %cst_29 [0] : vector<8x512xf32> to vector<512xf32>
    %57 = vector.shape_cast %56 : vector<512xf32> to vector<1x512xf32>
    %cst_30 = arith.constant 8.000000e+00 : f32
    %58 = vector.broadcast %cst_30 : f32 to vector<1x512xf32>
    %59 = arith.divf %57, %58 : vector<1x512xf32>
    %60 = vector.broadcast %59 : vector<1x512xf32> to vector<8x512xf32>
    %61 = arith.subf %55, %60 : vector<8x512xf32>
    %62 = arith.mulf %61, %61 : vector<8x512xf32>
    %cst_31 = arith.constant dense<0.000000e+00> : vector<512xf32>
    %63 = vector.multi_reduction <add>, %62, %cst_31 [0] : vector<8x512xf32> to vector<512xf32>
    %64 = vector.shape_cast %63 : vector<512xf32> to vector<1x512xf32>
    %cst_32 = arith.constant 8.000000e+00 : f32
    %65 = vector.broadcast %cst_32 : f32 to vector<1x512xf32>
    %66 = arith.divf %64, %65 : vector<1x512xf32>
    %c0_33 = arith.constant 0 : index
    %c0_34 = arith.constant 0 : index
    %67 = vector.load %arg8[%c0_33, %c0_34] : memref<1x512xf32, #tpu.memory_space<vmem>>, vector<1x512xf32>
    %cst_35 = arith.constant 9.99999974E-6 : f32
    %68 = vector.broadcast %cst_35 : f32 to vector<1x512xf32>
    %69 = arith.addf %66, %68 : vector<1x512xf32>
    %70 = math.rsqrt %69 : vector<1x512xf32>
    %71 = arith.mulf %67, %70 : vector<1x512xf32>
    %72 = vector.broadcast %71 : vector<1x512xf32> to vector<8x512xf32>
    %73 = arith.mulf %61, %72 : vector<8x512xf32>
    %c0_36 = arith.constant 0 : index
    %c0_37 = arith.constant 0 : index
    %74 = vector.load %arg9[%c0_36, %c0_37] : memref<1x512xf32, #tpu.memory_space<vmem>>, vector<1x512xf32>
    %75 = vector.broadcast %74 : vector<1x512xf32> to vector<8x512xf32>
    %76 = arith.addf %73, %75 : vector<8x512xf32>
    %cst_38 = arith.constant 0.000000e+00 : f32
    %77 = vector.broadcast %cst_38 : f32 to vector<8x512xf32>
    %78 = arith.maximumf %76, %77 : vector<8x512xf32>
    %79 = arith.truncf %78 : vector<8x512xf32> to vector<8x512xbf16>
    %c0_39 = arith.constant 0 : index
    %c0_40 = arith.constant 0 : index
    %80 = vector.load %arg10[%c0_39, %c0_40] : memref<512x512xbf16, #tpu.memory_space<vmem>>, vector<512x512xbf16>
    %cst_41 = arith.constant dense<0.000000e+00> : vector<8x512xf32>
    %81 = tpu.matmul %79, %80, %cst_41 {dimension_numbers = #tpu.dot_dimension_numbers<[1], [0], [0], [1], [0, 0, 1, 1], [], []>} : vector<8x512xbf16>, vector<512x512xbf16>, vector<8x512xf32> -> vector<8x512xf32>
    %cst_42 = arith.constant dense<0.000000e+00> : vector<512xf32>
    %82 = vector.multi_reduction <add>, %81, %cst_42 [0] : vector<8x512xf32> to vector<512xf32>
    %83 = vector.shape_cast %82 : vector<512xf32> to vector<1x512xf32>
    %cst_43 = arith.constant 8.000000e+00 : f32
    %84 = vector.broadcast %cst_43 : f32 to vector<1x512xf32>
    %85 = arith.divf %83, %84 : vector<1x512xf32>
    %86 = vector.broadcast %85 : vector<1x512xf32> to vector<8x512xf32>
    %87 = arith.subf %81, %86 : vector<8x512xf32>
    %88 = arith.mulf %87, %87 : vector<8x512xf32>
    %cst_44 = arith.constant dense<0.000000e+00> : vector<512xf32>
    %89 = vector.multi_reduction <add>, %88, %cst_44 [0] : vector<8x512xf32> to vector<512xf32>
    %90 = vector.shape_cast %89 : vector<512xf32> to vector<1x512xf32>
    %cst_45 = arith.constant 8.000000e+00 : f32
    %91 = vector.broadcast %cst_45 : f32 to vector<1x512xf32>
    %92 = arith.divf %90, %91 : vector<1x512xf32>
    %c0_46 = arith.constant 0 : index
    %c0_47 = arith.constant 0 : index
    %93 = vector.load %arg11[%c0_46, %c0_47] : memref<1x512xf32, #tpu.memory_space<vmem>>, vector<1x512xf32>
    %cst_48 = arith.constant 9.99999974E-6 : f32
    %94 = vector.broadcast %cst_48 : f32 to vector<1x512xf32>
    %95 = arith.addf %92, %94 : vector<1x512xf32>
    %96 = math.rsqrt %95 : vector<1x512xf32>
    %97 = arith.mulf %93, %96 : vector<1x512xf32>
    %98 = vector.broadcast %97 : vector<1x512xf32> to vector<8x512xf32>
    %99 = arith.mulf %87, %98 : vector<8x512xf32>
    %c0_49 = arith.constant 0 : index
    %c0_50 = arith.constant 0 : index
    %100 = vector.load %arg12[%c0_49, %c0_50] : memref<1x512xf32, #tpu.memory_space<vmem>>, vector<1x512xf32>
    %101 = vector.broadcast %100 : vector<1x512xf32> to vector<8x512xf32>
    %102 = arith.addf %99, %101 : vector<8x512xf32>
    %cst_51 = arith.constant 0.000000e+00 : f32
    %103 = vector.broadcast %cst_51 : f32 to vector<8x512xf32>
    %104 = arith.maximumf %102, %103 : vector<8x512xf32>
    %105 = arith.truncf %104 : vector<8x512xf32> to vector<8x512xbf16>
    %c0_52 = arith.constant 0 : index
    %c0_53 = arith.constant 0 : index
    %106 = vector.load %arg13[%c0_52, %c0_53] : memref<512x128xbf16, #tpu.memory_space<vmem>>, vector<512x128xbf16>
    %cst_54 = arith.constant dense<0.000000e+00> : vector<8x128xf32>
    %107 = tpu.matmul %105, %106, %cst_54 {dimension_numbers = #tpu.dot_dimension_numbers<[1], [0], [0], [1], [0, 0, 1, 1], [], []>} : vector<8x512xbf16>, vector<512x128xbf16>, vector<8x128xf32> -> vector<8x128xf32>
    %c0_55 = arith.constant 0 : index
    %c0_56 = arith.constant 0 : index
    %108 = vector.load %arg14[%c0_55, %c0_56] : memref<1x128xf32, #tpu.memory_space<vmem>>, vector<1x128xf32>
    %109 = vector.broadcast %108 : vector<1x128xf32> to vector<8x128xf32>
    %110 = arith.addf %107, %109 : vector<8x128xf32>
    %c0_57 = arith.constant 0 : index
    %c0_58 = arith.constant 0 : index
    %111 = vector.load %arg15[%c0_57, %c0_58] : memref<8x128xf32, #tpu.memory_space<vmem>>, vector<8x128xf32>
    tpu.vector_store %arg15[%c0_57, %c0_58], %110 {strides = array<i32>} : memref<8x128xf32, #tpu.memory_space<vmem>>, vector<8x128xf32>,
    return
  }
}

</mosaic_0001>

<llo_original>
// kernel: cnn_forward.1
$region0: #{cnn_forward.1}
  #allocation0 [shape = 'u32[]', space=smem, size = 0x4, offset = 0x4, fixed_abs, tag = 'smem constant byte address 0x4 - core index']
  #allocation1 [shape = 'u32[144,128]{1,0:T(1,128)}', space=vmem, size = 0x12000, scoped, tag = 'internal scratch']
  %s0 = inlined_call_operand.hbm [shape: f32[8,32], index: 0, kind: input, shape index: {}]
  %s1 = inlined_call_operand.hbm [shape: bf16[32,512], index: 1, kind: input, shape index: {}]
  %s2 = inlined_call_operand.vmem [shape: f32[1,512], index: 2, kind: input, shape index: {}]
  %s3 = inlined_call_operand.hbm [shape: f32[1,512], index: 3, kind: input, shape index: {}]
  %s4 = inlined_call_operand.hbm [shape: bf16[512,512], index: 4, kind: input, shape index: {}]
  %s5 = inlined_call_operand.vmem [shape: f32[1,512], index: 5, kind: input, shape index: {}]
  %s6 = inlined_call_operand.vmem [shape: f32[1,512], index: 6, kind: input, shape index: {}]
  %s7 = inlined_call_operand.hbm [shape: bf16[512,512], index: 7, kind: input, shape index: {}]
  %s8 = inlined_call_operand.vmem [shape: f32[1,512], index: 8, kind: input, shape index: {}]
  %s9 = inlined_call_operand.vmem [shape: f32[1,512], index: 9, kind: input, shape index: {}]
  %s10 = inlined_call_operand.hbm [shape: bf16[512,512], index: 10, kind: input, shape index: {}]
  %s11 = inlined_call_operand.vmem [shape: f32[1,512], index: 11, kind: input, shape index: {}]
  %s12 = inlined_call_operand.vmem [shape: f32[1,512], index: 12, kind: input, shape index: {}]
  %s13 = inlined_call_operand.hbm [shape: bf16[512,128], index: 13, kind: input, shape index: {}]
  %s14 = inlined_call_operand.vmem [shape: f32[1,128], index: 14, kind: input, shape index: {}]
  %s15 = inlined_call_operand.hbm [shape: f32[8,128], index: 15, kind: output, shape index: {}]
  %s16 = sld [smem:[#allocation0]]
  $region98: #{cnn_forward.1} parent=0
    _
  %s18 = ssub.s32 1, %s16
  %s19 = scalar_select 0, %s18, %s16
  $region1: #{cnn_forward.1} parent=0
    #allocation2 [shape = 'u8[4096]{0}', space=vmem, size = 0x1000, scoped, tag = 'input window, operand 0, single buffered']
    #allocation3 [shape = 's32[1]{0}', space=sflag, size = 0x4, scoped, tag = 'scoped memory for cnn_forward.1']
    #allocation4 [shape = 's32[1]{0}', space=sflag, size = 0x4, scoped, tag = 'scoped memory for cnn_forward.1']
    #allocation5 [shape = 'u8[32768]{0}', space=vmem, size = 0x8000, scoped, tag = 'input window, operand 1, single buffered']
    #allocation6 [shape = 's32[1]{0}', space=sflag, size = 0x4, scoped, tag = 'scoped memory for cnn_forward.1']
    #allocation7 [shape = 'u8[2048]{0}', space=vmem, size = 0x800, scoped, tag = 'input window, operand 3, single buffered']
    #allocation8 [shape = 'u8[524288]{0}', space=vmem, size = 0x80000, scoped, tag = 'input window, operand 4, single buffered']
    #allocation9 [shape = 's32[1]{0}', space=sflag, size = 0x4, scoped, tag = 'scoped memory for cnn_forward.1']
    #allocation10 [shape = 'u8[524288]{0}', space=vmem, size = 0x80000, scoped, tag = 'input window, operand 7, single buffered']
    #allocation11 [shape = 'u8[524288]{0}', space=vmem, size = 0x80000, scoped, tag = 'input window, operand 10, single buffered']
    #allocation12 [shape = 's32[1]{0}', space=sflag, size = 0x4, scoped, tag = 'scoped memory for cnn_forward.1']
    #allocation13 [shape = 'u8[131072]{0}', space=vmem, size = 0x20000, scoped, tag = 'input window, operand 13, single buffered']
    #allocation14 [shape = 'u8[4096]{0}', space=vmem, size = 0x1000, scoped, tag = 'output window, operand 0, single buffered']
    %20 = vsyncpa [#allocation3], 0
    %21 = vsyncpa [#allocation6], 0
    %22 = vsyncpa [#allocation9], 0
    %23 = vsyncpa [#allocation12], 0
    %24 = vsyncpa [#allocation4], 0
    // Predicated region
    $region2: #{cnn_forward.1} parent=1 // pred_check
      _
    $region3: #{cnn_forward.1} parent=1 // pred_check_branch
      %26 = sbr.rel (0) target = $region5
    $region4: #{cnn_forward.1} parent=1 // pred_region
      %s28 = ssub.s32 128, 128
      %29 = vsyncadd [#allocation3], %s28
      %s31 = sshll.u32 [#allocation2], 4
      %s32 = int_to_ptr.vmem [resolvable:$true] %s31
      %34 = dma.hbm_to_vmem [thread:$0]  %s0, 128, %s32, [#allocation3]
    $region5: #{cnn_forward.1} parent=1 // pred_fallthru
      _
    // Predicated region
    $region6: #{cnn_forward.1} parent=1 // pred_check
      _
    $region7: #{cnn_forward.1} parent=1 // pred_check_branch
      %36 = sbr.rel (0) target = $region9
    $region8: #{cnn_forward.1} parent=1 // pred_region
      %s38 = ssub.s32 1024, 1024
      %39 = vsyncadd [#allocation6], %s38
      %s40 = sshll.u32 [#allocation5], 4
      %s41 = int_to_ptr.vmem [resolvable:$true] %s40
      %46 = dma.hbm_to_vmem [thread:$0]  %s1, 1024, %s41, [#allocation6], 256, 256, 16
    $region9: #{cnn_forward.1} parent=1 // pred_fallthru
      _
    // Predicated region
    $region10: #{cnn_forward.1} parent=1 // pred_check
      _
    $region11: #{cnn_forward.1} parent=1 // pred_check_branch
      %48 = sbr.rel (0) target = $region13
    $region12: #{cnn_forward.1} parent=1 // pred_region
      _
    $region13: #{cnn_forward.1} parent=1 // pred_fallthru
      _
    // Predicated region
    $region14: #{cnn_forward.1} parent=1 // pred_check
      _
    $region15: #{cnn_forward.1} parent=1 // pred_check_branch
      %50 = sbr.rel (0) target = $region17
    $region16: #{cnn_forward.1} parent=1 // pred_region
      %s52 = ssub.s32 64, 64
      %53 = vsyncadd [#allocation6], %s52
      %s55 = sshll.u32 [#allocation7], 4
      %s56 = int_to_ptr.vmem [resolvable:$true] %s55
      %58 = dma.hbm_to_vmem [thread:$0]  %s3, 64, %s56, [#allocation6]
    $region17: #{cnn_forward.1} parent=1 // pred_fallthru
      _
    // Predicated region
    $region18: #{cnn_forward.1} parent=1 // pred_check
      _
    $region19: #{cnn_forward.1} parent=1 // pred_check_branch
      %60 = sbr.rel (0) target = $region21
    $region20: #{cnn_forward.1} parent=1 // pred_region
      %s62 = ssub.s32 16384, 16384
      %63 = vsyncadd [#allocation9], %s62
      %s64 = sshll.u32 [#allocation8], 4
      %s65 = int_to_ptr.vmem [resolvable:$true] %s64
      %70 = dma.hbm_to_vmem [thread:$0]  %s4, 16384, %s65, [#allocation9], 256, 256, 16
    $region21: #{cnn_forward.1} parent=1 // pred_fallthru
      _
    // Predicated region
    $region22: #{cnn_forward.1} parent=1 // pred_check
      _
    $region23: #{cnn_forward.1} parent=1 // pred_check_branch
      %72 = sbr.rel (0) target = $region25
    $region24: #{cnn_forward.1} parent=1 // pred_region
      _
    $region25: #{cnn_forward.1} parent=1 // pred_fallthru
      _
    // Predicated region
    $region26: #{cnn_forward.1} parent=1 // pred_check
      _
    $region27: #{cnn_forward.1} parent=1 // pred_check_branch
      %74 = sbr.rel (0) target = $region29
    $region28: #{cnn_forward.1} parent=1 // pred_region
      _
    $region29: #{cnn_forward.1} parent=1 // pred_fallthru
      _
    // Predicated region
    $region30: #{cnn_forward.1} parent=1 // pred_check
      _
    $region31: #{cnn_forward.1} parent=1 // pred_check_branch
      %76 = sbr.rel (0) target = $region33
    $region32: #{cnn_forward.1} parent=1 // pred_region
      %s78 = ssub.s32 16384, 16384
      %79 = vsyncadd [#allocation9], %s78
      %s80 = sshll.u32 [#allocation10], 4
      %s81 = int_to_ptr.vmem [resolvable:$true] %s80
      %86 = dma.hbm_to_vmem [thread:$0]  %s7, 16384, %s81, [#allocation9], 256, 256, 16
    $region33: #{cnn_forward.1} parent=1 // pred_fallthru
      _
    // Predicated region
    $region34: #{cnn_forward.1} parent=1 // pred_check
      _
    $region35: #{cnn_forward.1} parent=1 // pred_check_branch
      %88 = sbr.rel (0) target = $region37
    $region36: #{cnn_forward.1} parent=1 // pred_region
      _
    $region37: #{cnn_forward.1} parent=1 // pred_fallthru
      _
    // Predicated region
    $region38: #{cnn_forward.1} parent=1 // pred_check
      _
    $region39: #{cnn_forward.1} parent=1 // pred_check_branch
      %90 = sbr.rel (0) target = $region41
    $region40: #{cnn_forward.1} parent=1 // pred_region
      _
    $region41: #{cnn_forward.1} parent=1 // pred_fallthru
      _
    // Predicated region
    $region42: #{cnn_forward.1} parent=1 // pred_check
      _
    $region43: #{cnn_forward.1} parent=1 // pred_check_branch
      %92 = sbr.rel (0) target = $region45
    $region44: #{cnn_forward.1} parent=1 // pred_region
      %s94 = ssub.s32 16384, 16384
      %95 = vsyncadd [#allocation12], %s94
      %s96 = sshll.u32 [#allocation11], 4
      %s97 = int_to_ptr.vmem [resolvable:$true] %s96
      %102 = dma.hbm_to_vmem [thread:$0]  %s10, 16384, %s97, [#allocation12], 256, 256, 16
    $region45: #{cnn_forward.1} parent=1 // pred_fallthru
      _
    // Predicated region
    $region46: #{cnn_forward.1} parent=1 // pred_check
      _
    $region47: #{cnn_forward.1} parent=1 // pred_check_branch
      %104 = sbr.rel (0) target = $region49
    $region48: #{cnn_forward.1} parent=1 // pred_region
      _
    $region49: #{cnn_forward.1} parent=1 // pred_fallthru
      _
    // Predicated region
    $region50: #{cnn_forward.1} parent=1 // pred_check
      _
    $region51: #{cnn_forward.1} parent=1 // pred_check_branch
      %106 = sbr.rel (0) target = $region53
    $region52: #{cnn_forward.1} parent=1 // pred_region
      _
    $region53: #{cnn_forward.1} parent=1 // pred_fallthru
      _
    // Predicated region
    $region54: #{cnn_forward.1} parent=1 // pred_check
      _
    $region55: #{cnn_forward.1} parent=1 // pred_check_branch
      %108 = sbr.rel (0) target = $region57
    $region56: #{cnn_forward.1} parent=1 // pred_region
      %s110 = ssub.s32 4096, 4096
      %111 = vsyncadd [#allocation12], %s110
      %s112 = sshll.u32 [#allocation13], 4
      %s113 = int_to_ptr.vmem [resolvable:$true] %s112
      %118 = dma.hbm_to_vmem [thread:$0]  %s13, 4096, %s113, [#allocation12], 64, 64, 4
    $region57: #{cnn_forward.1} parent=1 // pred_fallthru
      _
    // Predicated region
    $region58: #{cnn_forward.1} parent=1 // pred_check
      _
    $region59: #{cnn_forward.1} parent=1 // pred_check_branch
      %120 = sbr.rel (0) target = $region61
    $region60: #{cnn_forward.1} parent=1 // pred_region
      _
    $region61: #{cnn_forward.1} parent=1 // pred_fallthru
      _
    // Predicated region
    $region62: #{cnn_forward.1} parent=1 // pred_check
      _
    $region63: #{cnn_forward.1} parent=1 // pred_check_branch
      %122 = sbr.rel (0) target = $region65
    $region64: #{cnn_forward.1} parent=1 // pred_region
      %123 = dma.done [#allocation3], 128
    $region65: #{cnn_forward.1} parent=1 // pred_fallthru
      _
    // Predicated region
    $region66: #{cnn_forward.1} parent=1 // pred_check
      _
    $region67: #{cnn_forward.1} parent=1 // pred_check_branch
      %125 = sbr.rel (0) target = $region69
    $region68: #{cnn_forward.1} parent=1 // pred_region
      %126 = dma.done [#allocation6], 1024
    $region69: #{cnn_forward.1} parent=1 // pred_fallthru
      _
    // Predicated region
    $region70: #{cnn_forward.1} parent=1 // pred_check
      _
    $region71: #{cnn_forward.1} parent=1 // pred_check_branch
      %128 = sbr.rel (0) target = $region73
    $region72: #{cnn_forward.1} parent=1 // pred_region
      %129 = dma.done [#allocation6], 64
    $region73: #{cnn_forward.1} parent=1 // pred_fallthru
      _
    // Predicated region
    $region74: #{cnn_forward.1} parent=1 // pred_check
      _
    $region75: #{cnn_forward.1} parent=1 // pred_check_branch
      %131 = sbr.rel (0) target = $region77
    $region76: #{cnn_forward.1} parent=1 // pred_region
      %132 = dma.done [#allocation9], 16384
    $region77: #{cnn_forward.1} parent=1 // pred_fallthru
      _
    // Predicated region
    $region78: #{cnn_forward.1} parent=1 // pred_check
      _
    $region79: #{cnn_forward.1} parent=1 // pred_check_branch
      %134 = sbr.rel (0) target = $region81
    $region80: #{cnn_forward.1} parent=1 // pred_region
      %135 = dma.done [#allocation9], 16384
    $region81: #{cnn_forward.1} parent=1 // pred_fallthru
      _
    // Predicated region
    $region82: #{cnn_forward.1} parent=1 // pred_check
      _
    $region83: #{cnn_forward.1} parent=1 // pred_check_branch
      %137 = sbr.rel (0) target = $region85
    $region84: #{cnn_forward.1} parent=1 // pred_region
      %138 = dma.done [#allocation12], 16384
    $region85: #{cnn_forward.1} parent=1 // pred_fallthru
      _
    // Predicated region
    $region86: #{cnn_forward.1} parent=1 // pred_check
      _
    $region87: #{cnn_forward.1} parent=1 // pred_check_branch
      %140 = sbr.rel (0) target = $region89
    $region88: #{cnn_forward.1} parent=1 // pred_region
      %141 = dma.done [#allocation12], 4096
    $region89: #{cnn_forward.1} parent=1 // pred_fallthru
      _
    %v143 = vld [vmem:[#allocation2] sm:$0xff]
    %v144 = vpack.c.bf16 %v143, %v143
    %v145 = vld [vmem:[#allocation5] sm:$0xff]
    %v146 = vld [vmem:[#allocation5 + $0x8] sm:$0xff]
    %v147 = vld [vmem:[#allocation5 + $0x10] sm:$0xff]
    %v148 = vld [vmem:[#allocation5 + $0x18] sm:$0xff]
    %v149 = vld [vmem:[#allocation5 + $0x20] sm:$0xff]
    %v150 = vld [vmem:[#allocation5 + $0x28] sm:$0xff]
    %v151 = vld [vmem:[#allocation5 + $0x30] sm:$0xff]
    %v152 = vld [vmem:[#allocation5 + $0x38] sm:$0xff]
    %v161 = vunpack.c.l.b16 %v145
    %v162 = vunpack.c.h.b16 %v145
    %v163 = vunpack.c.l.b16 %v146
    %v164 = vunpack.c.h.b16 %v146
    %v165 = vunpack.c.l.b16 %v147
    %v166 = vunpack.c.h.b16 %v147
    %v167 = vunpack.c.l.b16 %v148
    %v168 = vunpack.c.h.b16 %v148
    %v169 = vunpack.c.l.b16 %v149
    %v170 = vunpack.c.h.b16 %v149
    %v171 = vunpack.c.l.b16 %v150
    %v172 = vunpack.c.h.b16 %v150
    %v173 = vunpack.c.l.b16 %v151
    %v174 = vunpack.c.h.b16 %v151
    %v175 = vunpack.c.l.b16 %v152
    %v176 = vunpack.c.h.b16 %v152
    %v177 = vpack.c.b16 %v165, %v161
    %v178 = vpack.c.b16 %v166, %v162
    %v179 = vpack.c.b16 %v167, %v163
    %v180 = vpack.c.b16 %v168, %v164
    %v181 = vpack.c.b16 %v173, %v169
    %v182 = vpack.c.b16 %v174, %v170
    %v183 = vpack.c.b16 %v175, %v171
    %v184 = vpack.c.b16 %v176, %v172
    %vm193 = vcmask 261120
    %v195 = vsel %vm193, %v144, 0
    %197 = vmatprep.subr.bf16.mxu0 %v178
    %198 = vmatpush1.bf16.msra.mxu0 %v177
    %199 = vmatprep.subr.bf16.mxu0 %v182
    %200 = vmatpush1.bf16.msra.mxu0 %v181
    %201 = vmatprep.subr.bf16.mxu0 0
    %202 = vmatpush1.bf16.msra.mxu0 0
    %203 = vmatprep.subr.bf16.mxu0 0
    %204 = vmatpush1.bf16.msra.mxu0 0
    %205 = vmatprep.subr.bf16.mxu0 0
    %206 = vmatpush1.bf16.msra.mxu0 0
    %207 = vmatprep.subr.bf16.mxu0 0
    %208 = vmatpush1.bf16.msra.mxu0 0
    %209 = vmatprep.subr.bf16.mxu0 0
    %210 = vmatpush1.bf16.msra.mxu0 0
    %211 = vmatprep.subr.bf16.mxu0 0
    %212 = vmatpush1.bf16.msra.mxu0 0
    %213 = vmatprep.subr.bf16.mxu0 0
    %214 = vmatpush1.bf16.msra.mxu0 0
    %215 = vmatprep.subr.bf16.mxu0 0
    %216 = vmatpush1.bf16.msra.mxu0 0
    %217 = vmatprep.subr.bf16.mxu0 0
    %218 = vmatpush1.bf16.msra.mxu0 0
    %219 = vmatprep.subr.bf16.mxu0 0
    %220 = vmatpush1.bf16.msra.mxu0 0
    %221 = vmatprep.subr.bf16.mxu0 0
    %222 = vmatpush1.bf16.msra.mxu0 0
    %223 = vmatprep.subr.bf16.mxu0 0
    %224 = vmatpush1.bf16.msra.mxu0 0
    %225 = vmatprep.subr.bf16.mxu0 0
    %226 = vmatpush1.bf16.msra.mxu0 0
    %227 = vmatprep.subr.bf16.mxu0 0
    %228 = vmatpush1.bf16.msra.mxu0 0
    %229 = vmatprep.mubr.bf16.mxu0 0
    %230 = vmatmul.mubr.bf16.gmra.mrb[0].mxu0 %v195
    %v231 = vpop.f32.mrb[0].mxu0
    %v232 = vadd.f32 0.0, %v231
    %v233 = vpop.f32.mrb[0].mxu0
    %v234 = vadd.f32 0.0, %v233
    %v235 = vpop.f32.mrb[0].mxu0
    %v236 = vpop.f32.mrb[0].mxu0
    %237 = vdwg.mxu0
    %238 = vmatprep.subr.bf16.mxu0 %v180
    %239 = vmatpush1.bf16.msra.mxu0 %v179
    %240 = vmatprep.subr.bf16.mxu0 %v184
    %241 = vmatpush1.bf16.msra.mxu0 %v183
    %242 = vmatprep.subr.bf16.mxu0 0
    %243 = vmatpush1.bf16.msra.mxu0 0
    %244 = vmatprep.subr.bf16.mxu0 0
    %245 = vmatpush1.bf16.msra.mxu0 0
    %246 = vmatprep.subr.bf16.mxu0 0
    %247 = vmatpush1.bf16.msra.mxu0 0
    %248 = vmatprep.subr.bf16.mxu0 0
    %249 = vmatpush1.bf16.msra.mxu0 0
    %250 = vmatprep.subr.bf16.mxu0 0
    %251 = vmatpush1.bf16.msra.mxu0 0
    %252 = vmatprep.subr.bf16.mxu0 0
    %253 = vmatpush1.bf16.msra.mxu0 0
    %254 = vmatprep.subr.bf16.mxu0 0
    %255 = vmatpush1.bf16.msra.mxu0 0
    %256 = vmatprep.subr.bf16.mxu0 0
    %257 = vmatpush1.bf16.msra.mxu0 0
    %258 = vmatprep.subr.bf16.mxu0 0
    %259 = vmatpush1.bf16.msra.mxu0 0
    %260 = vmatprep.subr.bf16.mxu0 0
    %261 = vmatpush1.bf16.msra.mxu0 0
    %262 = vmatprep.subr.bf16.mxu0 0
    %263 = vmatpush1.bf16.msra.mxu0 0
    %264 = vmatprep.subr.bf16.mxu0 0
    %265 = vmatpush1.bf16.msra.mxu0 0
    %266 = vmatprep.subr.bf16.mxu0 0
    %267 = vmatpush1.bf16.msra.mxu0 0
    %268 = vmatprep.subr.bf16.mxu0 0
    %269 = vmatpush1.bf16.msra.mxu0 0
    %270 = vmatprep.mubr.bf16.mxu0 0
    %271 = vmatmul.mubr.bf16.gmra.mrb[0].mxu0 %v195
    %v272 = vpop.f32.mrb[0].mxu0
    %v273 = vadd.f32 0.0, %v272
    %v274 = vpop.f32.mrb[0].mxu0
    %v275 = vadd.f32 0.0, %v274
    %v276 = vpop.f32.mrb[0].mxu0
    %v277 = vpop.f32.mrb[0].mxu0
    %278 = vdwg.mxu0
    %v279 = vrot.slane %v232, 4
    %v280 = vadd.f32 %v232, %v279
    %v281 = vrot.slane %v280, 2
    %v282 = vadd.f32 %v280, %v281
    %v283 = vrot.slane %v282, 1
    %v284 = vadd.f32 %v282, %v283
    %v285 = vrot.slane %v234, 4
    %v286 = vadd.f32 %v234, %v285
    %v287 = vrot.slane %v286, 2
    %v288 = vadd.f32 %v286, %v287
    %v289 = vrot.slane %v288, 1
    %v290 = vadd.f32 %v288, %v289
    %v291 = vrot.slane %v273, 4
    %v292 = vadd.f32 %v273, %v291
    %v293 = vrot.slane %v292, 2
    %v294 = vadd.f32 %v292, %v293
    %v295 = vrot.slane %v294, 1
    %v296 = vadd.f32 %v294, %v295
    %v297 = vrot.slane %v275, 4
    %v298 = vadd.f32 %v275, %v297
    %v299 = vrot.slane %v298, 2
    %v300 = vadd.f32 %v298, %v299
    %v301 = vrot.slane %v300, 1
    %v302 = vadd.f32 %v300, %v301
    %v303 = vrcp.pop 8.0
    %v304 = vmul.f32 %v284, %v303
    %v305 = vmul.f32 %v290, %v303
    %v306 = vmul.f32 %v296, %v303
    %v307 = vmul.f32 %v302, %v303
    %v308 = vsub.f32 %v232, %v304
    %v309 = vsub.f32 %v234, %v305
    %v310 = vsub.f32 %v273, %v306
    %v311 = vsub.f32 %v275, %v307
    %v312 = vmul.f32 %v308, %v308
    %v313 = vmul.f32 %v309, %v309
    %v314 = vmul.f32 %v310, %v310
    %v315 = vmul.f32 %v311, %v311
    %v316 = vrot.slane %v312, 4
    %v317 = vadd.f32 %v312, %v316
    %v318 = vrot.slane %v317, 2
    %v319 = vadd.f32 %v317, %v318
    %v320 = vrot.slane %v319, 1
    %v321 = vadd.f32 %v319, %v320
    %v322 = vrot.slane %v313, 4
    %v323 = vadd.f32 %v313, %v322
    %v324 = vrot.slane %v323, 2
    %v325 = vadd.f32 %v323, %v324
    %v326 = vrot.slane %v325, 1
    %v327 = vadd.f32 %v325, %v326
    %v328 = vrot.slane %v314, 4
    %v329 = vadd.f32 %v314, %v328
    %v330 = vrot.slane %v329, 2
    %v331 = vadd.f32 %v329, %v330
    %v332 = vrot.slane %v331, 1
    %v333 = vadd.f32 %v331, %v332
    %v334 = vrot.slane %v315, 4
    %v335 = vadd.f32 %v315, %v334
    %v336 = vrot.slane %v335, 2
    %v337 = vadd.f32 %v335, %v336
    %v338 = vrot.slane %v337, 1
    %v339 = vadd.f32 %v337, %v338
    %v340 = vmul.f32 %v321, %v303
    %v341 = vmul.f32 %v327, %v303
    %v342 = vmul.f32 %v333, %v303
    %v343 = vmul.f32 %v339, %v303
    %v344 = vld [vmem:[%s2] sm:$0xf]
    %v345 = vadd.f32 %v340, 1e-05
    %v346 = vadd.f32 %v341, 1e-05
    %v347 = vadd.f32 %v342, 1e-05
    %v348 = vadd.f32 %v343, 1e-05
    %v349 = vrsqrt.pop %v345
    %v350 = vrsqrt.pop %v346
    %v351 = vrsqrt.pop %v347
    %v352 = vrsqrt.pop %v348
    %v357 = vcombine.low %v349, %v350
    %v358 = vcombine.low %v351, %v352
    %v360 = vunpack.c.l.s4 1966171168
    %v361 = vunpack.c.0.s8 %v360
    %v362 = vlaneseq
    %v363 = vshrl.u32 %v362, 7
    %v364 = vsub.s32 %v361, %v363
    %v365 = vrot.slane %v357, %v364
    %v367 = vunpack.c.l.s4 1966171168
    %v368 = vunpack.c.0.s8 %v367
    %v369 = vlaneseq
    %v370 = vshrl.u32 %v369, 7
    %v371 = vsub.s32 %v368, %v370
    %v372 = vrot.slane %v358, %v371
    %v373 = vcombine.low %v365, %v372
    %v375 = vunpack.c.l.s4 1966171168
    %v376 = vunpack.c.0.s8 %v375
    %v377 = vlaneseq
    %v378 = vshrl.u32 %v377, 7
    %v379 = vsub.s32 %v376, %v378
    %v380 = vrot.slane %v373, %v379
    %v382 = vmul.f32 %v344, %v380
    %v384 = vlaneseq
    %v385 = vshrl.u32 %v384, 7
    %v386 = vsub.s32 0, %v385
    %v387 = vrot.slane %v382, %v386
    %v388 = vlaneseq
    %v389 = vshrl.u32 %v388, 7
    %v390 = vsub.s32 1, %v389
    %v391 = vrot.slane %v382, %v390
    %v392 = vlaneseq
    %v393 = vshrl.u32 %v392, 7
    %v394 = vsub.s32 2, %v393
    %v395 = vrot.slane %v382, %v394
    %v396 = vlaneseq
    %v397 = vshrl.u32 %v396, 7
    %v398 = vsub.s32 3, %v397
    %v399 = vrot.slane %v382, %v398
    %v404 = vmul.f32 %v308, %v387
    %v405 = vmul.f32 %v309, %v391
    %v406 = vmul.f32 %v310, %v395
    %v407 = vmul.f32 %v311, %v399
    %v408 = vld [vmem:[#allocation7] sm:$0xf]
    %v410 = vlaneseq
    %v411 = vshrl.u32 %v410, 7
    %v412 = vsub.s32 0, %v411
    %v413 = vrot.slane %v408, %v412
    %v414 = vlaneseq
    %v415 = vshrl.u32 %v414, 7
    %v416 = vsub.s32 1, %v415
    %v417 = vrot.slane %v408, %v416
    %v418 = vlaneseq
    %v419 = vshrl.u32 %v418, 7
    %v420 = vsub.s32 2, %v419
    %v421 = vrot.slane %v408, %v420
    %v422 = vlaneseq
    %v423 = vshrl.u32 %v422, 7
    %v424 = vsub.s32 3, %v423
    %v425 = vrot.slane %v408, %v424
    %v430 = vadd.f32 %v404, %v413
    %v431 = vadd.f32 %v405, %v417
    %v432 = vadd.f32 %v406, %v421
    %v433 = vadd.f32 %v407, %v425
    %v434 = vmax.f32 %v430, 0.0
    %v435 = vmax.f32 %v431, 0.0
    %v436 = vmax.f32 %v432, 0.0
    %v437 = vmax.f32 %v433, 0.0
    %v438 = vpack.c.bf16 %v434, %v434
    %v439 = vpack.c.bf16 %v435, %v435
    %v440 = vpack.c.bf16 %v436, %v436
    %v441 = vpack.c.bf16 %v437, %v437
    %v442 = vld [vmem:[#allocation8] sm:$0xff]
    %v443 = vld [vmem:[#allocation8 + $0x8] sm:$0xff]
    %v444 = vld [vmem:[#allocation8 + $0x10] sm:$0xff]
    %v445 = vld [vmem:[#allocation8 + $0x18] sm:$0xff]
    %v446 = vld [vmem:[#allocation8 + $0x20] sm:$0xff]
    %v447 = vld [vmem:[#allocation8 + $0x28] sm:$0xff]
    %v448 = vld [vmem:[#allocation8 + $0x30] sm:$0xff]
    %v449 = vld [vmem:[#allocation8 + $0x38] sm:$0xff]
    %v450 = vld [vmem:[#allocation8 + $0x40] sm:$0xff]
    %v451 = vld [vmem:[#allocation8 + $0x48] sm:$0xff]
    %v452 = vld [vmem:[#allocation8 + $0x50] sm:$0xff]
    %v453 = vld [vmem:[#allocation8 + $0x58] sm:$0xff]
    %v454 = vld [vmem:[#allocation8 + $0x60] sm:$0xff]
    %v455 = vld [vmem:[#allocation8 + $0x68] sm:$0xff]
    %v456 = vld [vmem:[#allocation8 + $0x70] sm:$0xff]
    %v457 = vld [vmem:[#allocation8 + $0x78] sm:$0xff]
    %v458 = vld [vmem:[#allocation8 + $0x80] sm:$0xff]
    %v459 = vld [vmem:[#allocation8 + $0x88] sm:$0xff]
    %v460 = vld [vmem:[#allocation8 + $0x90] sm:$0xff]
    %v461 = vld [vmem:[#allocation8 + $0x98] sm:$0xff]
    %v462 = vld [vmem:[#allocation8 + $0xa0] sm:$0xff]
    %v463 = vld [vmem:[#allocation8 + $0xa8] sm:$0xff]
    %v464 = vld [vmem:[#allocation8 + $0xb0] sm:$0xff]
    %v465 = vld [vmem:[#allocation8 + $0xb8] sm:$0xff]
    %v466 = vld [vmem:[#allocation8 + $0xc0] sm:$0xff]
    %v467 = vld [vmem:[#allocation8 + $0xc8] sm:$0xff]
    %v468 = vld [vmem:[#allocation8 + $0xd0] sm:$0xff]
    %v469 = vld [vmem:[#allocation8 + $0xd8] sm:$0xff]
    %v470 = vld [vmem:[#allocation8 + $0xe0] sm:$0xff]
    %v471 = vld [vmem:[#allocation8 + $0xe8] sm:$0xff]
    %v472 = vld [vmem:[#allocation8 + $0xf0] sm:$0xff]
    %v473 = vld [vmem:[#allocation8 + $0xf8] sm:$0xff]
    %v474 = vld [vmem:[#allocation8 + $0x100] sm:$0xff]
    %v475 = vld [vmem:[#allocation8 + $0x108] sm:$0xff]
    %v476 = vld [vmem:[#allocation8 + $0x110] sm:$0xff]
    %v477 = vld [vmem:[#allocation8 + $0x118] sm:$0xff]
    %v478 = vld [vmem:[#allocation8 + $0x120] sm:$0xff]
    %v479 = vld [vmem:[#allocation8 + $0x128] sm:$0xff]
    %v480 = vld [vmem:[#allocation8 + $0x130] sm:$0xff]
    %v481 = vld [vmem:[#allocation8 + $0x138] sm:$0xff]
    %v482 = vld [vmem:[#allocation8 + $0x140] sm:$0xff]
    %v483 = vld [vmem:[#allocation8 + $0x148] sm:$0xff]
    %v484 = vld [vmem:[#allocation8 + $0x150] sm:$0xff]
    %v485 = vld [vmem:[#allocation8 + $0x158] sm:$0xff]
    %v486 = vld [vmem:[#allocation8 + $0x160] sm:$0xff]
    %v487 = vld [vmem:[#allocation8 + $0x168] sm:$0xff]
    %v488 = vld [vmem:[#allocation8 + $0x170] sm:$0xff]
    %v489 = vld [vmem:[#allocation8 + $0x178] sm:$0xff]
    %v490 = vld [vmem:[#allocation8 + $0x180] sm:$0xff]
    %v491 = vld [vmem:[#allocation8 + $0x188] sm:$0xff]
    %v492 = vld [vmem:[#allocation8 + $0x190] sm:$0xff]
    %v493 = vld [vmem:[#allocation8 + $0x198] sm:$0xff]
    %v494 = vld [vmem:[#allocation8 + $0x1a0] sm:$0xff]
    %v495 = vld [vmem:[#allocation8 + $0x1a8] sm:$0xff]
    %v496 = vld [vmem:[#allocation8 + $0x1b0] sm:$0xff]
    %v497 = vld [vmem:[#allocation8 + $0x1b8] sm:$0xff]
    %v498 = vld [vmem:[#allocation8 + $0x1c0] sm:$0xff]
    %v499 = vld [vmem:[#allocation8 + $0x1c8] sm:$0xff]
    %v500 = vld [vmem:[#allocation8 + $0x1d0] sm:$0xff]
    %v501 = vld [vmem:[#allocation8 + $0x1d8] sm:$0xff]
    %v502 = vld [vmem:[#allocation8 + $0x1e0] sm:$0xff]
    %v503 = vld [vmem:[#allocation8 + $0x1e8] sm:$0xff]
    %v504 = vld [vmem:[#allocation8 + $0x1f0] sm:$0xff]
    %v505 = vld [vmem:[#allocation8 + $0x1f8] sm:$0xff]
    %v506 = vld [vmem:[#allocation8 + $0x200] sm:$0xff]
    %v507 = vld [vmem:[#allocation8 + $0x208] sm:$0xff]
    %v508 = vld [vmem:[#allocation8 + $0x210] sm:$0xff]
    %v509 = vld [vmem:[#allocation8 + $0x218] sm:$0xff]
    %v510 = vld [vmem:[#allocation8 + $0x220] sm:$0xff]
    %v511 = vld [vmem:[#allocation8 + $0x228] sm:$0xff]
    %v512 = vld [vmem:[#allocation8 + $0x230] sm:$0xff]
    %v513 = vld [vmem:[#allocation8 + $0x238] sm:$0xff]
    %v514 = vld [vmem:[#allocation8 + $0x240] sm:$0xff]
    %v515 = vld [vmem:[#allocation8 + $0x248] sm:$0xff]
    %v516 = vld [vmem:[#allocation8 + $0x250] sm:$0xff]
    %v517 = vld [vmem:[#allocation8 + $0x258] sm:$0xff]
    %v518 = vld [vmem:[#allocation8 + $0x260] sm:$0xff]
    %v519 = vld [vmem:[#allocation8 + $0x268] sm:$0xff]
    %v520 = vld [vmem:[#allocation8 + $0x270] sm:$0xff]
    %v521 = vld [vmem:[#allocation8 + $0x278] sm:$0xff]
    %v522 = vld [vmem:[#allocation8 + $0x280] sm:$0xff]
    %v523 = vld [vmem:[#allocation8 + $0x288] sm:$0xff]
    %v524 = vld [vmem:[#allocation8 + $0x290] sm:$0xff]
    %v525 = vld [vmem:[#allocation8 + $0x298] sm:$0xff]
    %v526 = vld [vmem:[#allocation8 + $0x2a0] sm:$0xff]
    %v527 = vld [vmem:[#allocation8 + $0x2a8] sm:$0xff]
    %v528 = vld [vmem:[#allocation8 + $0x2b0] sm:$0xff]
    %v529 = vld [vmem:[#allocation8 + $0x2b8] sm:$0xff]
    %v530 = vld [vmem:[#allocation8 + $0x2c0] sm:$0xff]
    %v531 = vld [vmem:[#allocation8 + $0x2c8] sm:$0xff]
    %v532 = vld [vmem:[#allocation8 + $0x2d0] sm:$0xff]
    %v533 = vld [vmem:[#allocation8 + $0x2d8] sm:$0xff]
    %v534 = vld [vmem:[#allocation8 + $0x2e0] sm:$0xff]
    %v535 = vld [vmem:[#allocation8 + $0x2e8] sm:$0xff]
    %v536 = vld [vmem:[#allocation8 + $0x2f0] sm:$0xff]
    %v537 = vld [vmem:[#allocation8 + $0x2f8] sm:$0xff]
    %v538 = vld [vmem:[#allocation8 + $0x300] sm:$0xff]
    %v539 = vld [vmem:[#allocation8 + $0x308] sm:$0xff]
    %v540 = vld [vmem:[#allocation8 + $0x310] sm:$0xff]
    %v541 = vld [vmem:[#allocation8 + $0x318] sm:$0xff]
    %v542 = vld [vmem:[#allocation8 + $0x320] sm:$0xff]
    %v543 = vld [vmem:[#allocation8 + $0x328] sm:$0xff]
    %v544 = vld [vmem:[#allocation8 + $0x330] sm:$0xff]
    %v545 = vld [vmem:[#allocation8 + $0x338] sm:$0xff]
    %v546 = vld [vmem:[#allocation8 + $0x340] sm:$0xff]
    %v547 = vld [vmem:[#allocation8 + $0x348] sm:$0xff]
    %v548 = vld [vmem:[#allocation8 + $0x350] sm:$0xff]
    %v549 = vld [vmem:[#allocation8 + $0x358] sm:$0xff]
    %v550 = vld [vmem:[#allocation8 + $0x360] sm:$0xff]
    %v551 = vld [vmem:[#allocation8 + $0x368] sm:$0xff]
    %v552 = vld [vmem:[#allocation8 + $0x370] sm:$0xff]
    %v553 = vld [vmem:[#allocation8 + $0x378] sm:$0xff]
    %v554 = vld [vmem:[#allocation8 + $0x380] sm:$0xff]
    %v555 = vld [vmem:[#allocation8 + $0x388] sm:$0xff]
    %v556 = vld [vmem:[#allocation8 + $0x390] sm:$0xff]
    %v557 = vld [vmem:[#allocation8 + $0x398] sm:$0xff]
    %v558 = vld [vmem:[#allocation8 + $0x3a0] sm:$0xff]
    %v559 = vld [vmem:[#allocation8 + $0x3a8] sm:$0xff]
    %v560 = vld [vmem:[#allocation8 + $0x3b0] sm:$0xff]
    %v561 = vld [vmem:[#allocation8 + $0x3b8] sm:$0xff]
    %v562 = vld [vmem:[#allocation8 + $0x3c0] sm:$0xff]
    %v563 = vld [vmem:[#allocation8 + $0x3c8] sm:$0xff]
    %v564 = vld [vmem:[#allocation8 + $0x3d0] sm:$0xff]
    %v565 = vld [vmem:[#allocation8 + $0x3d8] sm:$0xff]
    %v566 = vld [vmem:[#allocation8 + $0x3e0] sm:$0xff]
    %v567 = vld [vmem:[#allocation8 + $0x3e8] sm:$0xff]
    %v568 = vld [vmem:[#allocation8 + $0x3f0] sm:$0xff]
    %v569 = vld [vmem:[#allocation8 + $0x3f8] sm:$0xff]
    %v698 = vunpack.c.l.b16 %v442
    %v699 = vunpack.c.h.b16 %v442
    %v700 = vunpack.c.l.b16 %v443
    %v701 = vunpack.c.h.b16 %v443
    %v702 = vunpack.c.l.b16 %v444
    %v703 = vunpack.c.h.b16 %v444
    %v704 = vunpack.c.l.b16 %v445
    %v705 = vunpack.c.h.b16 %v445
    %v706 = vunpack.c.l.b16 %v446
    %v707 = vunpack.c.h.b16 %v446
    %v708 = vunpack.c.l.b16 %v447
    %v709 = vunpack.c.h.b16 %v447
    %v710 = vunpack.c.l.b16 %v448
    %v711 = vunpack.c.h.b16 %v448
    %v712 = vunpack.c.l.b16 %v449
    %v713 = vunpack.c.h.b16 %v449
    %v714 = vunpack.c.l.b16 %v450
    %v715 = vunpack.c.h.b16 %v450
    %v716 = vunpack.c.l.b16 %v451
    %v717 = vunpack.c.h.b16 %v451
    %v718 = vunpack.c.l.b16 %v452
    %v719 = vunpack.c.h.b16 %v452
    %v720 = vunpack.c.l.b16 %v453
    %v721 = vunpack.c.h.b16 %v453
    %v722 = vunpack.c.l.b16 %v454
    %v723 = vunpack.c.h.b16 %v454
    %v724 = vunpack.c.l.b16 %v455
    %v725 = vunpack.c.h.b16 %v455
    %v726 = vunpack.c.l.b16 %v456
    %v727 = vunpack.c.h.b16 %v456
    %v728 = vunpack.c.l.b16 %v457
    %v729 = vunpack.c.h.b16 %v457
    %v730 = vunpack.c.l.b16 %v458
    %v731 = vunpack.c.h.b16 %v458
    %v732 = vunpack.c.l.b16 %v459
    %v733 = vunpack.c.h.b16 %v459
    %v734 = vunpack.c.l.b16 %v460
    %v735 = vunpack.c.h.b16 %v460
    %v736 = vunpack.c.l.b16 %v461
    %v737 = vunpack.c.h.b16 %v461
    %v738 = vunpack.c.l.b16 %v462
    %v739 = vunpack.c.h.b16 %v462
    %v740 = vunpack.c.l.b16 %v463
    %v741 = vunpack.c.h.b16 %v463
    %v742 = vunpack.c.l.b16 %v464
    %v743 = vunpack.c.h.b16 %v464
    %v744 = vunpack.c.l.b16 %v465
    %v745 = vunpack.c.h.b16 %v465
    %v746 = vunpack.c.l.b16 %v466
    %v747 = vunpack.c.h.b16 %v466
    %v748 = vunpack.c.l.b16 %v467
    %v749 = vunpack.c.h.b16 %v467
    %v750 = vunpack.c.l.b16 %v468
    %v751 = vunpack.c.h.b16 %v468
    %v752 = vunpack.c.l.b16 %v469
    %v753 = vunpack.c.h.b16 %v469
    %v754 = vunpack.c.l.b16 %v470
    %v755 = vunpack.c.h.b16 %v470
    %v756 = vunpack.c.l.b16 %v471
    %v757 = vunpack.c.h.b16 %v471
    %v758 = vunpack.c.l.b16 %v472
    %v759 = vunpack.c.h.b16 %v472
    %v760 = vunpack.c.l.b16 %v473
    %v761 = vunpack.c.h.b16 %v473
    %v762 = vunpack.c.l.b16 %v474
    %v763 = vunpack.c.h.b16 %v474
    %v764 = vunpack.c.l.b16 %v475
    %v765 = vunpack.c.h.b16 %v475
    %v766 = vunpack.c.l.b16 %v476
    %v767 = vunpack.c.h.b16 %v476
    %v768 = vunpack.c.l.b16 %v477
    %v769 = vunpack.c.h.b16 %v477
    %v770 = vunpack.c.l.b16 %v478
    %v771 = vunpack.c.h.b16 %v478
    %v772 = vunpack.c.l.b16 %v479
    %v773 = vunpack.c.h.b16 %v479
    %v774 = vunpack.c.l.b16 %v480
    %v775 = vunpack.c.h.b16 %v480
    %v776 = vunpack.c.l.b16 %v481
    %v777 = vunpack.c.h.b16 %v481
    %v778 = vunpack.c.l.b16 %v482
    %v779 = vunpack.c.h.b16 %v482
    %v780 = vunpack.c.l.b16 %v483
    %v781 = vunpack.c.h.b16 %v483
    %v782 = vunpack.c.l.b16 %v484
    %v783 = vunpack.c.h.b16 %v484
    %v784 = vunpack.c.l.b16 %v485
    %v785 = vunpack.c.h.b16 %v485
    %v786 = vunpack.c.l.b16 %v486
    %v787 = vunpack.c.h.b16 %v486
    %v788 = vunpack.c.l.b16 %v487
    %v789 = vunpack.c.h.b16 %v487
    %v790 = vunpack.c.l.b16 %v488
    %v791 = vunpack.c.h.b16 %v488
    %v792 = vunpack.c.l.b16 %v489
    %v793 = vunpack.c.h.b16 %v489
    %v794 = vunpack.c.l.b16 %v490
    %v795 = vunpack.c.h.b16 %v490
    %v796 = vunpack.c.l.b16 %v491
    %v797 = vunpack.c.h.b16 %v491
    %v798 = vunpack.c.l.b16 %v492
    %v799 = vunpack.c.h.b16 %v492
    %v800 = vunpack.c.l.b16 %v493
    %v801 = vunpack.c.h.b16 %v493
    %v802 = vunpack.c.l.b16 %v494
    %v803 = vunpack.c.h.b16 %v494
    %v804 = vunpack.c.l.b16 %v495
    %v805 = vunpack.c.h.b16 %v495
    %v806 = vunpack.c.l.b16 %v496
    %v807 = vunpack.c.h.b16 %v496
    %v808 = vunpack.c.l.b16 %v497
    %v809 = vunpack.c.h.b16 %v497
    %v810 = vunpack.c.l.b16 %v498
    %v811 = vunpack.c.h.b16 %v498
    %v812 = vunpack.c.l.b16 %v499
    %v813 = vunpack.c.h.b16 %v499
    %v814 = vunpack.c.l.b16 %v500
    %v815 = vunpack.c.h.b16 %v500
    %v816 = vunpack.c.l.b16 %v501
    %v817 = vunpack.c.h.b16 %v501
    %v818 = vunpack.c.l.b16 %v502
    %v819 = vunpack.c.h.b16 %v502
    %v820 = vunpack.c.l.b16 %v503
    %v821 = vunpack.c.h.b16 %v503
    %v822 = vunpack.c.l.b16 %v504
    %v823 = vunpack.c.h.b16 %v504
    %v824 = vunpack.c.l.b16 %v505
    %v825 = vunpack.c.h.b16 %v505
    %v826 = vunpack.c.l.b16 %v506
    %v827 = vunpack.c.h.b16 %v506
    %v828 = vunpack.c.l.b16 %v507
    %v829 = vunpack.c.h.b16 %v507
    %v830 = vunpack.c.l.b16 %v508
    %v831 = vunpack.c.h.b16 %v508
    %v832 = vunpack.c.l.b16 %v509
    %v833 = vunpack.c.h.b16 %v509
    %v834 = vunpack.c.l.b16 %v510
    %v835 = vunpack.c.h.b16 %v510
    %v836 = vunpack.c.l.b16 %v511
    %v837 = vunpack.c.h.b16 %v511
    %v838 = vunpack.c.l.b16 %v512
    %v839 = vunpack.c.h.b16 %v512
    %v840 = vunpack.c.l.b16 %v513
    %v841 = vunpack.c.h.b16 %v513
    %v842 = vunpack.c.l.b16 %v514
    %v843 = vunpack.c.h.b16 %v514
    %v844 = vunpack.c.l.b16 %v515
    %v845 = vunpack.c.h.b16 %v515
    %v846 = vunpack.c.l.b16 %v516
    %v847 = vunpack.c.h.b16 %v516
    %v848 = vunpack.c.l.b16 %v517
    %v849 = vunpack.c.h.b16 %v517
    %v850 = vunpack.c.l.b16 %v518
    %v851 = vunpack.c.h.b16 %v518
    %v852 = vunpack.c.l.b16 %v519
    %v853 = vunpack.c.h.b16 %v519
    %v854 = vunpack.c.l.b16 %v520
    %v855 = vunpack.c.h.b16 %v520
    %v856 = vunpack.c.l.b16 %v521
    %v857 = vunpack.c.h.b16 %v521
    %v858 = vunpack.c.l.b16 %v522
    %v859 = vunpack.c.h.b16 %v522
    %v860 = vunpack.c.l.b16 %v523
    %v861 = vunpack.c.h.b16 %v523
    %v862 = vunpack.c.l.b16 %v524
    %v863 = vunpack.c.h.b16 %v524
    %v864 = vunpack.c.l.b16 %v525
    %v865 = vunpack.c.h.b16 %v525
    %v866 = vunpack.c.l.b16 %v526
    %v867 = vunpack.c.h.b16 %v526
    %v868 = vunpack.c.l.b16 %v527
    %v869 = vunpack.c.h.b16 %v527
    %v870 = vunpack.c.l.b16 %v528
    %v871 = vunpack.c.h.b16 %v528
    %v872 = vunpack.c.l.b16 %v529
    %v873 = vunpack.c.h.b16 %v529
    %v874 = vunpack.c.l.b16 %v530
    %v875 = vunpack.c.h.b16 %v530
    %v876 = vunpack.c.l.b16 %v531
    %v877 = vunpack.c.h.b16 %v531
    %v878 = vunpack.c.l.b16 %v532
    %v879 = vunpack.c.h.b16 %v532
    %v880 = vunpack.c.l.b16 %v533
    %v881 = vunpack.c.h.b16 %v533
    %v882 = vunpack.c.l.b16 %v534
    %v883 = vunpack.c.h.b16 %v534
    %v884 = vunpack.c.l.b16 %v535
    %v885 = vunpack.c.h.b16 %v535
    %v886 = vunpack.c.l.b16 %v536
    %v887 = vunpack.c.h.b16 %v536
    %v888 = vunpack.c.l.b16 %v537
    %v889 = vunpack.c.h.b16 %v537
    %v890 = vunpack.c.l.b16 %v538
    %v891 = vunpack.c.h.b16 %v538
    %v892 = vunpack.c.l.b16 %v539
    %v893 = vunpack.c.h.b16 %v539
    %v894 = vunpack.c.l.b16 %v540
    %v895 = vunpack.c.h.b16 %v540
    %v896 = vunpack.c.l.b16 %v541
    %v897 = vunpack.c.h.b16 %v541
    %v898 = vunpack.c.l.b16 %v542
    %v899 = vunpack.c.h.b16 %v542
    %v900 = vunpack.c.l.b16 %v543
    %v901 = vunpack.c.h.b16 %v543
    %v902 = vunpack.c.l.b16 %v544
    %v903 = vunpack.c.h.b16 %v544
    %v904 = vunpack.c.l.b16 %v545
    %v905 = vunpack.c.h.b16 %v545
    %v906 = vunpack.c.l.b16 %v546
    %v907 = vunpack.c.h.b16 %v546
    %v908 = vunpack.c.l.b16 %v547
    %v909 = vunpack.c.h.b16 %v547
    %v910 = vunpack.c.l.b16 %v548
    %v911 = vunpack.c.h.b16 %v548
    %v912 = vunpack.c.l.b16 %v549
    %v913 = vunpack.c.h.b16 %v549
    %v914 = vunpack.c.l.b16 %v550
    %v915 = vunpack.c.h.b16 %v550
    %v916 = vunpack.c.l.b16 %v551
    %v917 = vunpack.c.h.b16 %v551
    %v918 = vunpack.c.l.b16 %v552
    %v919 = vunpack.c.h.b16 %v552
    %v920 = vunpack.c.l.b16 %v553
    %v921 = vunpack.c.h.b16 %v553
    %v922 = vunpack.c.l.b16 %v554
    %v923 = vunpack.c.h.b16 %v554
    %v924 = vunpack.c.l.b16 %v555
    %v925 = vunpack.c.h.b16 %v555
    %v926 = vunpack.c.l.b16 %v556
    %v927 = vunpack.c.h.b16 %v556
    %v928 = vunpack.c.l.b16 %v557
    %v929 = vunpack.c.h.b16 %v557
    %v930 = vunpack.c.l.b16 %v558
    %v931 = vunpack.c.h.b16 %v558
    %v932 = vunpack.c.l.b16 %v559
    %v933 = vunpack.c.h.b16 %v559
    %v934 = vunpack.c.l.b16 %v560
    %v935 = vunpack.c.h.b16 %v560
    %v936 = vunpack.c.l.b16 %v561
    %v937 = vunpack.c.h.b16 %v561
    %v938 = vunpack.c.l.b16 %v562
    %v939 = vunpack.c.h.b16 %v562
    %v940 = vunpack.c.l.b16 %v563
    %v941 = vunpack.c.h.b16 %v563
    %v942 = vunpack.c.l.b16 %v564
    %v943 = vunpack.c.h.b16 %v564
    %v944 = vunpack.c.l.b16 %v565
    %v945 = vunpack.c.h.b16 %v565
    %v946 = vunpack.c.l.b16 %v566
    %v947 = vunpack.c.h.b16 %v566
    %v948 = vunpack.c.l.b16 %v567
    %v949 = vunpack.c.h.b16 %v567
    %v950 = vunpack.c.l.b16 %v568
    %v951 = vunpack.c.h.b16 %v568
    %v952 = vunpack.c.l.b16 %v569
    %v953 = vunpack.c.h.b16 %v569
    %v954 = vpack.c.b16 %v702, %v698
    %v955 = vpack.c.b16 %v703, %v699
    %v956 = vpack.c.b16 %v704, %v700
    %v957 = vpack.c.b16 %v705, %v701
    %v958 = vpack.c.b16 %v710, %v706
    %v959 = vpack.c.b16 %v711, %v707
    %v960 = vpack.c.b16 %v712, %v708
    %v961 = vpack.c.b16 %v713, %v709
    %v962 = vpack.c.b16 %v718, %v714
    %v963 = vpack.c.b16 %v719, %v715
    %v964 = vpack.c.b16 %v720, %v716
    %v965 = vpack.c.b16 %v721, %v717
    %v966 = vpack.c.b16 %v726, %v722
    %v967 = vpack.c.b16 %v727, %v723
    %v968 = vpack.c.b16 %v728, %v724
    %v969 = vpack.c.b16 %v729, %v725
    %v970 = vpack.c.b16 %v734, %v730
    %v971 = vpack.c.b16 %v735, %v731
    %v972 = vpack.c.b16 %v736, %v732
    %v973 = vpack.c.b16 %v737, %v733
    %v974 = vpack.c.b16 %v742, %v738
    %v975 = vpack.c.b16 %v743, %v739
    %v976 = vpack.c.b16 %v744, %v740
    %v977 = vpack.c.b16 %v745, %v741
    %v978 = vpack.c.b16 %v750, %v746
    %v979 = vpack.c.b16 %v751, %v747
    %v980 = vpack.c.b16 %v752, %v748
    %v981 = vpack.c.b16 %v753, %v749
    %v982 = vpack.c.b16 %v758, %v754
    %v983 = vpack.c.b16 %v759, %v755
    %v984 = vpack.c.b16 %v760, %v756
    %v985 = vpack.c.b16 %v761, %v757
    %v986 = vpack.c.b16 %v766, %v762
    %v987 = vpack.c.b16 %v767, %v763
    %v988 = vpack.c.b16 %v768, %v764
    %v989 = vpack.c.b16 %v769, %v765
    %v990 = vpack.c.b16 %v774, %v770
    %v991 = vpack.c.b16 %v775, %v771
    %v992 = vpack.c.b16 %v776, %v772
    %v993 = vpack.c.b16 %v777, %v773
    %v994 = vpack.c.b16 %v782, %v778
    %v995 = vpack.c.b16 %v783, %v779
    %v996 = vpack.c.b16 %v784, %v780
    %v997 = vpack.c.b16 %v785, %v781
    %v998 = vpack.c.b16 %v790, %v786
    %v999 = vpack.c.b16 %v791, %v787
    %v1000 = vpack.c.b16 %v792, %v788
    %v1001 = vpack.c.b16 %v793, %v789
    %v1002 = vpack.c.b16 %v798, %v794
    %v1003 = vpack.c.b16 %v799, %v795
    %v1004 = vpack.c.b16 %v800, %v796
    %v1005 = vpack.c.b16 %v801, %v797
    %v1006 = vpack.c.b16 %v806, %v802
    %v1007 = vpack.c.b16 %v807, %v803
    %v1008 = vpack.c.b16 %v808, %v804
    %v1009 = vpack.c.b16 %v809, %v805
    %v1010 = vpack.c.b16 %v814, %v810
    %v1011 = vpack.c.b16 %v815, %v811
    %v1012 = vpack.c.b16 %v816, %v812
    %v1013 = vpack.c.b16 %v817, %v813
    %v1014 = vpack.c.b16 %v822, %v818
    %v1015 = vpack.c.b16 %v823, %v819
    %v1016 = vpack.c.b16 %v824, %v820
    %v1017 = vpack.c.b16 %v825, %v821
    %v1018 = vpack.c.b16 %v830, %v826
    %v1019 = vpack.c.b16 %v831, %v827
    %v1020 = vpack.c.b16 %v832, %v828
    %v1021 = vpack.c.b16 %v833, %v829
    %v1022 = vpack.c.b16 %v838, %v834
    %v1023 = vpack.c.b16 %v839, %v835
    %v1024 = vpack.c.b16 %v840, %v836
    %v1025 = vpack.c.b16 %v841, %v837
    %v1026 = vpack.c.b16 %v846, %v842
    %v1027 = vpack.c.b16 %v847, %v843
    %v1028 = vpack.c.b16 %v848, %v844
    %v1029 = vpack.c.b16 %v849, %v845
    %v1030 = vpack.c.b16 %v854, %v850
    %v1031 = vpack.c.b16 %v855, %v851
    %v1032 = vpack.c.b16 %v856, %v852
    %v1033 = vpack.c.b16 %v857, %v853
    %v1034 = vpack.c.b16 %v862, %v858
    %v1035 = vpack.c.b16 %v863, %v859
    %v1036 = vpack.c.b16 %v864, %v860
    %v1037 = vpack.c.b16 %v865, %v861
    %v1038 = vpack.c.b16 %v870, %v866
    %v1039 = vpack.c.b16 %v871, %v867
    %v1040 = vpack.c.b16 %v872, %v868
    %v1041 = vpack.c.b16 %v873, %v869
    %v1042 = vpack.c.b16 %v878, %v874
    %v1043 = vpack.c.b16 %v879, %v875
    %v1044 = vpack.c.b16 %v880, %v876
    %v1045 = vpack.c.b16 %v881, %v877
    %v1046 = vpack.c.b16 %v886, %v882
    %v1047 = vpack.c.b16 %v887, %v883
    %v1048 = vpack.c.b16 %v888, %v884
    %v1049 = vpack.c.b16 %v889, %v885
    %v1050 = vpack.c.b16 %v894, %v890
    %v1051 = vpack.c.b16 %v895, %v891
    %v1052 = vpack.c.b16 %v896, %v892
    %v1053 = vpack.c.b16 %v897, %v893
    %v1054 = vpack.c.b16 %v902, %v898
    %v1055 = vpack.c.b16 %v903, %v899
    %v1056 = vpack.c.b16 %v904, %v900
    %v1057 = vpack.c.b16 %v905, %v901
    %v1058 = vpack.c.b16 %v910, %v906
    %v1059 = vpack.c.b16 %v911, %v907
    %v1060 = vpack.c.b16 %v912, %v908
    %v1061 = vpack.c.b16 %v913, %v909
    %v1062 = vpack.c.b16 %v918, %v914
    %v1063 = vpack.c.b16 %v919, %v915
    %v1064 = vpack.c.b16 %v920, %v916
    %v1065 = vpack.c.b16 %v921, %v917
    %v1066 = vpack.c.b16 %v926, %v922
    %v1067 = vpack.c.b16 %v927, %v923
    %v1068 = vpack.c.b16 %v928, %v924
    %v1069 = vpack.c.b16 %v929, %v925
    %v1070 = vpack.c.b16 %v934, %v930
    %v1071 = vpack.c.b16 %v935, %v931
    %v1072 = vpack.c.b16 %v936, %v932
    %v1073 = vpack.c.b16 %v937, %v933
    %v1074 = vpack.c.b16 %v942, %v938
    %v1075 = vpack.c.b16 %v943, %v939
    %v1076 = vpack.c.b16 %v944, %v940
    %v1077 = vpack.c.b16 %v945, %v941
    %v1078 = vpack.c.b16 %v950, %v946
    %v1079 = vpack.c.b16 %v951, %v947
    %v1080 = vpack.c.b16 %v952, %v948
    %v1081 = vpack.c.b16 %v953, %v949
    %1210 = vmatprep.subr.bf16.mxu0 %v955
    %1211 = vmatpush1.bf16.msra.mxu0 %v954
    %1212 = vmatprep.subr.bf16.mxu0 %v959
    %1213 = vmatpush1.bf16.msra.mxu0 %v958
    %1214 = vmatprep.subr.bf16.mxu0 %v963
    %1215 = vmatpush1.bf16.msra.mxu0 %v962
    %1216 = vmatprep.subr.bf16.mxu0 %v967
    %1217 = vmatpush1.bf16.msra.mxu0 %v966
    %1218 = vmatprep.subr.bf16.mxu0 %v971
    %1219 = vmatpush1.bf16.msra.mxu0 %v970
    %1220 = vmatprep.subr.bf16.mxu0 %v975
    %1221 = vmatpush1.bf16.msra.mxu0 %v974
    %1222 = vmatprep.subr.bf16.mxu0 %v979
    %1223 = vmatpush1.bf16.msra.mxu0 %v978
    %1224 = vmatprep.subr.bf16.mxu0 %v983
    %1225 = vmatpush1.bf16.msra.mxu0 %v982
    %1226 = vmatprep.subr.bf16.mxu0 %v987
    %1227 = vmatpush1.bf16.msra.mxu0 %v986
    %1228 = vmatprep.subr.bf16.mxu0 %v991
    %1229 = vmatpush1.bf16.msra.mxu0 %v990
    %1230 = vmatprep.subr.bf16.mxu0 %v995
    %1231 = vmatpush1.bf16.msra.mxu0 %v994
    %1232 = vmatprep.subr.bf16.mxu0 %v999
    %1233 = vmatpush1.bf16.msra.mxu0 %v998
    %1234 = vmatprep.subr.bf16.mxu0 %v1003
    %1235 = vmatpush1.bf16.msra.mxu0 %v1002
    %1236 = vmatprep.subr.bf16.mxu0 %v1007
    %1237 = vmatpush1.bf16.msra.mxu0 %v1006
    %1238 = vmatprep.subr.bf16.mxu0 %v1011
    %1239 = vmatpush1.bf16.msra.mxu0 %v1010
    %1240 = vmatprep.subr.bf16.mxu0 %v1015
    %1241 = vmatpush1.bf16.msra.mxu0 %v1014
    %1242 = vmatprep.mubr.bf16.mxu0 %v439
    %1243 = vmatmul.mubr.bf16.gmra.mrb[0].mxu0 %v438
    %v1244 = vpop.f32.mrb[0].mxu0
    %v1245 = vadd.f32 0.0, %v1244
    %v1246 = vpop.f32.mrb[0].mxu0
    %v1247 = vadd.f32 0.0, %v1246
    %v1248 = vpop.f32.mrb[0].mxu0
    %v1249 = vpop.f32.mrb[0].mxu0
    %1250 = vdwg.mxu0
    %1251 = vmatprep.subr.bf16.mxu0 %v1019
    %1252 = vmatpush1.bf16.msra.mxu0 %v1018
    %1253 = vmatprep.subr.bf16.mxu0 %v1023
    %1254 = vmatpush1.bf16.msra.mxu0 %v1022
    %1255 = vmatprep.subr.bf16.mxu0 %v1027
    %1256 = vmatpush1.bf16.msra.mxu0 %v1026
    %1257 = vmatprep.subr.bf16.mxu0 %v1031
    %1258 = vmatpush1.bf16.msra.mxu0 %v1030
    %1259 = vmatprep.subr.bf16.mxu0 %v1035
    %1260 = vmatpush1.bf16.msra.mxu0 %v1034
    %1261 = vmatprep.subr.bf16.mxu0 %v1039
    %1262 = vmatpush1.bf16.msra.mxu0 %v1038
    %1263 = vmatprep.subr.bf16.mxu0 %v1043
    %1264 = vmatpush1.bf16.msra.mxu0 %v1042
    %1265 = vmatprep.subr.bf16.mxu0 %v1047
    %1266 = vmatpush1.bf16.msra.mxu0 %v1046
    %1267 = vmatprep.subr.bf16.mxu0 %v1051
    %1268 = vmatpush1.bf16.msra.mxu0 %v1050
    %1269 = vmatprep.subr.bf16.mxu0 %v1055
    %1270 = vmatpush1.bf16.msra.mxu0 %v1054
    %1271 = vmatprep.subr.bf16.mxu0 %v1059
    %1272 = vmatpush1.bf16.msra.mxu0 %v1058
    %1273 = vmatprep.subr.bf16.mxu0 %v1063
    %1274 = vmatpush1.bf16.msra.mxu0 %v1062
    %1275 = vmatprep.subr.bf16.mxu0 %v1067
    %1276 = vmatpush1.bf16.msra.mxu0 %v1066
    %1277 = vmatprep.subr.bf16.mxu0 %v1071
    %1278 = vmatpush1.bf16.msra.mxu0 %v1070
    %1279 = vmatprep.subr.bf16.mxu0 %v1075
    %1280 = vmatpush1.bf16.msra.mxu0 %v1074
    %1281 = vmatprep.subr.bf16.mxu0 %v1079
    %1282 = vmatpush1.bf16.msra.mxu0 %v1078
    %1283 = vmatprep.mubr.bf16.mxu0 %v441
    %1284 = vmatmul.mubr.bf16.gmra.mrb[0].mxu0 %v440
    %v1285 = vpop.f32.mrb[0].mxu0
    %v1286 = vadd.f32 %v1245, %v1285
    %v1287 = vpop.f32.mrb[0].mxu0
    %v1288 = vadd.f32 %v1247, %v1287
    %v1289 = vpop.f32.mrb[0].mxu0
    %v1290 = vpop.f32.mrb[0].mxu0
    %1291 = vdwg.mxu0
    %1292 = vmatprep.subr.bf16.mxu0 %v957
    %1293 = vmatpush1.bf16.msra.mxu0 %v956
    %1294 = vmatprep.subr.bf16.mxu0 %v961
    %1295 = vmatpush1.bf16.msra.mxu0 %v960
    %1296 = vmatprep.subr.bf16.mxu0 %v965
    %1297 = vmatpush1.bf16.msra.mxu0 %v964
    %1298 = vmatprep.subr.bf16.mxu0 %v969
    %1299 = vmatpush1.bf16.msra.mxu0 %v968
    %1300 = vmatprep.subr.bf16.mxu0 %v973
    %1301 = vmatpush1.bf16.msra.mxu0 %v972
    %1302 = vmatprep.subr.bf16.mxu0 %v977
    %1303 = vmatpush1.bf16.msra.mxu0 %v976
    %1304 = vmatprep.subr.bf16.mxu0 %v981
    %1305 = vmatpush1.bf16.msra.mxu0 %v980
    %1306 = vmatprep.subr.bf16.mxu0 %v985
    %1307 = vmatpush1.bf16.msra.mxu0 %v984
    %1308 = vmatprep.subr.bf16.mxu0 %v989
    %1309 = vmatpush1.bf16.msra.mxu0 %v988
    %1310 = vmatprep.subr.bf16.mxu0 %v993
    %1311 = vmatpush1.bf16.msra.mxu0 %v992
    %1312 = vmatprep.subr.bf16.mxu0 %v997
    %1313 = vmatpush1.bf16.msra.mxu0 %v996
    %1314 = vmatprep.subr.bf16.mxu0 %v1001
    %1315 = vmatpush1.bf16.msra.mxu0 %v1000
    %1316 = vmatprep.subr.bf16.mxu0 %v1005
    %1317 = vmatpush1.bf16.msra.mxu0 %v1004
    %1318 = vmatprep.subr.bf16.mxu0 %v1009
    %1319 = vmatpush1.bf16.msra.mxu0 %v1008
    %1320 = vmatprep.subr.bf16.mxu0 %v1013
    %1321 = vmatpush1.bf16.msra.mxu0 %v1012
    %1322 = vmatprep.subr.bf16.mxu0 %v1017
    %1323 = vmatpush1.bf16.msra.mxu0 %v1016
    %1324 = vmatprep.mubr.bf16.mxu0 %v439
    %1325 = vmatmul.mubr.bf16.gmra.mrb[0].mxu0 %v438
    %v1326 = vpop.f32.mrb[0].mxu0
    %v1327 = vadd.f32 0.0, %v1326
    %v1328 = vpop.f32.mrb[0].mxu0
    %v1329 = vadd.f32 0.0, %v1328
    %v1330 = vpop.f32.mrb[0].mxu0
    %v1331 = vpop.f32.mrb[0].mxu0
    %1332 = vdwg.mxu0
    %1333 = vmatprep.subr.bf16.mxu0 %v1021
    %1334 = vmatpush1.bf16.msra.mxu0 %v1020
    %1335 = vmatprep.subr.bf16.mxu0 %v1025
    %1336 = vmatpush1.bf16.msra.mxu0 %v1024
    %1337 = vmatprep.subr.bf16.mxu0 %v1029
    %1338 = vmatpush1.bf16.msra.mxu0 %v1028
    %1339 = vmatprep.subr.bf16.mxu0 %v1033
    %1340 = vmatpush1.bf16.msra.mxu0 %v1032
    %1341 = vmatprep.subr.bf16.mxu0 %v1037
    %1342 = vmatpush1.bf16.msra.mxu0 %v1036
    %1343 = vmatprep.subr.bf16.mxu0 %v1041
    %1344 = vmatpush1.bf16.msra.mxu0 %v1040
    %1345 = vmatprep.subr.bf16.mxu0 %v1045
    %1346 = vmatpush1.bf16.msra.mxu0 %v1044
    %1347 = vmatprep.subr.bf16.mxu0 %v1049
    %1348 = vmatpush1.bf16.msra.mxu0 %v1048
    %1349 = vmatprep.subr.bf16.mxu0 %v1053
    %1350 = vmatpush1.bf16.msra.mxu0 %v1052
    %1351 = vmatprep.subr.bf16.mxu0 %v1057
    %1352 = vmatpush1.bf16.msra.mxu0 %v1056
    %1353 = vmatprep.subr.bf16.mxu0 %v1061
    %1354 = vmatpush1.bf16.msra.mxu0 %v1060
    %1355 = vmatprep.subr.bf16.mxu0 %v1065
    %1356 = vmatpush1.bf16.msra.mxu0 %v1064
    %1357 = vmatprep.subr.bf16.mxu0 %v1069
    %1358 = vmatpush1.bf16.msra.mxu0 %v1068
    %1359 = vmatprep.subr.bf16.mxu0 %v1073
    %1360 = vmatpush1.bf16.msra.mxu0 %v1072
    %1361 = vmatprep.subr.bf16.mxu0 %v1077
    %1362 = vmatpush1.bf16.msra.mxu0 %v1076
    %1363 = vmatprep.subr.bf16.mxu0 %v1081
    %1364 = vmatpush1.bf16.msra.mxu0 %v1080
    %1365 = vmatprep.mubr.bf16.mxu0 %v441
    %1366 = vmatmul.mubr.bf16.gmra.mrb[0].mxu0 %v440
    %v1367 = vpop.f32.mrb[0].mxu0
    %v1368 = vadd.f32 %v1327, %v1367
    %v1369 = vpop.f32.mrb[0].mxu0
    %v1370 = vadd.f32 %v1329, %v1369
    %v1371 = vpop.f32.mrb[0].mxu0
    %v1372 = vpop.f32.mrb[0].mxu0
    %1373 = vdwg.mxu0
    %v1374 = vrot.slane %v1286, 4
    %v1375 = vadd.f32 %v1286, %v1374
    %v1376 = vrot.slane %v1375, 2
    %v1377 = vadd.f32 %v1375, %v1376
    %v1378 = vrot.slane %v1377, 1
    %v1379 = vadd.f32 %v1377, %v1378
    %v1380 = vrot.slane %v1288, 4
    %v1381 = vadd.f32 %v1288, %v1380
    %v1382 = vrot.slane %v1381, 2
    %v1383 = vadd.f32 %v1381, %v1382
    %v1384 = vrot.slane %v1383, 1
    %v1385 = vadd.f32 %v1383, %v1384
    %v1386 = vrot.slane %v1368, 4
    %v1387 = vadd.f32 %v1368, %v1386
    %v1388 = vrot.slane %v1387, 2
    %v1389 = vadd.f32 %v1387, %v1388
    %v1390 = vrot.slane %v1389, 1
    %v1391 = vadd.f32 %v1389, %v1390
    %v1392 = vrot.slane %v1370, 4
    %v1393 = vadd.f32 %v1370, %v1392
    %v1394 = vrot.slane %v1393, 2
    %v1395 = vadd.f32 %v1393, %v1394
    %v1396 = vrot.slane %v1395, 1
    %v1397 = vadd.f32 %v1395, %v1396
    %v1398 = vmul.f32 %v1379, %v303
    %v1399 = vmul.f32 %v1385, %v303
    %v1400 = vmul.f32 %v1391, %v303
    %v1401 = vmul.f32 %v1397, %v303
    %v1402 = vsub.f32 %v1286, %v1398
    %v1403 = vsub.f32 %v1288, %v1399
    %v1404 = vsub.f32 %v1368, %v1400
    %v1405 = vsub.f32 %v1370, %v1401
    %v1406 = vmul.f32 %v1402, %v1402
    %v1407 = vmul.f32 %v1403, %v1403
    %v1408 = vmul.f32 %v1404, %v1404
    %v1409 = vmul.f32 %v1405, %v1405
    %v1410 = vrot.slane %v1406, 4
    %v1411 = vadd.f32 %v1406, %v1410
    %v1412 = vrot.slane %v1411, 2
    %v1413 = vadd.f32 %v1411, %v1412
    %v1414 = vrot.slane %v1413, 1
    %v1415 = vadd.f32 %v1413, %v1414
    %v1416 = vrot.slane %v1407, 4
    %v1417 = vadd.f32 %v1407, %v1416
    %v1418 = vrot.slane %v1417, 2
    %v1419 = vadd.f32 %v1417, %v1418
    %v1420 = vrot.slane %v1419, 1
    %v1421 = vadd.f32 %v1419, %v1420
    %v1422 = vrot.slane %v1408, 4
    %v1423 = vadd.f32 %v1408, %v1422
    %v1424 = vrot.slane %v1423, 2
    %v1425 = vadd.f32 %v1423, %v1424
    %v1426 = vrot.slane %v1425, 1
    %v1427 = vadd.f32 %v1425, %v1426
    %v1428 = vrot.slane %v1409, 4
    %v1429 = vadd.f32 %v1409, %v1428
    %v1430 = vrot.slane %v1429, 2
    %v1431 = vadd.f32 %v1429, %v1430
    %v1432 = vrot.slane %v1431, 1
    %v1433 = vadd.f32 %v1431, %v1432
    %v1434 = vmul.f32 %v1415, %v303
    %v1435 = vmul.f32 %v1421, %v303
    %v1436 = vmul.f32 %v1427, %v303
    %v1437 = vmul.f32 %v1433, %v303
    %v1438 = vld [vmem:[%s5] sm:$0xf]
    %v1439 = vadd.f32 %v1434, 1e-05
    %v1440 = vadd.f32 %v1435, 1e-05
    %v1441 = vadd.f32 %v1436, 1e-05
    %v1442 = vadd.f32 %v1437, 1e-05
    %v1443 = vrsqrt.pop %v1439
    %v1444 = vrsqrt.pop %v1440
    %v1445 = vrsqrt.pop %v1441
    %v1446 = vrsqrt.pop %v1442
    %v1451 = vcombine.low %v1443, %v1444
    %v1452 = vcombine.low %v1445, %v1446
    %v1454 = vunpack.c.l.s4 1966171168
    %v1455 = vunpack.c.0.s8 %v1454
    %v1456 = vlaneseq
    %v1457 = vshrl.u32 %v1456, 7
    %v1458 = vsub.s32 %v1455, %v1457
    %v1459 = vrot.slane %v1451, %v1458
    %v1461 = vunpack.c.l.s4 1966171168
    %v1462 = vunpack.c.0.s8 %v1461
    %v1463 = vlaneseq
    %v1464 = vshrl.u32 %v1463, 7
    %v1465 = vsub.s32 %v1462, %v1464
    %v1466 = vrot.slane %v1452, %v1465
    %v1467 = vcombine.low %v1459, %v1466
    %v1469 = vunpack.c.l.s4 1966171168
    %v1470 = vunpack.c.0.s8 %v1469
    %v1471 = vlaneseq
    %v1472 = vshrl.u32 %v1471, 7
    %v1473 = vsub.s32 %v1470, %v1472
    %v1474 = vrot.slane %v1467, %v1473
    %v1476 = vmul.f32 %v1438, %v1474
    %v1478 = vlaneseq
    %v1479 = vshrl.u32 %v1478, 7
    %v1480 = vsub.s32 0, %v1479
    %v1481 = vrot.slane %v1476, %v1480
    %v1482 = vlaneseq
    %v1483 = vshrl.u32 %v1482, 7
    %v1484 = vsub.s32 1, %v1483
    %v1485 = vrot.slane %v1476, %v1484
    %v1486 = vlaneseq
    %v1487 = vshrl.u32 %v1486, 7
    %v1488 = vsub.s32 2, %v1487
    %v1489 = vrot.slane %v1476, %v1488
    %v1490 = vlaneseq
    %v1491 = vshrl.u32 %v1490, 7
    %v1492 = vsub.s32 3, %v1491
    %v1493 = vrot.slane %v1476, %v1492
    %v1498 = vmul.f32 %v1402, %v1481
    %v1499 = vmul.f32 %v1403, %v1485
    %v1500 = vmul.f32 %v1404, %v1489
    %v1501 = vmul.f32 %v1405, %v1493
    %v1502 = vld [vmem:[%s6] sm:$0xf]
    %v1504 = vlaneseq
    %v1505 = vshrl.u32 %v1504, 7
    %v1506 = vsub.s32 0, %v1505
    %v1507 = vrot.slane %v1502, %v1506
    %v1508 = vlaneseq
    %v1509 = vshrl.u32 %v1508, 7
    %v1510 = vsub.s32 1, %v1509
    %v1511 = vrot.slane %v1502, %v1510
    %v1512 = vlaneseq
    %v1513 = vshrl.u32 %v1512, 7
    %v1514 = vsub.s32 2, %v1513
    %v1515 = vrot.slane %v1502, %v1514
    %v1516 = vlaneseq
    %v1517 = vshrl.u32 %v1516, 7
    %v1518 = vsub.s32 3, %v1517
    %v1519 = vrot.slane %v1502, %v1518
    %v1524 = vadd.f32 %v1498, %v1507
    %v1525 = vadd.f32 %v1499, %v1511
    %v1526 = vadd.f32 %v1500, %v1515
    %v1527 = vadd.f32 %v1501, %v1519
    %v1528 = vmax.f32 %v1524, 0.0
    %v1529 = vmax.f32 %v1525, 0.0
    %v1530 = vmax.f32 %v1526, 0.0
    %v1531 = vmax.f32 %v1527, 0.0
    %v1532 = vpack.c.bf16 %v1528, %v1528
    %v1533 = vpack.c.bf16 %v1529, %v1529
    %v1534 = vpack.c.bf16 %v1530, %v1530
    %v1535 = vpack.c.bf16 %v1531, %v1531
    %v1536 = vld [vmem:[#allocation10] sm:$0xff]
    %v1537 = vld [vmem:[#allocation10 + $0x8] sm:$0xff]
    %v1538 = vld [vmem:[#allocation10 + $0x10] sm:$0xff]
    %v1539 = vld [vmem:[#allocation10 + $0x18] sm:$0xff]
    %v1540 = vld [vmem:[#allocation10 + $0x20] sm:$0xff]
    %v1541 = vld [vmem:[#allocation10 + $0x28] sm:$0xff]
    %v1542 = vld [vmem:[#allocation10 + $0x30] sm:$0xff]
    %v1543 = vld [vmem:[#allocation10 + $0x38] sm:$0xff]
    %v1544 = vld [vmem:[#allocation10 + $0x40] sm:$0xff]
    %v1545 = vld [vmem:[#allocation10 + $0x48] sm:$0xff]
    %v1546 = vld [vmem:[#allocation10 + $0x50] sm:$0xff]
    %v1547 = vld [vmem:[#allocation10 + $0x58] sm:$0xff]
    %v1548 = vld [vmem:[#allocation10 + $0x60] sm:$0xff]
    %v1549 = vld [vmem:[#allocation10 + $0x68] sm:$0xff]
    %v1550 = vld [vmem:[#allocation10 + $0x70] sm:$0xff]
    %v1551 = vld [vmem:[#allocation10 + $0x78] sm:$0xff]
    %v1552 = vld [vmem:[#allocation10 + $0x80] sm:$0xff]
    %v1553 = vld [vmem:[#allocation10 + $0x88] sm:$0xff]
    %v1554 = vld [vmem:[#allocation10 + $0x90] sm:$0xff]
    %v1555 = vld [vmem:[#allocation10 + $0x98] sm:$0xff]
    %v1556 = vld [vmem:[#allocation10 + $0xa0] sm:$0xff]
    %v1557 = vld [vmem:[#allocation10 + $0xa8] sm:$0xff]
    %v1558 = vld [vmem:[#allocation10 + $0xb0] sm:$0xff]
    %v1559 = vld [vmem:[#allocation10 + $0xb8] sm:$0xff]
    %v1560 = vld [vmem:[#allocation10 + $0xc0] sm:$0xff]
    %v1561 = vld [vmem:[#allocation10 + $0xc8] sm:$0xff]
    %v1562 = vld [vmem:[#allocation10 + $0xd0] sm:$0xff]
    %v1563 = vld [vmem:[#allocation10 + $0xd8] sm:$0xff]
    %v1564 = vld [vmem:[#allocation10 + $0xe0] sm:$0xff]
    %v1565 = vld [vmem:[#allocation10 + $0xe8] sm:$0xff]
    %v1566 = vld [vmem:[#allocation10 + $0xf0] sm:$0xff]
    %v1567 = vld [vmem:[#allocation10 + $0xf8] sm:$0xff]
    %v1568 = vld [vmem:[#allocation10 + $0x100] sm:$0xff]
    %v1569 = vld [vmem:[#allocation10 + $0x108] sm:$0xff]
    %v1570 = vld [vmem:[#allocation10 + $0x110] sm:$0xff]
    %v1571 = vld [vmem:[#allocation10 + $0x118] sm:$0xff]
    %v1572 = vld [vmem:[#allocation10 + $0x120] sm:$0xff]
    %v1573 = vld [vmem:[#allocation10 + $0x128] sm:$0xff]
    %v1574 = vld [vmem:[#allocation10 + $0x130] sm:$0xff]
    %v1575 = vld [vmem:[#allocation10 + $0x138] sm:$0xff]
    %v1576 = vld [vmem:[#allocation10 + $0x140] sm:$0xff]
    %v1577 = vld [vmem:[#allocation10 + $0x148] sm:$0xff]
    %v1578 = vld [vmem:[#allocation10 + $0x150] sm:$0xff]
    %v1579 = vld [vmem:[#allocation10 + $0x158] sm:$0xff]
    %v1580 = vld [vmem:[#allocation10 + $0x160] sm:$0xff]
    %v1581 = vld [vmem:[#allocation10 + $0x168] sm:$0xff]
    %v1582 = vld [vmem:[#allocation10 + $0x170] sm:$0xff]
    %v1583 = vld [vmem:[#allocation10 + $0x178] sm:$0xff]
    %v1584 = vld [vmem:[#allocation10 + $0x180] sm:$0xff]
    %v1585 = vld [vmem:[#allocation10 + $0x188] sm:$0xff]
    %v1586 = vld [vmem:[#allocation10 + $0x190] sm:$0xff]
    %v1587 = vld [vmem:[#allocation10 + $0x198] sm:$0xff]
    %v1588 = vld [vmem:[#allocation10 + $0x1a0] sm:$0xff]
    %v1589 = vld [vmem:[#allocation10 + $0x1a8] sm:$0xff]
    %v1590 = vld [vmem:[#allocation10 + $0x1b0] sm:$0xff]
    %v1591 = vld [vmem:[#allocation10 + $0x1b8] sm:$0xff]
    %v1592 = vld [vmem:[#allocation10 + $0x1c0] sm:$0xff]
    %v1593 = vld [vmem:[#allocation10 + $0x1c8] sm:$0xff]
    %v1594 = vld [vmem:[#allocation10 + $0x1d0] sm:$0xff]
    %v1595 = vld [vmem:[#allocation10 + $0x1d8] sm:$0xff]
    %v1596 = vld [vmem:[#allocation10 + $0x1e0] sm:$0xff]
    %v1597 = vld [vmem:[#allocation10 + $0x1e8] sm:$0xff]
    %v1598 = vld [vmem:[#allocation10 + $0x1f0] sm:$0xff]
    %v1599 = vld [vmem:[#allocation10 + $0x1f8] sm:$0xff]
    %v1600 = vld [vmem:[#allocation10 + $0x200] sm:$0xff]
    %v1601 = vld [vmem:[#allocation10 + $0x208] sm:$0xff]
    %v1602 = vld [vmem:[#allocation10 + $0x210] sm:$0xff]
    %v1603 = vld [vmem:[#allocation10 + $0x218] sm:$0xff]
    %v1604 = vld [vmem:[#allocation10 + $0x220] sm:$0xff]
    %v1605 = vld [vmem:[#allocation10 + $0x228] sm:$0xff]
    %v1606 = vld [vmem:[#allocation10 + $0x230] sm:$0xff]
    %v1607 = vld [vmem:[#allocation10 + $0x238] sm:$0xff]
    %v1608 = vld [vmem:[#allocation10 + $0x240] sm:$0xff]
    %v1609 = vld [vmem:[#allocation10 + $0x248] sm:$0xff]
    %v1610 = vld [vmem:[#allocation10 + $0x250] sm:$0xff]
    %v1611 = vld [vmem:[#allocation10 + $0x258] sm:$0xff]
    %v1612 = vld [vmem:[#allocation10 + $0x260] sm:$0xff]
    %v1613 = vld [vmem:[#allocation10 + $0x268] sm:$0xff]
    %v1614 = vld [vmem:[#allocation10 + $0x270] sm:$0xff]
    %v1615 = vld [vmem:[#allocation10 + $0x278] sm:$0xff]
    %v1616 = vld [vmem:[#allocation10 + $0x280] sm:$0xff]
    %v1617 = vld [vmem:[#allocation10 + $0x288] sm:$0xff]
    %v1618 = vld [vmem:[#allocation10 + $0x290] sm:$0xff]
    %v1619 = vld [vmem:[#allocation10 + $0x298] sm:$0xff]
    %v1620 = vld [vmem:[#allocation10 + $0x2a0] sm:$0xff]
    %v1621 = vld [vmem:[#allocation10 + $0x2a8] sm:$0xff]
    %v1622 = vld [vmem:[#allocation10 + $0x2b0] sm:$0xff]
    %v1623 = vld [vmem:[#allocation10 + $0x2b8] sm:$0xff]
    %v1624 = vld [vmem:[#allocation10 + $0x2c0] sm:$0xff]
    %v1625 = vld [vmem:[#allocation10 + $0x2c8] sm:$0xff]
    %v1626 = vld [vmem:[#allocation10 + $0x2d0] sm:$0xff]
    %v1627 = vld [vmem:[#allocation10 + $0x2d8] sm:$0xff]
    %v1628 = vld [vmem:[#allocation10 + $0x2e0] sm:$0xff]
    %v1629 = vld [vmem:[#allocation10 + $0x2e8] sm:$0xff]
    %v1630 = vld [vmem:[#allocation10 + $0x2f0] sm:$0xff]
    %v1631 = vld [vmem:[#allocation10 + $0x2f8] sm:$0xff]
    %v1632 = vld [vmem:[#allocation10 + $0x300] sm:$0xff]
    %v1633 = vld [vmem:[#allocation10 + $0x308] sm:$0xff]
    %v1634 = vld [vmem:[#allocation10 + $0x310] sm:$0xff]
    %v1635 = vld [vmem:[#allocation10 + $0x318] sm:$0xff]
    %v1636 = vld [vmem:[#allocation10 + $0x320] sm:$0xff]
    %v1637 = vld [vmem:[#allocation10 + $0x328] sm:$0xff]
    %v1638 = vld [vmem:[#allocation10 + $0x330] sm:$0xff]
    %v1639 = vld [vmem:[#allocation10 + $0x338] sm:$0xff]
    %v1640 = vld [vmem:[#allocation10 + $0x340] sm:$0xff]
    %v1641 = vld [vmem:[#allocation10 + $0x348] sm:$0xff]
    %v1642 = vld [vmem:[#allocation10 + $0x350] sm:$0xff]
    %v1643 = vld [vmem:[#allocation10 + $0x358] sm:$0xff]
    %v1644 = vld [vmem:[#allocation10 + $0x360] sm:$0xff]
    %v1645 = vld [vmem:[#allocation10 + $0x368] sm:$0xff]
    %v1646 = vld [vmem:[#allocation10 + $0x370] sm:$0xff]
    %v1647 = vld [vmem:[#allocation10 + $0x378] sm:$0xff]
    %v1648 = vld [vmem:[#allocation10 + $0x380] sm:$0xff]
    %v1649 = vld [vmem:[#allocation10 + $0x388] sm:$0xff]
    %v1650 = vld [vmem:[#allocation10 + $0x390] sm:$0xff]
    %v1651 = vld [vmem:[#allocation10 + $0x398] sm:$0xff]
    %v1652 = vld [vmem:[#allocation10 + $0x3a0] sm:$0xff]
    %v1653 = vld [vmem:[#allocation10 + $0x3a8] sm:$0xff]
    %v1654 = vld [vmem:[#allocation10 + $0x3b0] sm:$0xff]
    %v1655 = vld [vmem:[#allocation10 + $0x3b8] sm:$0xff]
    %v1656 = vld [vmem:[#allocation10 + $0x3c0] sm:$0xff]
    %v1657 = vld [vmem:[#allocation10 + $0x3c8] sm:$0xff]
    %v1658 = vld [vmem:[#allocation10 + $0x3d0] sm:$0xff]
    %v1659 = vld [vmem:[#allocation10 + $0x3d8] sm:$0xff]
    %v1660 = vld [vmem:[#allocation10 + $0x3e0] sm:$0xff]
    %v1661 = vld [vmem:[#allocation10 + $0x3e8] sm:$0xff]
    %v1662 = vld [vmem:[#allocation10 + $0x3f0] sm:$0xff]
    %v1663 = vld [vmem:[#allocation10 + $0x3f8] sm:$0xff]
    %v1792 = vunpack.c.l.b16 %v1536
    %v1793 = vunpack.c.h.b16 %v1536
    %v1794 = vunpack.c.l.b16 %v1537
    %v1795 = vunpack.c.h.b16 %v1537
    %v1796 = vunpack.c.l.b16 %v1538
    %v1797 = vunpack.c.h.b16 %v1538
    %v1798 = vunpack.c.l.b16 %v1539
    %v1799 = vunpack.c.h.b16 %v1539
    %v1800 = vunpack.c.l.b16 %v1540
    %v1801 = vunpack.c.h.b16 %v1540
    %v1802 = vunpack.c.l.b16 %v1541
    %v1803 = vunpack.c.h.b16 %v1541
    %v1804 = vunpack.c.l.b16 %v1542
    %v1805 = vunpack.c.h.b16 %v1542
    %v1806 = vunpack.c.l.b16 %v1543
    %v1807 = vunpack.c.h.b16 %v1543
    %v1808 = vunpack.c.l.b16 %v1544
    %v1809 = vunpack.c.h.b16 %v1544
    %v1810 = vunpack.c.l.b16 %v1545
    %v1811 = vunpack.c.h.b16 %v1545
    %v1812 = vunpack.c.l.b16 %v1546
    %v1813 = vunpack.c.h.b16 %v1546
    %v1814 = vunpack.c.l.b16 %v1547
    %v1815 = vunpack.c.h.b16 %v1547
    %v1816 = vunpack.c.l.b16 %v1548
    %v1817 = vunpack.c.h.b16 %v1548
    %v1818 = vunpack.c.l.b16 %v1549
    %v1819 = vunpack.c.h.b16 %v1549
    %v1820 = vunpack.c.l.b16 %v1550
    %v1821 = vunpack.c.h.b16 %v1550
    %v1822 = vunpack.c.l.b16 %v1551
    %v1823 = vunpack.c.h.b16 %v1551
    %v1824 = vunpack.c.l.b16 %v1552
    %v1825 = vunpack.c.h.b16 %v1552
    %v1826 = vunpack.c.l.b16 %v1553
    %v1827 = vunpack.c.h.b16 %v1553
    %v1828 = vunpack.c.l.b16 %v1554
    %v1829 = vunpack.c.h.b16 %v1554
    %v1830 = vunpack.c.l.b16 %v1555
    %v1831 = vunpack.c.h.b16 %v1555
    %v1832 = vunpack.c.l.b16 %v1556
    %v1833 = vunpack.c.h.b16 %v1556
    %v1834 = vunpack.c.l.b16 %v1557
    %v1835 = vunpack.c.h.b16 %v1557
    %v1836 = vunpack.c.l.b16 %v1558
    %v1837 = vunpack.c.h.b16 %v1558
    %v1838 = vunpack.c.l.b16 %v1559
    %v1839 = vunpack.c.h.b16 %v1559
    %v1840 = vunpack.c.l.b16 %v1560
    %v1841 = vunpack.c.h.b16 %v1560
    %v1842 = vunpack.c.l.b16 %v1561
    %v1843 = vunpack.c.h.b16 %v1561
    %v1844 = vunpack.c.l.b16 %v1562
    %v1845 = vunpack.c.h.b16 %v1562
    %v1846 = vunpack.c.l.b16 %v1563
    %v1847 = vunpack.c.h.b16 %v1563
    %v1848 = vunpack.c.l.b16 %v1564
    %v1849 = vunpack.c.h.b16 %v1564
    %v1850 = vunpack.c.l.b16 %v1565
    %v1851 = vunpack.c.h.b16 %v1565
    %v1852 = vunpack.c.l.b16 %v1566
    %v1853 = vunpack.c.h.b16 %v1566
    %v1854 = vunpack.c.l.b16 %v1567
    %v1855 = vunpack.c.h.b16 %v1567
    %v1856 = vunpack.c.l.b16 %v1568
    %v1857 = vunpack.c.h.b16 %v1568
    %v1858 = vunpack.c.l.b16 %v1569
    %v1859 = vunpack.c.h.b16 %v1569
    %v1860 = vunpack.c.l.b16 %v1570
    %v1861 = vunpack.c.h.b16 %v1570
    %v1862 = vunpack.c.l.b16 %v1571
    %v1863 = vunpack.c.h.b16 %v1571
    %v1864 = vunpack.c.l.b16 %v1572
    %v1865 = vunpack.c.h.b16 %v1572
    %v1866 = vunpack.c.l.b16 %v1573
    %v1867 = vunpack.c.h.b16 %v1573
    %v1868 = vunpack.c.l.b16 %v1574
    %v1869 = vunpack.c.h.b16 %v1574
    %v1870 = vunpack.c.l.b16 %v1575
    %v1871 = vunpack.c.h.b16 %v1575
    %v1872 = vunpack.c.l.b16 %v1576
    %v1873 = vunpack.c.h.b16 %v1576
    %v1874 = vunpack.c.l.b16 %v1577
    %v1875 = vunpack.c.h.b16 %v1577
    %v1876 = vunpack.c.l.b16 %v1578
    %v1877 = vunpack.c.h.b16 %v1578
    %v1878 = vunpack.c.l.b16 %v1579
    %v1879 = vunpack.c.h.b16 %v1579
    %v1880 = vunpack.c.l.b16 %v1580
    %v1881 = vunpack.c.h.b16 %v1580
    %v1882 = vunpack.c.l.b16 %v1581
    %v1883 = vunpack.c.h.b16 %v1581
    %v1884 = vunpack.c.l.b16 %v1582
    %v1885 = vunpack.c.h.b16 %v1582
    %v1886 = vunpack.c.l.b16 %v1583
    %v1887 = vunpack.c.h.b16 %v1583
    %v1888 = vunpack.c.l.b16 %v1584
    %v1889 = vunpack.c.h.b16 %v1584
    %v1890 = vunpack.c.l.b16 %v1585
    %v1891 = vunpack.c.h.b16 %v1585
    %v1892 = vunpack.c.l.b16 %v1586
    %v1893 = vunpack.c.h.b16 %v1586
    %v1894 = vunpack.c.l.b16 %v1587
    %v1895 = vunpack.c.h.b16 %v1587
    %v1896 = vunpack.c.l.b16 %v1588
    %v1897 = vunpack.c.h.b16 %v1588
    %v1898 = vunpack.c.l.b16 %v1589
    %v1899 = vunpack.c.h.b16 %v1589
    %v1900 = vunpack.c.l.b16 %v1590
    %v1901 = vunpack.c.h.b16 %v1590
    %v1902 = vunpack.c.l.b16 %v1591
    %v1903 = vunpack.c.h.b16 %v1591
    %v1904 = vunpack.c.l.b16 %v1592
    %v1905 = vunpack.c.h.b16 %v1592
    %v1906 = vunpack.c.l.b16 %v1593
    %v1907 = vunpack.c.h.b16 %v1593
    %v1908 = vunpack.c.l.b16 %v1594
    %v1909 = vunpack.c.h.b16 %v1594
    %v1910 = vunpack.c.l.b16 %v1595
    %v1911 = vunpack.c.h.b16 %v1595
    %v1912 = vunpack.c.l.b16 %v1596
    %v1913 = vunpack.c.h.b16 %v1596
    %v1914 = vunpack.c.l.b16 %v1597
    %v1915 = vunpack.c.h.b16 %v1597
    %v1916 = vunpack.c.l.b16 %v1598
    %v1917 = vunpack.c.h.b16 %v1598
    %v1918 = vunpack.c.l.b16 %v1599
    %v1919 = vunpack.c.h.b16 %v1599
    %v1920 = vunpack.c.l.b16 %v1600
    %v1921 = vunpack.c.h.b16 %v1600
    %v1922 = vunpack.c.l.b16 %v1601
    %v1923 = vunpack.c.h.b16 %v1601
    %v1924 = vunpack.c.l.b16 %v1602
    %v1925 = vunpack.c.h.b16 %v1602
    %v1926 = vunpack.c.l.b16 %v1603
    %v1927 = vunpack.c.h.b16 %v1603
    %v1928 = vunpack.c.l.b16 %v1604
    %v1929 = vunpack.c.h.b16 %v1604
    %v1930 = vunpack.c.l.b16 %v1605
    %v1931 = vunpack.c.h.b16 %v1605
    %v1932 = vunpack.c.l.b16 %v1606
    %v1933 = vunpack.c.h.b16 %v1606
    %v1934 = vunpack.c.l.b16 %v1607
    %v1935 = vunpack.c.h.b16 %v1607
    %v1936 = vunpack.c.l.b16 %v1608
    %v1937 = vunpack.c.h.b16 %v1608
    %v1938 = vunpack.c.l.b16 %v1609
    %v1939 = vunpack.c.h.b16 %v1609
    %v1940 = vunpack.c.l.b16 %v1610
    %v1941 = vunpack.c.h.b16 %v1610
    %v1942 = vunpack.c.l.b16 %v1611
    %v1943 = vunpack.c.h.b16 %v1611
    %v1944 = vunpack.c.l.b16 %v1612
    %v1945 = vunpack.c.h.b16 %v1612
    %v1946 = vunpack.c.l.b16 %v1613
    %v1947 = vunpack.c.h.b16 %v1613
    %v1948 = vunpack.c.l.b16 %v1614
    %v1949 = vunpack.c.h.b16 %v1614
    %v1950 = vunpack.c.l.b16 %v1615
    %v1951 = vunpack.c.h.b16 %v1615
    %v1952 = vunpack.c.l.b16 %v1616
    %v1953 = vunpack.c.h.b16 %v1616
    %v1954 = vunpack.c.l.b16 %v1617
    %v1955 = vunpack.c.h.b16 %v1617
    %v1956 = vunpack.c.l.b16 %v1618
    %v1957 = vunpack.c.h.b16 %v1618
    %v1958 = vunpack.c.l.b16 %v1619
    %v1959 = vunpack.c.h.b16 %v1619
    %v1960 = vunpack.c.l.b16 %v1620
    %v1961 = vunpack.c.h.b16 %v1620
    %v1962 = vunpack.c.l.b16 %v1621
    %v1963 = vunpack.c.h.b16 %v1621
    %v1964 = vunpack.c.l.b16 %v1622
    %v1965 = vunpack.c.h.b16 %v1622
    %v1966 = vunpack.c.l.b16 %v1623
    %v1967 = vunpack.c.h.b16 %v1623
    %v1968 = vunpack.c.l.b16 %v1624
    %v1969 = vunpack.c.h.b16 %v1624
    %v1970 = vunpack.c.l.b16 %v1625
    %v1971 = vunpack.c.h.b16 %v1625
    %v1972 = vunpack.c.l.b16 %v1626
    %v1973 = vunpack.c.h.b16 %v1626
    %v1974 = vunpack.c.l.b16 %v1627
    %v1975 = vunpack.c.h.b16 %v1627
    %v1976 = vunpack.c.l.b16 %v1628
    %v1977 = vunpack.c.h.b16 %v1628
    %v1978 = vunpack.c.l.b16 %v1629
    %v1979 = vunpack.c.h.b16 %v1629
    %v1980 = vunpack.c.l.b16 %v1630
    %v1981 = vunpack.c.h.b16 %v1630
    %v1982 = vunpack.c.l.b16 %v1631
    %v1983 = vunpack.c.h.b16 %v1631
    %v1984 = vunpack.c.l.b16 %v1632
    %v1985 = vunpack.c.h.b16 %v1632
    %v1986 = vunpack.c.l.b16 %v1633
    %v1987 = vunpack.c.h.b16 %v1633
    %v1988 = vunpack.c.l.b16 %v1634
    %v1989 = vunpack.c.h.b16 %v1634
    %v1990 = vunpack.c.l.b16 %v1635
    %v1991 = vunpack.c.h.b16 %v1635
    %v1992 = vunpack.c.l.b16 %v1636
    %v1993 = vunpack.c.h.b16 %v1636
    %v1994 = vunpack.c.l.b16 %v1637
    %v1995 = vunpack.c.h.b16 %v1637
    %v1996 = vunpack.c.l.b16 %v1638
    %v1997 = vunpack.c.h.b16 %v1638
    %v1998 = vunpack.c.l.b16 %v1639
    %v1999 = vunpack.c.h.b16 %v1639
    %v2000 = vunpack.c.l.b16 %v1640
    %v2001 = vunpack.c.h.b16 %v1640
    %v2002 = vunpack.c.l.b16 %v1641
    %v2003 = vunpack.c.h.b16 %v1641
    %v2004 = vunpack.c.l.b16 %v1642
    %v2005 = vunpack.c.h.b16 %v1642
    %v2006 = vunpack.c.l.b16 %v1643
    %v2007 = vunpack.c.h.b16 %v1643
    %v2008 = vunpack.c.l.b16 %v1644
    %v2009 = vunpack.c.h.b16 %v1644
    %v2010 = vunpack.c.l.b16 %v1645
    %v2011 = vunpack.c.h.b16 %v1645
    %v2012 = vunpack.c.l.b16 %v1646
    %v2013 = vunpack.c.h.b16 %v1646
    %v2014 = vunpack.c.l.b16 %v1647
    %v2015 = vunpack.c.h.b16 %v1647
    %v2016 = vunpack.c.l.b16 %v1648
    %v2017 = vunpack.c.h.b16 %v1648
    %v2018 = vunpack.c.l.b16 %v1649
    %v2019 = vunpack.c.h.b16 %v1649
    %v2020 = vunpack.c.l.b16 %v1650
    %v2021 = vunpack.c.h.b16 %v1650
    %v2022 = vunpack.c.l.b16 %v1651
    %v2023 = vunpack.c.h.b16 %v1651
    %v2024 = vunpack.c.l.b16 %v1652
    %v2025 = vunpack.c.h.b16 %v1652
    %v2026 = vunpack.c.l.b16 %v1653
    %v2027 = vunpack.c.h.b16 %v1653
    %v2028 = vunpack.c.l.b16 %v1654
    %v2029 = vunpack.c.h.b16 %v1654
    %v2030 = vunpack.c.l.b16 %v1655
    %v2031 = vunpack.c.h.b16 %v1655
    %v2032 = vunpack.c.l.b16 %v1656
    %v2033 = vunpack.c.h.b16 %v1656
    %v2034 = vunpack.c.l.b16 %v1657
    %v2035 = vunpack.c.h.b16 %v1657
    %v2036 = vunpack.c.l.b16 %v1658
    %v2037 = vunpack.c.h.b16 %v1658
    %v2038 = vunpack.c.l.b16 %v1659
    %v2039 = vunpack.c.h.b16 %v1659
    %v2040 = vunpack.c.l.b16 %v1660
    %v2041 = vunpack.c.h.b16 %v1660
    %v2042 = vunpack.c.l.b16 %v1661
    %v2043 = vunpack.c.h.b16 %v1661
    %v2044 = vunpack.c.l.b16 %v1662
    %v2045 = vunpack.c.h.b16 %v1662
    %v2046 = vunpack.c.l.b16 %v1663
    %v2047 = vunpack.c.h.b16 %v1663
    %v2048 = vpack.c.b16 %v1796, %v1792
    %v2049 = vpack.c.b16 %v1797, %v1793
    %v2050 = vpack.c.b16 %v1798, %v1794
    %v2051 = vpack.c.b16 %v1799, %v1795
    %v2052 = vpack.c.b16 %v1804, %v1800
    %v2053 = vpack.c.b16 %v1805, %v1801
    %v2054 = vpack.c.b16 %v1806, %v1802
    %v2055 = vpack.c.b16 %v1807, %v1803
    %v2056 = vpack.c.b16 %v1812, %v1808
    %v2057 = vpack.c.b16 %v1813, %v1809
    %v2058 = vpack.c.b16 %v1814, %v1810
    %v2059 = vpack.c.b16 %v1815, %v1811
    %v2060 = vpack.c.b16 %v1820, %v1816
    %v2061 = vpack.c.b16 %v1821, %v1817
    %v2062 = vpack.c.b16 %v1822, %v1818
    %v2063 = vpack.c.b16 %v1823, %v1819
    %v2064 = vpack.c.b16 %v1828, %v1824
    %v2065 = vpack.c.b16 %v1829, %v1825
    %v2066 = vpack.c.b16 %v1830, %v1826
    %v2067 = vpack.c.b16 %v1831, %v1827
    %v2068 = vpack.c.b16 %v1836, %v1832
    %v2069 = vpack.c.b16 %v1837, %v1833
    %v2070 = vpack.c.b16 %v1838, %v1834
    %v2071 = vpack.c.b16 %v1839, %v1835
    %v2072 = vpack.c.b16 %v1844, %v1840
    %v2073 = vpack.c.b16 %v1845, %v1841
    %v2074 = vpack.c.b16 %v1846, %v1842
    %v2075 = vpack.c.b16 %v1847, %v1843
    %v2076 = vpack.c.b16 %v1852, %v1848
    %v2077 = vpack.c.b16 %v1853, %v1849
    %v2078 = vpack.c.b16 %v1854, %v1850
    %v2079 = vpack.c.b16 %v1855, %v1851
    %v2080 = vpack.c.b16 %v1860, %v1856
    %v2081 = vpack.c.b16 %v1861, %v1857
    %v2082 = vpack.c.b16 %v1862, %v1858
    %v2083 = vpack.c.b16 %v1863, %v1859
    %v2084 = vpack.c.b16 %v1868, %v1864
    %v2085 = vpack.c.b16 %v1869, %v1865
    %v2086 = vpack.c.b16 %v1870, %v1866
    %v2087 = vpack.c.b16 %v1871, %v1867
    %v2088 = vpack.c.b16 %v1876, %v1872
    %v2089 = vpack.c.b16 %v1877, %v1873
    %v2090 = vpack.c.b16 %v1878, %v1874
    %v2091 = vpack.c.b16 %v1879, %v1875
    %v2092 = vpack.c.b16 %v1884, %v1880
    %v2093 = vpack.c.b16 %v1885, %v1881
    %v2094 = vpack.c.b16 %v1886, %v1882
    %v2095 = vpack.c.b16 %v1887, %v1883
    %v2096 = vpack.c.b16 %v1892, %v1888
    %v2097 = vpack.c.b16 %v1893, %v1889
    %v2098 = vpack.c.b16 %v1894, %v1890
    %v2099 = vpack.c.b16 %v1895, %v1891
    %v2100 = vpack.c.b16 %v1900, %v1896
    %v2101 = vpack.c.b16 %v1901, %v1897
    %v2102 = vpack.c.b16 %v1902, %v1898
    %v2103 = vpack.c.b16 %v1903, %v1899
    %v2104 = vpack.c.b16 %v1908, %v1904
    %v2105 = vpack.c.b16 %v1909, %v1905
    %v2106 = vpack.c.b16 %v1910, %v1906
    %v2107 = vpack.c.b16 %v1911, %v1907
    %v2108 = vpack.c.b16 %v1916, %v1912
    %v2109 = vpack.c.b16 %v1917, %v1913
    %v2110 = vpack.c.b16 %v1918, %v1914
    %v2111 = vpack.c.b16 %v1919, %v1915
    %v2112 = vpack.c.b16 %v1924, %v1920
    %v2113 = vpack.c.b16 %v1925, %v1921
    %v2114 = vpack.c.b16 %v1926, %v1922
    %v2115 = vpack.c.b16 %v1927, %v1923
    %v2116 = vpack.c.b16 %v1932, %v1928
    %v2117 = vpack.c.b16 %v1933, %v1929
    %v2118 = vpack.c.b16 %v1934, %v1930
    %v2119 = vpack.c.b16 %v1935, %v1931
    %v2120 = vpack.c.b16 %v1940, %v1936
    %v2121 = vpack.c.b16 %v1941, %v1937
    %v2122 = vpack.c.b16 %v1942, %v1938
    %v2123 = vpack.c.b16 %v1943, %v1939
    %v2124 = vpack.c.b16 %v1948, %v1944
    %v2125 = vpack.c.b16 %v1949, %v1945
    %v2126 = vpack.c.b16 %v1950, %v1946
    %v2127 = vpack.c.b16 %v1951, %v1947
    %v2128 = vpack.c.b16 %v1956, %v1952
    %v2129 = vpack.c.b16 %v1957, %v1953
    %v2130 = vpack.c.b16 %v1958, %v1954
    %v2131 = vpack.c.b16 %v1959, %v1955
    %v2132 = vpack.c.b16 %v1964, %v1960
    %v2133 = vpack.c.b16 %v1965, %v1961
    %v2134 = vpack.c.b16 %v1966, %v1962
    %v2135 = vpack.c.b16 %v1967, %v1963
    %v2136 = vpack.c.b16 %v1972, %v1968
    %v2137 = vpack.c.b16 %v1973, %v1969
    %v2138 = vpack.c.b16 %v1974, %v1970
    %v2139 = vpack.c.b16 %v1975, %v1971
    %v2140 = vpack.c.b16 %v1980, %v1976
    %v2141 = vpack.c.b16 %v1981, %v1977
    %v2142 = vpack.c.b16 %v1982, %v1978
    %v2143 = vpack.c.b16 %v1983, %v1979
    %v2144 = vpack.c.b16 %v1988, %v1984
    %v2145 = vpack.c.b16 %v1989, %v1985
    %v2146 = vpack.c.b16 %v1990, %v1986
    %v2147 = vpack.c.b16 %v1991, %v1987
    %v2148 = vpack.c.b16 %v1996, %v1992
    %v2149 = vpack.c.b16 %v1997, %v1993
    %v2150 = vpack.c.b16 %v1998, %v1994
    %v2151 = vpack.c.b16 %v1999, %v1995
    %v2152 = vpack.c.b16 %v2004, %v2000
    %v2153 = vpack.c.b16 %v2005, %v2001
    %v2154 = vpack.c.b16 %v2006, %v2002
    %v2155 = vpack.c.b16 %v2007, %v2003
    %v2156 = vpack.c.b16 %v2012, %v2008
    %v2157 = vpack.c.b16 %v2013, %v2009
    %v2158 = vpack.c.b16 %v2014, %v2010
    %v2159 = vpack.c.b16 %v2015, %v2011
    %v2160 = vpack.c.b16 %v2020, %v2016
    %v2161 = vpack.c.b16 %v2021, %v2017
    %v2162 = vpack.c.b16 %v2022, %v2018
    %v2163 = vpack.c.b16 %v2023, %v2019
    %v2164 = vpack.c.b16 %v2028, %v2024
    %v2165 = vpack.c.b16 %v2029, %v2025
    %v2166 = vpack.c.b16 %v2030, %v2026
    %v2167 = vpack.c.b16 %v2031, %v2027
    %v2168 = vpack.c.b16 %v2036, %v2032
    %v2169 = vpack.c.b16 %v2037, %v2033
    %v2170 = vpack.c.b16 %v2038, %v2034
    %v2171 = vpack.c.b16 %v2039, %v2035
    %v2172 = vpack.c.b16 %v2044, %v2040
    %v2173 = vpack.c.b16 %v2045, %v2041
    %v2174 = vpack.c.b16 %v2046, %v2042
    %v2175 = vpack.c.b16 %v2047, %v2043
    %2304 = vmatprep.subr.bf16.mxu0 %v2049
    %2305 = vmatpush1.bf16.msra.mxu0 %v2048
    %2306 = vmatprep.subr.bf16.mxu0 %v2053
    %2307 = vmatpush1.bf16.msra.mxu0 %v2052
    %2308 = vmatprep.subr.bf16.mxu0 %v2057
    %2309 = vmatpush1.bf16.msra.mxu0 %v2056
    %2310 = vmatprep.subr.bf16.mxu0 %v2061
    %2311 = vmatpush1.bf16.msra.mxu0 %v2060
    %2312 = vmatprep.subr.bf16.mxu0 %v2065
    %2313 = vmatpush1.bf16.msra.mxu0 %v2064
    %2314 = vmatprep.subr.bf16.mxu0 %v2069
    %2315 = vmatpush1.bf16.msra.mxu0 %v2068
    %2316 = vmatprep.subr.bf16.mxu0 %v2073
    %2317 = vmatpush1.bf16.msra.mxu0 %v2072
    %2318 = vmatprep.subr.bf16.mxu0 %v2077
    %2319 = vmatpush1.bf16.msra.mxu0 %v2076
    %2320 = vmatprep.subr.bf16.mxu0 %v2081
    %2321 = vmatpush1.bf16.msra.mxu0 %v2080
    %2322 = vmatprep.subr.bf16.mxu0 %v2085
    %2323 = vmatpush1.bf16.msra.mxu0 %v2084
    %2324 = vmatprep.subr.bf16.mxu0 %v2089
    %2325 = vmatpush1.bf16.msra.mxu0 %v2088
    %2326 = vmatprep.subr.bf16.mxu0 %v2093
    %2327 = vmatpush1.bf16.msra.mxu0 %v2092
    %2328 = vmatprep.subr.bf16.mxu0 %v2097
    %2329 = vmatpush1.bf16.msra.mxu0 %v2096
    %2330 = vmatprep.subr.bf16.mxu0 %v2101
    %2331 = vmatpush1.bf16.msra.mxu0 %v2100
    %2332 = vmatprep.subr.bf16.mxu0 %v2105
    %2333 = vmatpush1.bf16.msra.mxu0 %v2104
    %2334 = vmatprep.subr.bf16.mxu0 %v2109
    %2335 = vmatpush1.bf16.msra.mxu0 %v2108
    %2336 = vmatprep.mubr.bf16.mxu0 %v1533
    %2337 = vmatmul.mubr.bf16.gmra.mrb[0].mxu0 %v1532
    %v2338 = vpop.f32.mrb[0].mxu0
    %v2339 = vadd.f32 0.0, %v2338
    %v2340 = vpop.f32.mrb[0].mxu0
    %v2341 = vadd.f32 0.0, %v2340
    %v2342 = vpop.f32.mrb[0].mxu0
    %v2343 = vpop.f32.mrb[0].mxu0
    %2344 = vdwg.mxu0
    %2345 = vmatprep.subr.bf16.mxu0 %v2113
    %2346 = vmatpush1.bf16.msra.mxu0 %v2112
    %2347 = vmatprep.subr.bf16.mxu0 %v2117
    %2348 = vmatpush1.bf16.msra.mxu0 %v2116
    %2349 = vmatprep.subr.bf16.mxu0 %v2121
    %2350 = vmatpush1.bf16.msra.mxu0 %v2120
    %2351 = vmatprep.subr.bf16.mxu0 %v2125
    %2352 = vmatpush1.bf16.msra.mxu0 %v2124
    %2353 = vmatprep.subr.bf16.mxu0 %v2129
    %2354 = vmatpush1.bf16.msra.mxu0 %v2128
    %2355 = vmatprep.subr.bf16.mxu0 %v2133
    %2356 = vmatpush1.bf16.msra.mxu0 %v2132
    %2357 = vmatprep.subr.bf16.mxu0 %v2137
    %2358 = vmatpush1.bf16.msra.mxu0 %v2136
    %2359 = vmatprep.subr.bf16.mxu0 %v2141
    %2360 = vmatpush1.bf16.msra.mxu0 %v2140
    %2361 = vmatprep.subr.bf16.mxu0 %v2145
    %2362 = vmatpush1.bf16.msra.mxu0 %v2144
    %2363 = vmatprep.subr.bf16.mxu0 %v2149
    %2364 = vmatpush1.bf16.msra.mxu0 %v2148
    %2365 = vmatprep.subr.bf16.mxu0 %v2153
    %2366 = vmatpush1.bf16.msra.mxu0 %v2152
    %2367 = vmatprep.subr.bf16.mxu0 %v2157
    %2368 = vmatpush1.bf16.msra.mxu0 %v2156
    %2369 = vmatprep.subr.bf16.mxu0 %v2161
    %2370 = vmatpush1.bf16.msra.mxu0 %v2160
    %2371 = vmatprep.subr.bf16.mxu0 %v2165
    %2372 = vmatpush1.bf16.msra.mxu0 %v2164
    %2373 = vmatprep.subr.bf16.mxu0 %v2169
    %2374 = vmatpush1.bf16.msra.mxu0 %v2168
    %2375 = vmatprep.subr.bf16.mxu0 %v2173
    %2376 = vmatpush1.bf16.msra.mxu0 %v2172
    %2377 = vmatprep.mubr.bf16.mxu0 %v1535
    %2378 = vmatmul.mubr.bf16.gmra.mrb[0].mxu0 %v1534
    %v2379 = vpop.f32.mrb[0].mxu0
    %v2380 = vadd.f32 %v2339, %v2379
    %v2381 = vpop.f32.mrb[0].mxu0
    %v2382 = vadd.f32 %v2341, %v2381
    %v2383 = vpop.f32.mrb[0].mxu0
    %v2384 = vpop.f32.mrb[0].mxu0
    %2385 = vdwg.mxu0
    %2386 = vmatprep.subr.bf16.mxu0 %v2051
    %2387 = vmatpush1.bf16.msra.mxu0 %v2050
    %2388 = vmatprep.subr.bf16.mxu0 %v2055
    %2389 = vmatpush1.bf16.msra.mxu0 %v2054
    %2390 = vmatprep.subr.bf16.mxu0 %v2059
    %2391 = vmatpush1.bf16.msra.mxu0 %v2058
    %2392 = vmatprep.subr.bf16.mxu0 %v2063
    %2393 = vmatpush1.bf16.msra.mxu0 %v2062
    %2394 = vmatprep.subr.bf16.mxu0 %v2067
    %2395 = vmatpush1.bf16.msra.mxu0 %v2066
    %2396 = vmatprep.subr.bf16.mxu0 %v2071
    %2397 = vmatpush1.bf16.msra.mxu0 %v2070
    %2398 = vmatprep.subr.bf16.mxu0 %v2075
    %2399 = vmatpush1.bf16.msra.mxu0 %v2074
    %2400 = vmatprep.subr.bf16.mxu0 %v2079
    %2401 = vmatpush1.bf16.msra.mxu0 %v2078
    %2402 = vmatprep.subr.bf16.mxu0 %v2083
    %2403 = vmatpush1.bf16.msra.mxu0 %v2082
    %2404 = vmatprep.subr.bf16.mxu0 %v2087
    %2405 = vmatpush1.bf16.msra.mxu0 %v2086
    %2406 = vmatprep.subr.bf16.mxu0 %v2091
    %2407 = vmatpush1.bf16.msra.mxu0 %v2090
    %2408 = vmatprep.subr.bf16.mxu0 %v2095
    %2409 = vmatpush1.bf16.msra.mxu0 %v2094
    %2410 = vmatprep.subr.bf16.mxu0 %v2099
    %2411 = vmatpush1.bf16.msra.mxu0 %v2098
    %2412 = vmatprep.subr.bf16.mxu0 %v2103
    %2413 = vmatpush1.bf16.msra.mxu0 %v2102
    %2414 = vmatprep.subr.bf16.mxu0 %v2107
    %2415 = vmatpush1.bf16.msra.mxu0 %v2106
    %2416 = vmatprep.subr.bf16.mxu0 %v2111
    %2417 = vmatpush1.bf16.msra.mxu0 %v2110
    %2418 = vmatprep.mubr.bf16.mxu0 %v1533
    %2419 = vmatmul.mubr.bf16.gmra.mrb[0].mxu0 %v1532
    %v2420 = vpop.f32.mrb[0].mxu0
    %v2421 = vadd.f32 0.0, %v2420
    %v2422 = vpop.f32.mrb[0].mxu0
    %v2423 = vadd.f32 0.0, %v2422
    %v2424 = vpop.f32.mrb[0].mxu0
    %v2425 = vpop.f32.mrb[0].mxu0
    %2426 = vdwg.mxu0
    %2427 = vmatprep.subr.bf16.mxu0 %v2115
    %2428 = vmatpush1.bf16.msra.mxu0 %v2114
    %2429 = vmatprep.subr.bf16.mxu0 %v2119
    %2430 = vmatpush1.bf16.msra.mxu0 %v2118
    %2431 = vmatprep.subr.bf16.mxu0 %v2123
    %2432 = vmatpush1.bf16.msra.mxu0 %v2122
    %2433 = vmatprep.subr.bf16.mxu0 %v2127
    %2434 = vmatpush1.bf16.msra.mxu0 %v2126
    %2435 = vmatprep.subr.bf16.mxu0 %v2131
    %2436 = vmatpush1.bf16.msra.mxu0 %v2130
    %2437 = vmatprep.subr.bf16.mxu0 %v2135
    %2438 = vmatpush1.bf16.msra.mxu0 %v2134
    %2439 = vmatprep.subr.bf16.mxu0 %v2139
    %2440 = vmatpush1.bf16.msra.mxu0 %v2138
    %2441 = vmatprep.subr.bf16.mxu0 %v2143
    %2442 = vmatpush1.bf16.msra.mxu0 %v2142
    %2443 = vmatprep.subr.bf16.mxu0 %v2147
    %2444 = vmatpush1.bf16.msra.mxu0 %v2146
    %2445 = vmatprep.subr.bf16.mxu0 %v2151
    %2446 = vmatpush1.bf16.msra.mxu0 %v2150
    %2447 = vmatprep.subr.bf16.mxu0 %v2155
    %2448 = vmatpush1.bf16.msra.mxu0 %v2154
    %2449 = vmatprep.subr.bf16.mxu0 %v2159
    %2450 = vmatpush1.bf16.msra.mxu0 %v2158
    %2451 = vmatprep.subr.bf16.mxu0 %v2163
    %2452 = vmatpush1.bf16.msra.mxu0 %v2162
    %2453 = vmatprep.subr.bf16.mxu0 %v2167
    %2454 = vmatpush1.bf16.msra.mxu0 %v2166
    %2455 = vmatprep.subr.bf16.mxu0 %v2171
    %2456 = vmatpush1.bf16.msra.mxu0 %v2170
    %2457 = vmatprep.subr.bf16.mxu0 %v2175
    %2458 = vmatpush1.bf16.msra.mxu0 %v2174
    %2459 = vmatprep.mubr.bf16.mxu0 %v1535
    %2460 = vmatmul.mubr.bf16.gmra.mrb[0].mxu0 %v1534
    %v2461 = vpop.f32.mrb[0].mxu0
    %v2462 = vadd.f32 %v2421, %v2461
    %v2463 = vpop.f32.mrb[0].mxu0
    %v2464 = vadd.f32 %v2423, %v2463
    %v2465 = vpop.f32.mrb[0].mxu0
    %v2466 = vpop.f32.mrb[0].mxu0
    %2467 = vdwg.mxu0
    %v2468 = vrot.slane %v2380, 4
    %v2469 = vadd.f32 %v2380, %v2468
    %v2470 = vrot.slane %v2469, 2
    %v2471 = vadd.f32 %v2469, %v2470
    %v2472 = vrot.slane %v2471, 1
    %v2473 = vadd.f32 %v2471, %v2472
    %v2474 = vrot.slane %v2382, 4
    %v2475 = vadd.f32 %v2382, %v2474
    %v2476 = vrot.slane %v2475, 2
    %v2477 = vadd.f32 %v2475, %v2476
    %v2478 = vrot.slane %v2477, 1
    %v2479 = vadd.f32 %v2477, %v2478
    %v2480 = vrot.slane %v2462, 4
    %v2481 = vadd.f32 %v2462, %v2480
    %v2482 = vrot.slane %v2481, 2
    %v2483 = vadd.f32 %v2481, %v2482
    %v2484 = vrot.slane %v2483, 1
    %v2485 = vadd.f32 %v2483, %v2484
    %v2486 = vrot.slane %v2464, 4
    %v2487 = vadd.f32 %v2464, %v2486
    %v2488 = vrot.slane %v2487, 2
    %v2489 = vadd.f32 %v2487, %v2488
    %v2490 = vrot.slane %v2489, 1
    %v2491 = vadd.f32 %v2489, %v2490
    %v2492 = vmul.f32 %v2473, %v303
    %v2493 = vmul.f32 %v2479, %v303
    %v2494 = vmul.f32 %v2485, %v303
    %v2495 = vmul.f32 %v2491, %v303
    %v2496 = vsub.f32 %v2380, %v2492
    %v2497 = vsub.f32 %v2382, %v2493
    %v2498 = vsub.f32 %v2462, %v2494
    %v2499 = vsub.f32 %v2464, %v2495
    %v2500 = vmul.f32 %v2496, %v2496
    %v2501 = vmul.f32 %v2497, %v2497
    %v2502 = vmul.f32 %v2498, %v2498
    %v2503 = vmul.f32 %v2499, %v2499
    %v2504 = vrot.slane %v2500, 4
    %v2505 = vadd.f32 %v2500, %v2504
    %v2506 = vrot.slane %v2505, 2
    %v2507 = vadd.f32 %v2505, %v2506
    %v2508 = vrot.slane %v2507, 1
    %v2509 = vadd.f32 %v2507, %v2508
    %v2510 = vrot.slane %v2501, 4
    %v2511 = vadd.f32 %v2501, %v2510
    %v2512 = vrot.slane %v2511, 2
    %v2513 = vadd.f32 %v2511, %v2512
    %v2514 = vrot.slane %v2513, 1
    %v2515 = vadd.f32 %v2513, %v2514
    %v2516 = vrot.slane %v2502, 4
    %v2517 = vadd.f32 %v2502, %v2516
    %v2518 = vrot.slane %v2517, 2
    %v2519 = vadd.f32 %v2517, %v2518
    %v2520 = vrot.slane %v2519, 1
    %v2521 = vadd.f32 %v2519, %v2520
    %v2522 = vrot.slane %v2503, 4
    %v2523 = vadd.f32 %v2503, %v2522
    %v2524 = vrot.slane %v2523, 2
    %v2525 = vadd.f32 %v2523, %v2524
    %v2526 = vrot.slane %v2525, 1
    %v2527 = vadd.f32 %v2525, %v2526
    %v2528 = vmul.f32 %v2509, %v303
    %v2529 = vmul.f32 %v2515, %v303
    %v2530 = vmul.f32 %v2521, %v303
    %v2531 = vmul.f32 %v2527, %v303
    %v2532 = vld [vmem:[%s8] sm:$0xf]
    %v2533 = vadd.f32 %v2528, 1e-05
    %v2534 = vadd.f32 %v2529, 1e-05
    %v2535 = vadd.f32 %v2530, 1e-05
    %v2536 = vadd.f32 %v2531, 1e-05
    %v2537 = vrsqrt.pop %v2533
    %v2538 = vrsqrt.pop %v2534
    %v2539 = vrsqrt.pop %v2535
    %v2540 = vrsqrt.pop %v2536
    %v2545 = vcombine.low %v2537, %v2538
    %v2546 = vcombine.low %v2539, %v2540
    %v2548 = vunpack.c.l.s4 1966171168
    %v2549 = vunpack.c.0.s8 %v2548
    %v2550 = vlaneseq
    %v2551 = vshrl.u32 %v2550, 7
    %v2552 = vsub.s32 %v2549, %v2551
    %v2553 = vrot.slane %v2545, %v2552
    %v2555 = vunpack.c.l.s4 1966171168
    %v2556 = vunpack.c.0.s8 %v2555
    %v2557 = vlaneseq
    %v2558 = vshrl.u32 %v2557, 7
    %v2559 = vsub.s32 %v2556, %v2558
    %v2560 = vrot.slane %v2546, %v2559
    %v2561 = vcombine.low %v2553, %v2560
    %v2563 = vunpack.c.l.s4 1966171168
    %v2564 = vunpack.c.0.s8 %v2563
    %v2565 = vlaneseq
    %v2566 = vshrl.u32 %v2565, 7
    %v2567 = vsub.s32 %v2564, %v2566
    %v2568 = vrot.slane %v2561, %v2567
    %v2570 = vmul.f32 %v2532, %v2568
    %v2572 = vlaneseq
    %v2573 = vshrl.u32 %v2572, 7
    %v2574 = vsub.s32 0, %v2573
    %v2575 = vrot.slane %v2570, %v2574
    %v2576 = vlaneseq
    %v2577 = vshrl.u32 %v2576, 7
    %v2578 = vsub.s32 1, %v2577
    %v2579 = vrot.slane %v2570, %v2578
    %v2580 = vlaneseq
    %v2581 = vshrl.u32 %v2580, 7
    %v2582 = vsub.s32 2, %v2581
    %v2583 = vrot.slane %v2570, %v2582
    %v2584 = vlaneseq
    %v2585 = vshrl.u32 %v2584, 7
    %v2586 = vsub.s32 3, %v2585
    %v2587 = vrot.slane %v2570, %v2586
    %v2592 = vmul.f32 %v2496, %v2575
    %v2593 = vmul.f32 %v2497, %v2579
    %v2594 = vmul.f32 %v2498, %v2583
    %v2595 = vmul.f32 %v2499, %v2587
    %v2596 = vld [vmem:[%s9] sm:$0xf]
    %v2598 = vlaneseq
    %v2599 = vshrl.u32 %v2598, 7
    %v2600 = vsub.s32 0, %v2599
    %v2601 = vrot.slane %v2596, %v2600
    %v2602 = vlaneseq
    %v2603 = vshrl.u32 %v2602, 7
    %v2604 = vsub.s32 1, %v2603
    %v2605 = vrot.slane %v2596, %v2604
    %v2606 = vlaneseq
    %v2607 = vshrl.u32 %v2606, 7
    %v2608 = vsub.s32 2, %v2607
    %v2609 = vrot.slane %v2596, %v2608
    %v2610 = vlaneseq
    %v2611 = vshrl.u32 %v2610, 7
    %v2612 = vsub.s32 3, %v2611
    %v2613 = vrot.slane %v2596, %v2612
    %v2618 = vadd.f32 %v2592, %v2601
    %v2619 = vadd.f32 %v2593, %v2605
    %v2620 = vadd.f32 %v2594, %v2609
    %v2621 = vadd.f32 %v2595, %v2613
    %v2622 = vmax.f32 %v2618, 0.0
    %v2623 = vmax.f32 %v2619, 0.0
    %v2624 = vmax.f32 %v2620, 0.0
    %v2625 = vmax.f32 %v2621, 0.0
    %v2626 = vpack.c.bf16 %v2622, %v2622
    %v2627 = vpack.c.bf16 %v2623, %v2623
    %v2628 = vpack.c.bf16 %v2624, %v2624
    %v2629 = vpack.c.bf16 %v2625, %v2625
    %v2630 = vld [vmem:[#allocation11] sm:$0xff]
    %v2631 = vld [vmem:[#allocation11 + $0x8] sm:$0xff]
    %v2632 = vld [vmem:[#allocation11 + $0x10] sm:$0xff]
    %v2633 = vld [vmem:[#allocation11 + $0x18] sm:$0xff]
    %v2634 = vld [vmem:[#allocation11 + $0x20] sm:$0xff]
    %v2635 = vld [vmem:[#allocation11 + $0x28] sm:$0xff]
    %v2636 = vld [vmem:[#allocation11 + $0x30] sm:$0xff]
    %v2637 = vld [vmem:[#allocation11 + $0x38] sm:$0xff]
    %v2638 = vld [vmem:[#allocation11 + $0x40] sm:$0xff]
    %v2639 = vld [vmem:[#allocation11 + $0x48] sm:$0xff]
    %v2640 = vld [vmem:[#allocation11 + $0x50] sm:$0xff]
    %v2641 = vld [vmem:[#allocation11 + $0x58] sm:$0xff]
    %v2642 = vld [vmem:[#allocation11 + $0x60] sm:$0xff]
    %v2643 = vld [vmem:[#allocation11 + $0x68] sm:$0xff]
    %v2644 = vld [vmem:[#allocation11 + $0x70] sm:$0xff]
    %v2645 = vld [vmem:[#allocation11 + $0x78] sm:$0xff]
    %v2646 = vld [vmem:[#allocation11 + $0x80] sm:$0xff]
    %v2647 = vld [vmem:[#allocation11 + $0x88] sm:$0xff]
    %v2648 = vld [vmem:[#allocation11 + $0x90] sm:$0xff]
    %v2649 = vld [vmem:[#allocation11 + $0x98] sm:$0xff]
    %v2650 = vld [vmem:[#allocation11 + $0xa0] sm:$0xff]
    %v2651 = vld [vmem:[#allocation11 + $0xa8] sm:$0xff]
    %v2652 = vld [vmem:[#allocation11 + $0xb0] sm:$0xff]
    %v2653 = vld [vmem:[#allocation11 + $0xb8] sm:$0xff]
    %v2654 = vld [vmem:[#allocation11 + $0xc0] sm:$0xff]
    %v2655 = vld [vmem:[#allocation11 + $0xc8] sm:$0xff]
    %v2656 = vld [vmem:[#allocation11 + $0xd0] sm:$0xff]
    %v2657 = vld [vmem:[#allocation11 + $0xd8] sm:$0xff]
    %v2658 = vld [vmem:[#allocation11 + $0xe0] sm:$0xff]
    %v2659 = vld [vmem:[#allocation11 + $0xe8] sm:$0xff]
    %v2660 = vld [vmem:[#allocation11 + $0xf0] sm:$0xff]
    %v2661 = vld [vmem:[#allocation11 + $0xf8] sm:$0xff]
    %v2662 = vld [vmem:[#allocation11 + $0x100] sm:$0xff]
    %v2663 = vld [vmem:[#allocation11 + $0x108] sm:$0xff]
    %v2664 = vld [vmem:[#allocation11 + $0x110] sm:$0xff]
    %v2665 = vld [vmem:[#allocation11 + $0x118] sm:$0xff]
    %v2666 = vld [vmem:[#allocation11 + $0x120] sm:$0xff]
    %v2667 = vld [vmem:[#allocation11 + $0x128] sm:$0xff]
    %v2668 = vld [vmem:[#allocation11 + $0x130] sm:$0xff]
    %v2669 = vld [vmem:[#allocation11 + $0x138] sm:$0xff]
    %v2670 = vld [vmem:[#allocation11 + $0x140] sm:$0xff]
    %v2671 = vld [vmem:[#allocation11 + $0x148] sm:$0xff]
    %v2672 = vld [vmem:[#allocation11 + $0x150] sm:$0xff]
    %v2673 = vld [vmem:[#allocation11 + $0x158] sm:$0xff]
    %v2674 = vld [vmem:[#allocation11 + $0x160] sm:$0xff]
    %v2675 = vld [vmem:[#allocation11 + $0x168] sm:$0xff]
    %v2676 = vld [vmem:[#allocation11 + $0x170] sm:$0xff]
    %v2677 = vld [vmem:[#allocation11 + $0x178] sm:$0xff]
    %v2678 = vld [vmem:[#allocation11 + $0x180] sm:$0xff]
    %v2679 = vld [vmem:[#allocation11 + $0x188] sm:$0xff]
    %v2680 = vld [vmem:[#allocation11 + $0x190] sm:$0xff]
    %v2681 = vld [vmem:[#allocation11 + $0x198] sm:$0xff]
    %v2682 = vld [vmem:[#allocation11 + $0x1a0] sm:$0xff]
    %v2683 = vld [vmem:[#allocation11 + $0x1a8] sm:$0xff]
    %v2684 = vld [vmem:[#allocation11 + $0x1b0] sm:$0xff]
    %v2685 = vld [vmem:[#allocation11 + $0x1b8] sm:$0xff]
    %v2686 = vld [vmem:[#allocation11 + $0x1c0] sm:$0xff]
    %v2687 = vld [vmem:[#allocation11 + $0x1c8] sm:$0xff]
    %v2688 = vld [vmem:[#allocation11 + $0x1d0] sm:$0xff]
    %v2689 = vld [vmem:[#allocation11 + $0x1d8] sm:$0xff]
    %v2690 = vld [vmem:[#allocation11 + $0x1e0] sm:$0xff]
    %v2691 = vld [vmem:[#allocation11 + $0x1e8] sm:$0xff]
    %v2692 = vld [vmem:[#allocation11 + $0x1f0] sm:$0xff]
    %v2693 = vld [vmem:[#allocation11 + $0x1f8] sm:$0xff]
    %v2694 = vld [vmem:[#allocation11 + $0x200] sm:$0xff]
    %v2695 = vld [vmem:[#allocation11 + $0x208] sm:$0xff]
    %v2696 = vld [vmem:[#allocation11 + $0x210] sm:$0xff]
    %v2697 = vld [vmem:[#allocation11 + $0x218] sm:$0xff]
    %v2698 = vld [vmem:[#allocation11 + $0x220] sm:$0xff]
    %v2699 = vld [vmem:[#allocation11 + $0x228] sm:$0xff]
    %v2700 = vld [vmem:[#allocation11 + $0x230] sm:$0xff]
    %v2701 = vld [vmem:[#allocation11 + $0x238] sm:$0xff]
    %v2702 = vld [vmem:[#allocation11 + $0x240] sm:$0xff]
    %v2703 = vld [vmem:[#allocation11 + $0x248] sm:$0xff]
    %v2704 = vld [vmem:[#allocation11 + $0x250] sm:$0xff]
    %v2705 = vld [vmem:[#allocation11 + $0x258] sm:$0xff]
    %v2706 = vld [vmem:[#allocation11 + $0x260] sm:$0xff]
    %v2707 = vld [vmem:[#allocation11 + $0x268] sm:$0xff]
    %v2708 = vld [vmem:[#allocation11 + $0x270] sm:$0xff]
    %v2709 = vld [vmem:[#allocation11 + $0x278] sm:$0xff]
    %v2710 = vld [vmem:[#allocation11 + $0x280] sm:$0xff]
    %v2711 = vld [vmem:[#allocation11 + $0x288] sm:$0xff]
    %v2712 = vld [vmem:[#allocation11 + $0x290] sm:$0xff]
    %v2713 = vld [vmem:[#allocation11 + $0x298] sm:$0xff]
    %v2714 = vld [vmem:[#allocation11 + $0x2a0] sm:$0xff]
    %v2715 = vld [vmem:[#allocation11 + $0x2a8] sm:$0xff]
    %v2716 = vld [vmem:[#allocation11 + $0x2b0] sm:$0xff]
    %v2717 = vld [vmem:[#allocation11 + $0x2b8] sm:$0xff]
    %v2718 = vld [vmem:[#allocation11 + $0x2c0] sm:$0xff]
    %v2719 = vld [vmem:[#allocation11 + $0x2c8] sm:$0xff]
    %v2720 = vld [vmem:[#allocation11 + $0x2d0] sm:$0xff]
    %v2721 = vld [vmem:[#allocation11 + $0x2d8] sm:$0xff]
    %v2722 = vld [vmem:[#allocation11 + $0x2e0] sm:$0xff]
    %v2723 = vld [vmem:[#allocation11 + $0x2e8] sm:$0xff]
    %v2724 = vld [vmem:[#allocation11 + $0x2f0] sm:$0xff]
    %v2725 = vld [vmem:[#allocation11 + $0x2f8] sm:$0xff]
    %v2726 = vld [vmem:[#allocation11 + $0x300] sm:$0xff]
    %v2727 = vld [vmem:[#allocation11 + $0x308] sm:$0xff]
    %v2728 = vld [vmem:[#allocation11 + $0x310] sm:$0xff]
    %v2729 = vld [vmem:[#allocation11 + $0x318] sm:$0xff]
    %v2730 = vld [vmem:[#allocation11 + $0x320] sm:$0xff]
    %v2731 = vld [vmem:[#allocation11 + $0x328] sm:$0xff]
    %v2732 = vld [vmem:[#allocation11 + $0x330] sm:$0xff]
    %v2733 = vld [vmem:[#allocation11 + $0x338] sm:$0xff]
    %v2734 = vld [vmem:[#allocation11 + $0x340] sm:$0xff]
    %v2735 = vld [vmem:[#allocation11 + $0x348] sm:$0xff]
    %v2736 = vld [vmem:[#allocation11 + $0x350] sm:$0xff]
    %v2737 = vld [vmem:[#allocation11 + $0x358] sm:$0xff]
    %v2738 = vld [vmem:[#allocation11 + $0x360] sm:$0xff]
    %v2739 = vld [vmem:[#allocation11 + $0x368] sm:$0xff]
    %v2740 = vld [vmem:[#allocation11 + $0x370] sm:$0xff]
    %v2741 = vld [vmem:[#allocation11 + $0x378] sm:$0xff]
    %v2742 = vld [vmem:[#allocation11 + $0x380] sm:$0xff]
    %v2743 = vld [vmem:[#allocation11 + $0x388] sm:$0xff]
    %v2744 = vld [vmem:[#allocation11 + $0x390] sm:$0xff]
    %v2745 = vld [vmem:[#allocation11 + $0x398] sm:$0xff]
    %v2746 = vld [vmem:[#allocation11 + $0x3a0] sm:$0xff]
    %v2747 = vld [vmem:[#allocation11 + $0x3a8] sm:$0xff]
    %v2748 = vld [vmem:[#allocation11 + $0x3b0] sm:$0xff]
    %v2749 = vld [vmem:[#allocation11 + $0x3b8] sm:$0xff]
    %v2750 = vld [vmem:[#allocation11 + $0x3c0] sm:$0xff]
    %v2751 = vld [vmem:[#allocation11 + $0x3c8] sm:$0xff]
    %v2752 = vld [vmem:[#allocation11 + $0x3d0] sm:$0xff]
    %v2753 = vld [vmem:[#allocation11 + $0x3d8] sm:$0xff]
    %v2754 = vld [vmem:[#allocation11 + $0x3e0] sm:$0xff]
    %v2755 = vld [vmem:[#allocation11 + $0x3e8] sm:$0xff]
    %v2756 = vld [vmem:[#allocation11 + $0x3f0] sm:$0xff]
    %v2757 = vld [vmem:[#allocation11 + $0x3f8] sm:$0xff]
    %v2886 = vunpack.c.l.b16 %v2630
    %v2887 = vunpack.c.h.b16 %v2630
    %v2888 = vunpack.c.l.b16 %v2631
    %v2889 = vunpack.c.h.b16 %v2631
    %v2890 = vunpack.c.l.b16 %v2632
    %v2891 = vunpack.c.h.b16 %v2632
    %v2892 = vunpack.c.l.b16 %v2633
    %v2893 = vunpack.c.h.b16 %v2633
    %v2894 = vunpack.c.l.b16 %v2634
    %v2895 = vunpack.c.h.b16 %v2634
    %v2896 = vunpack.c.l.b16 %v2635
    %v2897 = vunpack.c.h.b16 %v2635
    %v2898 = vunpack.c.l.b16 %v2636
    %v2899 = vunpack.c.h.b16 %v2636
    %v2900 = vunpack.c.l.b16 %v2637
    %v2901 = vunpack.c.h.b16 %v2637
    %v2902 = vunpack.c.l.b16 %v2638
    %v2903 = vunpack.c.h.b16 %v2638
    %v2904 = vunpack.c.l.b16 %v2639
    %v2905 = vunpack.c.h.b16 %v2639
    %v2906 = vunpack.c.l.b16 %v2640
    %v2907 = vunpack.c.h.b16 %v2640
    %v2908 = vunpack.c.l.b16 %v2641
    %v2909 = vunpack.c.h.b16 %v2641
    %v2910 = vunpack.c.l.b16 %v2642
    %v2911 = vunpack.c.h.b16 %v2642
    %v2912 = vunpack.c.l.b16 %v2643
    %v2913 = vunpack.c.h.b16 %v2643
    %v2914 = vunpack.c.l.b16 %v2644
    %v2915 = vunpack.c.h.b16 %v2644
    %v2916 = vunpack.c.l.b16 %v2645
    %v2917 = vunpack.c.h.b16 %v2645
    %v2918 = vunpack.c.l.b16 %v2646
    %v2919 = vunpack.c.h.b16 %v2646
    %v2920 = vunpack.c.l.b16 %v2647
    %v2921 = vunpack.c.h.b16 %v2647
    %v2922 = vunpack.c.l.b16 %v2648
    %v2923 = vunpack.c.h.b16 %v2648
    %v2924 = vunpack.c.l.b16 %v2649
    %v2925 = vunpack.c.h.b16 %v2649
    %v2926 = vunpack.c.l.b16 %v2650
    %v2927 = vunpack.c.h.b16 %v2650
    %v2928 = vunpack.c.l.b16 %v2651
    %v2929 = vunpack.c.h.b16 %v2651
    %v2930 = vunpack.c.l.b16 %v2652
    %v2931 = vunpack.c.h.b16 %v2652
    %v2932 = vunpack.c.l.b16 %v2653
    %v2933 = vunpack.c.h.b16 %v2653
    %v2934 = vunpack.c.l.b16 %v2654
    %v2935 = vunpack.c.h.b16 %v2654
    %v2936 = vunpack.c.l.b16 %v2655
    %v2937 = vunpack.c.h.b16 %v2655
    %v2938 = vunpack.c.l.b16 %v2656
    %v2939 = vunpack.c.h.b16 %v2656
    %v2940 = vunpack.c.l.b16 %v2657
    %v2941 = vunpack.c.h.b16 %v2657
    %v2942 = vunpack.c.l.b16 %v2658
    %v2943 = vunpack.c.h.b16 %v2658
    %v2944 = vunpack.c.l.b16 %v2659
    %v2945 = vunpack.c.h.b16 %v2659
    %v2946 = vunpack.c.l.b16 %v2660
    %v2947 = vunpack.c.h.b16 %v2660
    %v2948 = vunpack.c.l.b16 %v2661
    %v2949 = vunpack.c.h.b16 %v2661
    %v2950 = vunpack.c.l.b16 %v2662
    %v2951 = vunpack.c.h.b16 %v2662
    %v2952 = vunpack.c.l.b16 %v2663
    %v2953 = vunpack.c.h.b16 %v2663
    %v2954 = vunpack.c.l.b16 %v2664
    %v2955 = vunpack.c.h.b16 %v2664
    %v2956 = vunpack.c.l.b16 %v2665
    %v2957 = vunpack.c.h.b16 %v2665
    %v2958 = vunpack.c.l.b16 %v2666
    %v2959 = vunpack.c.h.b16 %v2666
    %v2960 = vunpack.c.l.b16 %v2667
    %v2961 = vunpack.c.h.b16 %v2667
    %v2962 = vunpack.c.l.b16 %v2668
    %v2963 = vunpack.c.h.b16 %v2668
    %v2964 = vunpack.c.l.b16 %v2669
    %v2965 = vunpack.c.h.b16 %v2669
    %v2966 = vunpack.c.l.b16 %v2670
    %v2967 = vunpack.c.h.b16 %v2670
    %v2968 = vunpack.c.l.b16 %v2671
    %v2969 = vunpack.c.h.b16 %v2671
    %v2970 = vunpack.c.l.b16 %v2672
    %v2971 = vunpack.c.h.b16 %v2672
    %v2972 = vunpack.c.l.b16 %v2673
    %v2973 = vunpack.c.h.b16 %v2673
    %v2974 = vunpack.c.l.b16 %v2674
    %v2975 = vunpack.c.h.b16 %v2674
    %v2976 = vunpack.c.l.b16 %v2675
    %v2977 = vunpack.c.h.b16 %v2675
    %v2978 = vunpack.c.l.b16 %v2676
    %v2979 = vunpack.c.h.b16 %v2676
    %v2980 = vunpack.c.l.b16 %v2677
    %v2981 = vunpack.c.h.b16 %v2677
    %v2982 = vunpack.c.l.b16 %v2678
    %v2983 = vunpack.c.h.b16 %v2678
    %v2984 = vunpack.c.l.b16 %v2679
    %v2985 = vunpack.c.h.b16 %v2679
    %v2986 = vunpack.c.l.b16 %v2680
    %v2987 = vunpack.c.h.b16 %v2680
    %v2988 = vunpack.c.l.b16 %v2681
    %v2989 = vunpack.c.h.b16 %v2681
    %v2990 = vunpack.c.l.b16 %v2682
    %v2991 = vunpack.c.h.b16 %v2682
    %v2992 = vunpack.c.l.b16 %v2683
    %v2993 = vunpack.c.h.b16 %v2683
    %v2994 = vunpack.c.l.b16 %v2684
    %v2995 = vunpack.c.h.b16 %v2684
    %v2996 = vunpack.c.l.b16 %v2685
    %v2997 = vunpack.c.h.b16 %v2685
    %v2998 = vunpack.c.l.b16 %v2686
    %v2999 = vunpack.c.h.b16 %v2686
    %v3000 = vunpack.c.l.b16 %v2687
    %v3001 = vunpack.c.h.b16 %v2687
    %v3002 = vunpack.c.l.b16 %v2688
    %v3003 = vunpack.c.h.b16 %v2688
    %v3004 = vunpack.c.l.b16 %v2689
    %v3005 = vunpack.c.h.b16 %v2689
    %v3006 = vunpack.c.l.b16 %v2690
    %v3007 = vunpack.c.h.b16 %v2690
    %v3008 = vunpack.c.l.b16 %v2691
    %v3009 = vunpack.c.h.b16 %v2691
    %v3010 = vunpack.c.l.b16 %v2692
    %v3011 = vunpack.c.h.b16 %v2692
    %v3012 = vunpack.c.l.b16 %v2693
    %v3013 = vunpack.c.h.b16 %v2693
    %v3014 = vunpack.c.l.b16 %v2694
    %v3015 = vunpack.c.h.b16 %v2694
    %v3016 = vunpack.c.l.b16 %v2695
    %v3017 = vunpack.c.h.b16 %v2695
    %v3018 = vunpack.c.l.b16 %v2696
    %v3019 = vunpack.c.h.b16 %v2696
    %v3020 = vunpack.c.l.b16 %v2697
    %v3021 = vunpack.c.h.b16 %v2697
    %v3022 = vunpack.c.l.b16 %v2698
    %v3023 = vunpack.c.h.b16 %v2698
    %v3024 = vunpack.c.l.b16 %v2699
    %v3025 = vunpack.c.h.b16 %v2699
    %v3026 = vunpack.c.l.b16 %v2700
    %v3027 = vunpack.c.h.b16 %v2700
    %v3028 = vunpack.c.l.b16 %v2701
    %v3029 = vunpack.c.h.b16 %v2701
    %v3030 = vunpack.c.l.b16 %v2702
    %v3031 = vunpack.c.h.b16 %v2702
    %v3032 = vunpack.c.l.b16 %v2703
    %v3033 = vunpack.c.h.b16 %v2703
    %v3034 = vunpack.c.l.b16 %v2704
    %v3035 = vunpack.c.h.b16 %v2704
    %v3036 = vunpack.c.l.b16 %v2705
    %v3037 = vunpack.c.h.b16 %v2705
    %v3038 = vunpack.c.l.b16 %v2706
    %v3039 = vunpack.c.h.b16 %v2706
    %v3040 = vunpack.c.l.b16 %v2707
    %v3041 = vunpack.c.h.b16 %v2707
    %v3042 = vunpack.c.l.b16 %v2708
    %v3043 = vunpack.c.h.b16 %v2708
    %v3044 = vunpack.c.l.b16 %v2709
    %v3045 = vunpack.c.h.b16 %v2709
    %v3046 = vunpack.c.l.b16 %v2710
    %v3047 = vunpack.c.h.b16 %v2710
    %v3048 = vunpack.c.l.b16 %v2711
    %v3049 = vunpack.c.h.b16 %v2711
    %v3050 = vunpack.c.l.b16 %v2712
    %v3051 = vunpack.c.h.b16 %v2712
    %v3052 = vunpack.c.l.b16 %v2713
    %v3053 = vunpack.c.h.b16 %v2713
    %v3054 = vunpack.c.l.b16 %v2714
    %v3055 = vunpack.c.h.b16 %v2714
    %v3056 = vunpack.c.l.b16 %v2715
    %v3057 = vunpack.c.h.b16 %v2715
    %v3058 = vunpack.c.l.b16 %v2716
    %v3059 = vunpack.c.h.b16 %v2716
    %v3060 = vunpack.c.l.b16 %v2717
    %v3061 = vunpack.c.h.b16 %v2717
    %v3062 = vunpack.c.l.b16 %v2718
    %v3063 = vunpack.c.h.b16 %v2718
    %v3064 = vunpack.c.l.b16 %v2719
    %v3065 = vunpack.c.h.b16 %v2719
    %v3066 = vunpack.c.l.b16 %v2720
    %v3067 = vunpack.c.h.b16 %v2720
    %v3068 = vunpack.c.l.b16 %v2721
    %v3069 = vunpack.c.h.b16 %v2721
    %v3070 = vunpack.c.l.b16 %v2722
    %v3071 = vunpack.c.h.b16 %v2722
    %v3072 = vunpack.c.l.b16 %v2723
    %v3073 = vunpack.c.h.b16 %v2723
    %v3074 = vunpack.c.l.b16 %v2724
    %v3075 = vunpack.c.h.b16 %v2724
    %v3076 = vunpack.c.l.b16 %v2725
    %v3077 = vunpack.c.h.b16 %v2725
    %v3078 = vunpack.c.l.b16 %v2726
    %v3079 = vunpack.c.h.b16 %v2726
    %v3080 = vunpack.c.l.b16 %v2727
    %v3081 = vunpack.c.h.b16 %v2727
    %v3082 = vunpack.c.l.b16 %v2728
    %v3083 = vunpack.c.h.b16 %v2728
    %v3084 = vunpack.c.l.b16 %v2729
    %v3085 = vunpack.c.h.b16 %v2729
    %v3086 = vunpack.c.l.b16 %v2730
    %v3087 = vunpack.c.h.b16 %v2730
    %v3088 = vunpack.c.l.b16 %v2731
    %v3089 = vunpack.c.h.b16 %v2731
    %v3090 = vunpack.c.l.b16 %v2732
    %v3091 = vunpack.c.h.b16 %v2732
    %v3092 = vunpack.c.l.b16 %v2733
    %v3093 = vunpack.c.h.b16 %v2733
    %v3094 = vunpack.c.l.b16 %v2734
    %v3095 = vunpack.c.h.b16 %v2734
    %v3096 = vunpack.c.l.b16 %v2735
    %v3097 = vunpack.c.h.b16 %v2735
    %v3098 = vunpack.c.l.b16 %v2736
    %v3099 = vunpack.c.h.b16 %v2736
    %v3100 = vunpack.c.l.b16 %v2737
    %v3101 = vunpack.c.h.b16 %v2737
    %v3102 = vunpack.c.l.b16 %v2738
    %v3103 = vunpack.c.h.b16 %v2738
    %v3104 = vunpack.c.l.b16 %v2739
    %v3105 = vunpack.c.h.b16 %v2739
    %v3106 = vunpack.c.l.b16 %v2740
    %v3107 = vunpack.c.h.b16 %v2740
    %v3108 = vunpack.c.l.b16 %v2741
    %v3109 = vunpack.c.h.b16 %v2741
    %v3110 = vunpack.c.l.b16 %v2742
    %v3111 = vunpack.c.h.b16 %v2742
    %v3112 = vunpack.c.l.b16 %v2743
    %v3113 = vunpack.c.h.b16 %v2743
    %v3114 = vunpack.c.l.b16 %v2744
    %v3115 = vunpack.c.h.b16 %v2744
    %v3116 = vunpack.c.l.b16 %v2745
    %v3117 = vunpack.c.h.b16 %v2745
    %v3118 = vunpack.c.l.b16 %v2746
    %v3119 = vunpack.c.h.b16 %v2746
    %v3120 = vunpack.c.l.b16 %v2747
    %v3121 = vunpack.c.h.b16 %v2747
    %v3122 = vunpack.c.l.b16 %v2748
    %v3123 = vunpack.c.h.b16 %v2748
    %v3124 = vunpack.c.l.b16 %v2749
    %v3125 = vunpack.c.h.b16 %v2749
    %v3126 = vunpack.c.l.b16 %v2750
    %v3127 = vunpack.c.h.b16 %v2750
    %v3128 = vunpack.c.l.b16 %v2751
    %v3129 = vunpack.c.h.b16 %v2751
    %v3130 = vunpack.c.l.b16 %v2752
    %v3131 = vunpack.c.h.b16 %v2752
    %v3132 = vunpack.c.l.b16 %v2753
    %v3133 = vunpack.c.h.b16 %v2753
    %v3134 = vunpack.c.l.b16 %v2754
    %v3135 = vunpack.c.h.b16 %v2754
    %v3136 = vunpack.c.l.b16 %v2755
    %v3137 = vunpack.c.h.b16 %v2755
    %v3138 = vunpack.c.l.b16 %v2756
    %v3139 = vunpack.c.h.b16 %v2756
    %v3140 = vunpack.c.l.b16 %v2757
    %v3141 = vunpack.c.h.b16 %v2757
    %v3142 = vpack.c.b16 %v2890, %v2886
    %v3143 = vpack.c.b16 %v2891, %v2887
    %v3144 = vpack.c.b16 %v2892, %v2888
    %v3145 = vpack.c.b16 %v2893, %v2889
    %v3146 = vpack.c.b16 %v2898, %v2894
    %v3147 = vpack.c.b16 %v2899, %v2895
    %v3148 = vpack.c.b16 %v2900, %v2896
    %v3149 = vpack.c.b16 %v2901, %v2897
    %v3150 = vpack.c.b16 %v2906, %v2902
    %v3151 = vpack.c.b16 %v2907, %v2903
    %v3152 = vpack.c.b16 %v2908, %v2904
    %v3153 = vpack.c.b16 %v2909, %v2905
    %v3154 = vpack.c.b16 %v2914, %v2910
    %v3155 = vpack.c.b16 %v2915, %v2911
    %v3156 = vpack.c.b16 %v2916, %v2912
    %v3157 = vpack.c.b16 %v2917, %v2913
    %v3158 = vpack.c.b16 %v2922, %v2918
    %v3159 = vpack.c.b16 %v2923, %v2919
    %v3160 = vpack.c.b16 %v2924, %v2920
    %v3161 = vpack.c.b16 %v2925, %v2921
    %v3162 = vpack.c.b16 %v2930, %v2926
    %v3163 = vpack.c.b16 %v2931, %v2927
    %v3164 = vpack.c.b16 %v2932, %v2928
    %v3165 = vpack.c.b16 %v2933, %v2929
    %v3166 = vpack.c.b16 %v2938, %v2934
    %v3167 = vpack.c.b16 %v2939, %v2935
    %v3168 = vpack.c.b16 %v2940, %v2936
    %v3169 = vpack.c.b16 %v2941, %v2937
    %v3170 = vpack.c.b16 %v2946, %v2942
    %v3171 = vpack.c.b16 %v2947, %v2943
    %v3172 = vpack.c.b16 %v2948, %v2944
    %v3173 = vpack.c.b16 %v2949, %v2945
    %v3174 = vpack.c.b16 %v2954, %v2950
    %v3175 = vpack.c.b16 %v2955, %v2951
    %v3176 = vpack.c.b16 %v2956, %v2952
    %v3177 = vpack.c.b16 %v2957, %v2953
    %v3178 = vpack.c.b16 %v2962, %v2958
    %v3179 = vpack.c.b16 %v2963, %v2959
    %v3180 = vpack.c.b16 %v2964, %v2960
    %v3181 = vpack.c.b16 %v2965, %v2961
    %v3182 = vpack.c.b16 %v2970, %v2966
    %v3183 = vpack.c.b16 %v2971, %v2967
    %v3184 = vpack.c.b16 %v2972, %v2968
    %v3185 = vpack.c.b16 %v2973, %v2969
    %v3186 = vpack.c.b16 %v2978, %v2974
    %v3187 = vpack.c.b16 %v2979, %v2975
    %v3188 = vpack.c.b16 %v2980, %v2976
    %v3189 = vpack.c.b16 %v2981, %v2977
    %v3190 = vpack.c.b16 %v2986, %v2982
    %v3191 = vpack.c.b16 %v2987, %v2983
    %v3192 = vpack.c.b16 %v2988, %v2984
    %v3193 = vpack.c.b16 %v2989, %v2985
    %v3194 = vpack.c.b16 %v2994, %v2990
    %v3195 = vpack.c.b16 %v2995, %v2991
    %v3196 = vpack.c.b16 %v2996, %v2992
    %v3197 = vpack.c.b16 %v2997, %v2993
    %v3198 = vpack.c.b16 %v3002, %v2998
    %v3199 = vpack.c.b16 %v3003, %v2999
    %v3200 = vpack.c.b16 %v3004, %v3000
    %v3201 = vpack.c.b16 %v3005, %v3001
    %v3202 = vpack.c.b16 %v3010, %v3006
    %v3203 = vpack.c.b16 %v3011, %v3007
    %v3204 = vpack.c.b16 %v3012, %v3008
    %v3205 = vpack.c.b16 %v3013, %v3009
    %v3206 = vpack.c.b16 %v3018, %v3014
    %v3207 = vpack.c.b16 %v3019, %v3015
    %v3208 = vpack.c.b16 %v3020, %v3016
    %v3209 = vpack.c.b16 %v3021, %v3017
    %v3210 = vpack.c.b16 %v3026, %v3022
    %v3211 = vpack.c.b16 %v3027, %v3023
    %v3212 = vpack.c.b16 %v3028, %v3024
    %v3213 = vpack.c.b16 %v3029, %v3025
    %v3214 = vpack.c.b16 %v3034, %v3030
    %v3215 = vpack.c.b16 %v3035, %v3031
    %v3216 = vpack.c.b16 %v3036, %v3032
    %v3217 = vpack.c.b16 %v3037, %v3033
    %v3218 = vpack.c.b16 %v3042, %v3038
    %v3219 = vpack.c.b16 %v3043, %v3039
    %v3220 = vpack.c.b16 %v3044, %v3040
    %v3221 = vpack.c.b16 %v3045, %v3041
    %v3222 = vpack.c.b16 %v3050, %v3046
    %v3223 = vpack.c.b16 %v3051, %v3047
    %v3224 = vpack.c.b16 %v3052, %v3048
    %v3225 = vpack.c.b16 %v3053, %v3049
    %v3226 = vpack.c.b16 %v3058, %v3054
    %v3227 = vpack.c.b16 %v3059, %v3055
    %v3228 = vpack.c.b16 %v3060, %v3056
    %v3229 = vpack.c.b16 %v3061, %v3057
    %v3230 = vpack.c.b16 %v3066, %v3062
    %v3231 = vpack.c.b16 %v3067, %v3063
    %v3232 = vpack.c.b16 %v3068, %v3064
    %v3233 = vpack.c.b16 %v3069, %v3065
    %v3234 = vpack.c.b16 %v3074, %v3070
    %v3235 = vpack.c.b16 %v3075, %v3071
    %v3236 = vpack.c.b16 %v3076, %v3072
    %v3237 = vpack.c.b16 %v3077, %v3073
    %v3238 = vpack.c.b16 %v3082, %v3078
    %v3239 = vpack.c.b16 %v3083, %v3079
    %v3240 = vpack.c.b16 %v3084, %v3080
    %v3241 = vpack.c.b16 %v3085, %v3081
    %v3242 = vpack.c.b16 %v3090, %v3086
    %v3243 = vpack.c.b16 %v3091, %v3087
    %v3244 = vpack.c.b16 %v3092, %v3088
    %v3245 = vpack.c.b16 %v3093, %v3089
    %v3246 = vpack.c.b16 %v3098, %v3094
    %v3247 = vpack.c.b16 %v3099, %v3095
    %v3248 = vpack.c.b16 %v3100, %v3096
    %v3249 = vpack.c.b16 %v3101, %v3097
    %v3250 = vpack.c.b16 %v3106, %v3102
    %v3251 = vpack.c.b16 %v3107, %v3103
    %v3252 = vpack.c.b16 %v3108, %v3104
    %v3253 = vpack.c.b16 %v3109, %v3105
    %v3254 = vpack.c.b16 %v3114, %v3110
    %v3255 = vpack.c.b16 %v3115, %v3111
    %v3256 = vpack.c.b16 %v3116, %v3112
    %v3257 = vpack.c.b16 %v3117, %v3113
    %v3258 = vpack.c.b16 %v3122, %v3118
    %v3259 = vpack.c.b16 %v3123, %v3119
    %v3260 = vpack.c.b16 %v3124, %v3120
    %v3261 = vpack.c.b16 %v3125, %v3121
    %v3262 = vpack.c.b16 %v3130, %v3126
    %v3263 = vpack.c.b16 %v3131, %v3127
    %v3264 = vpack.c.b16 %v3132, %v3128
    %v3265 = vpack.c.b16 %v3133, %v3129
    %v3266 = vpack.c.b16 %v3138, %v3134
    %v3267 = vpack.c.b16 %v3139, %v3135
    %v3268 = vpack.c.b16 %v3140, %v3136
    %v3269 = vpack.c.b16 %v3141, %v3137
    %3398 = vmatprep.subr.bf16.mxu0 %v3143
    %3399 = vmatpush1.bf16.msra.mxu0 %v3142
    %3400 = vmatprep.subr.bf16.mxu0 %v3147
    %3401 = vmatpush1.bf16.msra.mxu0 %v3146
    %3402 = vmatprep.subr.bf16.mxu0 %v3151
    %3403 = vmatpush1.bf16.msra.mxu0 %v3150
    %3404 = vmatprep.subr.bf16.mxu0 %v3155
    %3405 = vmatpush1.bf16.msra.mxu0 %v3154
    %3406 = vmatprep.subr.bf16.mxu0 %v3159
    %3407 = vmatpush1.bf16.msra.mxu0 %v3158
    %3408 = vmatprep.subr.bf16.mxu0 %v3163
    %3409 = vmatpush1.bf16.msra.mxu0 %v3162
    %3410 = vmatprep.subr.bf16.mxu0 %v3167
    %3411 = vmatpush1.bf16.msra.mxu0 %v3166
    %3412 = vmatprep.subr.bf16.mxu0 %v3171
    %3413 = vmatpush1.bf16.msra.mxu0 %v3170
    %3414 = vmatprep.subr.bf16.mxu0 %v3175
    %3415 = vmatpush1.bf16.msra.mxu0 %v3174
    %3416 = vmatprep.subr.bf16.mxu0 %v3179
    %3417 = vmatpush1.bf16.msra.mxu0 %v3178
    %3418 = vmatprep.subr.bf16.mxu0 %v3183
    %3419 = vmatpush1.bf16.msra.mxu0 %v3182
    %3420 = vmatprep.subr.bf16.mxu0 %v3187
    %3421 = vmatpush1.bf16.msra.mxu0 %v3186
    %3422 = vmatprep.subr.bf16.mxu0 %v3191
    %3423 = vmatpush1.bf16.msra.mxu0 %v3190
    %3424 = vmatprep.subr.bf16.mxu0 %v3195
    %3425 = vmatpush1.bf16.msra.mxu0 %v3194
    %3426 = vmatprep.subr.bf16.mxu0 %v3199
    %3427 = vmatpush1.bf16.msra.mxu0 %v3198
    %3428 = vmatprep.subr.bf16.mxu0 %v3203
    %3429 = vmatpush1.bf16.msra.mxu0 %v3202
    %3430 = vmatprep.mubr.bf16.mxu0 %v2627
    %3431 = vmatmul.mubr.bf16.gmra.mrb[0].mxu0 %v2626
    %v3432 = vpop.f32.mrb[0].mxu0
    %v3433 = vadd.f32 0.0, %v3432
    %v3434 = vpop.f32.mrb[0].mxu0
    %v3435 = vadd.f32 0.0, %v3434
    %v3436 = vpop.f32.mrb[0].mxu0
    %v3437 = vpop.f32.mrb[0].mxu0
    %3438 = vdwg.mxu0
    %3439 = vmatprep.subr.bf16.mxu0 %v3207
    %3440 = vmatpush1.bf16.msra.mxu0 %v3206
    %3441 = vmatprep.subr.bf16.mxu0 %v3211
    %3442 = vmatpush1.bf16.msra.mxu0 %v3210
    %3443 = vmatprep.subr.bf16.mxu0 %v3215
    %3444 = vmatpush1.bf16.msra.mxu0 %v3214
    %3445 = vmatprep.subr.bf16.mxu0 %v3219
    %3446 = vmatpush1.bf16.msra.mxu0 %v3218
    %3447 = vmatprep.subr.bf16.mxu0 %v3223
    %3448 = vmatpush1.bf16.msra.mxu0 %v3222
    %3449 = vmatprep.subr.bf16.mxu0 %v3227
    %3450 = vmatpush1.bf16.msra.mxu0 %v3226
    %3451 = vmatprep.subr.bf16.mxu0 %v3231
    %3452 = vmatpush1.bf16.msra.mxu0 %v3230
    %3453 = vmatprep.subr.bf16.mxu0 %v3235
    %3454 = vmatpush1.bf16.msra.mxu0 %v3234
    %3455 = vmatprep.subr.bf16.mxu0 %v3239
    %3456 = vmatpush1.bf16.msra.mxu0 %v3238
    %3457 = vmatprep.subr.bf16.mxu0 %v3243
    %3458 = vmatpush1.bf16.msra.mxu0 %v3242
    %3459 = vmatprep.subr.bf16.mxu0 %v3247
    %3460 = vmatpush1.bf16.msra.mxu0 %v3246
    %3461 = vmatprep.subr.bf16.mxu0 %v3251
    %3462 = vmatpush1.bf16.msra.mxu0 %v3250
    %3463 = vmatprep.subr.bf16.mxu0 %v3255
    %3464 = vmatpush1.bf16.msra.mxu0 %v3254
    %3465 = vmatprep.subr.bf16.mxu0 %v3259
    %3466 = vmatpush1.bf16.msra.mxu0 %v3258
    %3467 = vmatprep.subr.bf16.mxu0 %v3263
    %3468 = vmatpush1.bf16.msra.mxu0 %v3262
    %3469 = vmatprep.subr.bf16.mxu0 %v3267
    %3470 = vmatpush1.bf16.msra.mxu0 %v3266
    %3471 = vmatprep.mubr.bf16.mxu0 %v2629
    %3472 = vmatmul.mubr.bf16.gmra.mrb[0].mxu0 %v2628
    %v3473 = vpop.f32.mrb[0].mxu0
    %v3474 = vadd.f32 %v3433, %v3473
    %v3475 = vpop.f32.mrb[0].mxu0
    %v3476 = vadd.f32 %v3435, %v3475
    %v3477 = vpop.f32.mrb[0].mxu0
    %v3478 = vpop.f32.mrb[0].mxu0
    %3479 = vdwg.mxu0
    %3480 = vmatprep.subr.bf16.mxu0 %v3145
    %3481 = vmatpush1.bf16.msra.mxu0 %v3144
    %3482 = vmatprep.subr.bf16.mxu0 %v3149
    %3483 = vmatpush1.bf16.msra.mxu0 %v3148
    %3484 = vmatprep.subr.bf16.mxu0 %v3153
    %3485 = vmatpush1.bf16.msra.mxu0 %v3152
    %3486 = vmatprep.subr.bf16.mxu0 %v3157
    %3487 = vmatpush1.bf16.msra.mxu0 %v3156
    %3488 = vmatprep.subr.bf16.mxu0 %v3161
    %3489 = vmatpush1.bf16.msra.mxu0 %v3160
    %3490 = vmatprep.subr.bf16.mxu0 %v3165
    %3491 = vmatpush1.bf16.msra.mxu0 %v3164
    %3492 = vmatprep.subr.bf16.mxu0 %v3169
    %3493 = vmatpush1.bf16.msra.mxu0 %v3168
    %3494 = vmatprep.subr.bf16.mxu0 %v3173
    %3495 = vmatpush1.bf16.msra.mxu0 %v3172
    %3496 = vmatprep.subr.bf16.mxu0 %v3177
    %3497 = vmatpush1.bf16.msra.mxu0 %v3176
    %3498 = vmatprep.subr.bf16.mxu0 %v3181
    %3499 = vmatpush1.bf16.msra.mxu0 %v3180
    %3500 = vmatprep.subr.bf16.mxu0 %v3185
    %3501 = vmatpush1.bf16.msra.mxu0 %v3184
    %3502 = vmatprep.subr.bf16.mxu0 %v3189
    %3503 = vmatpush1.bf16.msra.mxu0 %v3188
    %3504 = vmatprep.subr.bf16.mxu0 %v3193
    %3505 = vmatpush1.bf16.msra.mxu0 %v3192
    %3506 = vmatprep.subr.bf16.mxu0 %v3197
    %3507 = vmatpush1.bf16.msra.mxu0 %v3196
    %3508 = vmatprep.subr.bf16.mxu0 %v3201
    %3509 = vmatpush1.bf16.msra.mxu0 %v3200
    %3510 = vmatprep.subr.bf16.mxu0 %v3205
    %3511 = vmatpush1.bf16.msra.mxu0 %v3204
    %3512 = vmatprep.mubr.bf16.mxu0 %v2627
    %3513 = vmatmul.mubr.bf16.gmra.mrb[0].mxu0 %v2626
    %v3514 = vpop.f32.mrb[0].mxu0
    %v3515 = vadd.f32 0.0, %v3514
    %v3516 = vpop.f32.mrb[0].mxu0
    %v3517 = vadd.f32 0.0, %v3516
    %v3518 = vpop.f32.mrb[0].mxu0
    %v3519 = vpop.f32.mrb[0].mxu0
    %3520 = vdwg.mxu0
    %3521 = vmatprep.subr.bf16.mxu0 %v3209
    %3522 = vmatpush1.bf16.msra.mxu0 %v3208
    %3523 = vmatprep.subr.bf16.mxu0 %v3213
    %3524 = vmatpush1.bf16.msra.mxu0 %v3212
    %3525 = vmatprep.subr.bf16.mxu0 %v3217
    %3526 = vmatpush1.bf16.msra.mxu0 %v3216
    %3527 = vmatprep.subr.bf16.mxu0 %v3221
    %3528 = vmatpush1.bf16.msra.mxu0 %v3220
    %3529 = vmatprep.subr.bf16.mxu0 %v3225
    %3530 = vmatpush1.bf16.msra.mxu0 %v3224
    %3531 = vmatprep.subr.bf16.mxu0 %v3229
    %3532 = vmatpush1.bf16.msra.mxu0 %v3228
    %3533 = vmatprep.subr.bf16.mxu0 %v3233
    %3534 = vmatpush1.bf16.msra.mxu0 %v3232
    %3535 = vmatprep.subr.bf16.mxu0 %v3237
    %3536 = vmatpush1.bf16.msra.mxu0 %v3236
    %3537 = vmatprep.subr.bf16.mxu0 %v3241
    %3538 = vmatpush1.bf16.msra.mxu0 %v3240
    %3539 = vmatprep.subr.bf16.mxu0 %v3245
    %3540 = vmatpush1.bf16.msra.mxu0 %v3244
    %3541 = vmatprep.subr.bf16.mxu0 %v3249
    %3542 = vmatpush1.bf16.msra.mxu0 %v3248
    %3543 = vmatprep.subr.bf16.mxu0 %v3253
    %3544 = vmatpush1.bf16.msra.mxu0 %v3252
    %3545 = vmatprep.subr.bf16.mxu0 %v3257
    %3546 = vmatpush1.bf16.msra.mxu0 %v3256
    %3547 = vmatprep.subr.bf16.mxu0 %v3261
    %3548 = vmatpush1.bf16.msra.mxu0 %v3260
    %3549 = vmatprep.subr.bf16.mxu0 %v3265
    %3550 = vmatpush1.bf16.msra.mxu0 %v3264
    %3551 = vmatprep.subr.bf16.mxu0 %v3269
    %3552 = vmatpush1.bf16.msra.mxu0 %v3268
    %3553 = vmatprep.mubr.bf16.mxu0 %v2629
    %3554 = vmatmul.mubr.bf16.gmra.mrb[0].mxu0 %v2628
    %v3555 = vpop.f32.mrb[0].mxu0
    %v3556 = vadd.f32 %v3515, %v3555
    %v3557 = vpop.f32.mrb[0].mxu0
    %v3558 = vadd.f32 %v3517, %v3557
    %v3559 = vpop.f32.mrb[0].mxu0
    %v3560 = vpop.f32.mrb[0].mxu0
    %3561 = vdwg.mxu0
    %v3562 = vrot.slane %v3474, 4
    %v3563 = vadd.f32 %v3474, %v3562
    %v3564 = vrot.slane %v3563, 2
    %v3565 = vadd.f32 %v3563, %v3564
    %v3566 = vrot.slane %v3565, 1
    %v3567 = vadd.f32 %v3565, %v3566
    %v3568 = vrot.slane %v3476, 4
    %v3569 = vadd.f32 %v3476, %v3568
    %v3570 = vrot.slane %v3569, 2
    %v3571 = vadd.f32 %v3569, %v3570
    %v3572 = vrot.slane %v3571, 1
    %v3573 = vadd.f32 %v3571, %v3572
    %v3574 = vrot.slane %v3556, 4
    %v3575 = vadd.f32 %v3556, %v3574
    %v3576 = vrot.slane %v3575, 2
    %v3577 = vadd.f32 %v3575, %v3576
    %v3578 = vrot.slane %v3577, 1
    %v3579 = vadd.f32 %v3577, %v3578
    %v3580 = vrot.slane %v3558, 4
    %v3581 = vadd.f32 %v3558, %v3580
    %v3582 = vrot.slane %v3581, 2
    %v3583 = vadd.f32 %v3581, %v3582
    %v3584 = vrot.slane %v3583, 1
    %v3585 = vadd.f32 %v3583, %v3584
    %v3586 = vmul.f32 %v3567, %v303
    %v3587 = vmul.f32 %v3573, %v303
    %v3588 = vmul.f32 %v3579, %v303
    %v3589 = vmul.f32 %v3585, %v303
    %v3590 = vsub.f32 %v3474, %v3586
    %v3591 = vsub.f32 %v3476, %v3587
    %v3592 = vsub.f32 %v3556, %v3588
    %v3593 = vsub.f32 %v3558, %v3589
    %v3594 = vmul.f32 %v3590, %v3590
    %v3595 = vmul.f32 %v3591, %v3591
    %v3596 = vmul.f32 %v3592, %v3592
    %v3597 = vmul.f32 %v3593, %v3593
    %v3598 = vrot.slane %v3594, 4
    %v3599 = vadd.f32 %v3594, %v3598
    %v3600 = vrot.slane %v3599, 2
    %v3601 = vadd.f32 %v3599, %v3600
    %v3602 = vrot.slane %v3601, 1
    %v3603 = vadd.f32 %v3601, %v3602
    %v3604 = vrot.slane %v3595, 4
    %v3605 = vadd.f32 %v3595, %v3604
    %v3606 = vrot.slane %v3605, 2
    %v3607 = vadd.f32 %v3605, %v3606
    %v3608 = vrot.slane %v3607, 1
    %v3609 = vadd.f32 %v3607, %v3608
    %v3610 = vrot.slane %v3596, 4
    %v3611 = vadd.f32 %v3596, %v3610
    %v3612 = vrot.slane %v3611, 2
    %v3613 = vadd.f32 %v3611, %v3612
    %v3614 = vrot.slane %v3613, 1
    %v3615 = vadd.f32 %v3613, %v3614
    %v3616 = vrot.slane %v3597, 4
    %v3617 = vadd.f32 %v3597, %v3616
    %v3618 = vrot.slane %v3617, 2
    %v3619 = vadd.f32 %v3617, %v3618
    %v3620 = vrot.slane %v3619, 1
    %v3621 = vadd.f32 %v3619, %v3620
    %v3622 = vmul.f32 %v3603, %v303
    %v3623 = vmul.f32 %v3609, %v303
    %v3624 = vmul.f32 %v3615, %v303
    %v3625 = vmul.f32 %v3621, %v303
    %v3626 = vld [vmem:[%s11] sm:$0xf]
    %v3627 = vadd.f32 %v3622, 1e-05
    %v3628 = vadd.f32 %v3623, 1e-05
    %v3629 = vadd.f32 %v3624, 1e-05
    %v3630 = vadd.f32 %v3625, 1e-05
    %v3631 = vrsqrt.pop %v3627
    %v3632 = vrsqrt.pop %v3628
    %v3633 = vrsqrt.pop %v3629
    %v3634 = vrsqrt.pop %v3630
    %v3639 = vcombine.low %v3631, %v3632
    %v3640 = vcombine.low %v3633, %v3634
    %v3642 = vunpack.c.l.s4 1966171168
    %v3643 = vunpack.c.0.s8 %v3642
    %v3644 = vlaneseq
    %v3645 = vshrl.u32 %v3644, 7
    %v3646 = vsub.s32 %v3643, %v3645
    %v3647 = vrot.slane %v3639, %v3646
    %v3649 = vunpack.c.l.s4 1966171168
    %v3650 = vunpack.c.0.s8 %v3649
    %v3651 = vlaneseq
    %v3652 = vshrl.u32 %v3651, 7
    %v3653 = vsub.s32 %v3650, %v3652
    %v3654 = vrot.slane %v3640, %v3653
    %v3655 = vcombine.low %v3647, %v3654
    %v3657 = vunpack.c.l.s4 1966171168
    %v3658 = vunpack.c.0.s8 %v3657
    %v3659 = vlaneseq
    %v3660 = vshrl.u32 %v3659, 7
    %v3661 = vsub.s32 %v3658, %v3660
    %v3662 = vrot.slane %v3655, %v3661
    %v3664 = vmul.f32 %v3626, %v3662
    %v3666 = vlaneseq
    %v3667 = vshrl.u32 %v3666, 7
    %v3668 = vsub.s32 0, %v3667
    %v3669 = vrot.slane %v3664, %v3668
    %v3670 = vlaneseq
    %v3671 = vshrl.u32 %v3670, 7
    %v3672 = vsub.s32 1, %v3671
    %v3673 = vrot.slane %v3664, %v3672
    %v3674 = vlaneseq
    %v3675 = vshrl.u32 %v3674, 7
    %v3676 = vsub.s32 2, %v3675
    %v3677 = vrot.slane %v3664, %v3676
    %v3678 = vlaneseq
    %v3679 = vshrl.u32 %v3678, 7
    %v3680 = vsub.s32 3, %v3679
    %v3681 = vrot.slane %v3664, %v3680
    %v3686 = vmul.f32 %v3590, %v3669
    %v3687 = vmul.f32 %v3591, %v3673
    %v3688 = vmul.f32 %v3592, %v3677
    %v3689 = vmul.f32 %v3593, %v3681
    %v3690 = vld [vmem:[%s12] sm:$0xf]
    %v3692 = vlaneseq
    %v3693 = vshrl.u32 %v3692, 7
    %v3694 = vsub.s32 0, %v3693
    %v3695 = vrot.slane %v3690, %v3694
    %v3696 = vlaneseq
    %v3697 = vshrl.u32 %v3696, 7
    %v3698 = vsub.s32 1, %v3697
    %v3699 = vrot.slane %v3690, %v3698
    %v3700 = vlaneseq
    %v3701 = vshrl.u32 %v3700, 7
    %v3702 = vsub.s32 2, %v3701
    %v3703 = vrot.slane %v3690, %v3702
    %v3704 = vlaneseq
    %v3705 = vshrl.u32 %v3704, 7
    %v3706 = vsub.s32 3, %v3705
    %v3707 = vrot.slane %v3690, %v3706
    %v3712 = vadd.f32 %v3686, %v3695
    %v3713 = vadd.f32 %v3687, %v3699
    %v3714 = vadd.f32 %v3688, %v3703
    %v3715 = vadd.f32 %v3689, %v3707
    %v3716 = vmax.f32 %v3712, 0.0
    %v3717 = vmax.f32 %v3713, 0.0
    %v3718 = vmax.f32 %v3714, 0.0
    %v3719 = vmax.f32 %v3715, 0.0
    %v3720 = vpack.c.bf16 %v3716, %v3716
    %v3721 = vpack.c.bf16 %v3717, %v3717
    %v3722 = vpack.c.bf16 %v3718, %v3718
    %v3723 = vpack.c.bf16 %v3719, %v3719
    %v3724 = vld [vmem:[#allocation13] sm:$0xf]
    %v3725 = vld [vmem:[#allocation13 + $0x4] sm:$0xf]
    %v3726 = vld [vmem:[#allocation13 + $0x8] sm:$0xf]
    %v3727 = vld [vmem:[#allocation13 + $0xc] sm:$0xf]
    %v3728 = vld [vmem:[#allocation13 + $0x10] sm:$0xf]
    %v3729 = vld [vmem:[#allocation13 + $0x14] sm:$0xf]
    %v3730 = vld [vmem:[#allocation13 + $0x18] sm:$0xf]
    %v3731 = vld [vmem:[#allocation13 + $0x1c] sm:$0xf]
    %v3732 = vld [vmem:[#allocation13 + $0x20] sm:$0xf]
    %v3733 = vld [vmem:[#allocation13 + $0x24] sm:$0xf]
    %v3734 = vld [vmem:[#allocation13 + $0x28] sm:$0xf]
    %v3735 = vld [vmem:[#allocation13 + $0x2c] sm:$0xf]
    %v3736 = vld [vmem:[#allocation13 + $0x30] sm:$0xf]
    %v3737 = vld [vmem:[#allocation13 + $0x34] sm:$0xf]
    %v3738 = vld [vmem:[#allocation13 + $0x38] sm:$0xf]
    %v3739 = vld [vmem:[#allocation13 + $0x3c] sm:$0xf]
    %v3740 = vld [vmem:[#allocation13 + $0x40] sm:$0xf]
    %v3741 = vld [vmem:[#allocation13 + $0x44] sm:$0xf]
    %v3742 = vld [vmem:[#allocation13 + $0x48] sm:$0xf]
    %v3743 = vld [vmem:[#allocation13 + $0x4c] sm:$0xf]
    %v3744 = vld [vmem:[#allocation13 + $0x50] sm:$0xf]
    %v3745 = vld [vmem:[#allocation13 + $0x54] sm:$0xf]
    %v3746 = vld [vmem:[#allocation13 + $0x58] sm:$0xf]
    %v3747 = vld [vmem:[#allocation13 + $0x5c] sm:$0xf]
    %v3748 = vld [vmem:[#allocation13 + $0x60] sm:$0xf]
    %v3749 = vld [vmem:[#allocation13 + $0x64] sm:$0xf]
    %v3750 = vld [vmem:[#allocation13 + $0x68] sm:$0xf]
    %v3751 = vld [vmem:[#allocation13 + $0x6c] sm:$0xf]
    %v3752 = vld [vmem:[#allocation13 + $0x70] sm:$0xf]
    %v3753 = vld [vmem:[#allocation13 + $0x74] sm:$0xf]
    %v3754 = vld [vmem:[#allocation13 + $0x78] sm:$0xf]
    %v3755 = vld [vmem:[#allocation13 + $0x7c] sm:$0xf]
    %v3756 = vld [vmem:[#allocation13 + $0x80] sm:$0xf]
    %v3757 = vld [vmem:[#allocation13 + $0x84] sm:$0xf]
    %v3758 = vld [vmem:[#allocation13 + $0x88] sm:$0xf]
    %v3759 = vld [vmem:[#allocation13 + $0x8c] sm:$0xf]
    %v3760 = vld [vmem:[#allocation13 + $0x90] sm:$0xf]
    %v3761 = vld [vmem:[#allocation13 + $0x94] sm:$0xf]
    %v3762 = vld [vmem:[#allocation13 + $0x98] sm:$0xf]
    %v3763 = vld [vmem:[#allocation13 + $0x9c] sm:$0xf]
    %v3764 = vld [vmem:[#allocation13 + $0xa0] sm:$0xf]
    %v3765 = vld [vmem:[#allocation13 + $0xa4] sm:$0xf]
    %v3766 = vld [vmem:[#allocation13 + $0xa8] sm:$0xf]
    %v3767 = vld [vmem:[#allocation13 + $0xac] sm:$0xf]
    %v3768 = vld [vmem:[#allocation13 + $0xb0] sm:$0xf]
    %v3769 = vld [vmem:[#allocation13 + $0xb4] sm:$0xf]
    %v3770 = vld [vmem:[#allocation13 + $0xb8] sm:$0xf]
    %v3771 = vld [vmem:[#allocation13 + $0xbc] sm:$0xf]
    %v3772 = vld [vmem:[#allocation13 + $0xc0] sm:$0xf]
    %v3773 = vld [vmem:[#allocation13 + $0xc4] sm:$0xf]
    %v3774 = vld [vmem:[#allocation13 + $0xc8] sm:$0xf]
    %v3775 = vld [vmem:[#allocation13 + $0xcc] sm:$0xf]
    %v3776 = vld [vmem:[#allocation13 + $0xd0] sm:$0xf]
    %v3777 = vld [vmem:[#allocation13 + $0xd4] sm:$0xf]
    %v3778 = vld [vmem:[#allocation13 + $0xd8] sm:$0xf]
    %v3779 = vld [vmem:[#allocation13 + $0xdc] sm:$0xf]
    %v3780 = vld [vmem:[#allocation13 + $0xe0] sm:$0xf]
    %v3781 = vld [vmem:[#allocation13 + $0xe4] sm:$0xf]
    %v3782 = vld [vmem:[#allocation13 + $0xe8] sm:$0xf]
    %v3783 = vld [vmem:[#allocation13 + $0xec] sm:$0xf]
    %v3784 = vld [vmem:[#allocation13 + $0xf0] sm:$0xf]
    %v3785 = vld [vmem:[#allocation13 + $0xf4] sm:$0xf]
    %v3786 = vld [vmem:[#allocation13 + $0xf8] sm:$0xf]
    %v3787 = vld [vmem:[#allocation13 + $0xfc] sm:$0xf]
    %v3788 = vld [vmem:[%s14] sm:$0x1]
    %v3790 = vlaneseq
    %v3791 = vshrl.u32 %v3790, 7
    %v3792 = vsub.s32 0, %v3791
    %v3793 = vrot.slane %v3788, %v3792
    %v3859 = vunpack.c.l.b16 %v3724
    %v3860 = vunpack.c.l.b16 %v3725
    %v3861 = vunpack.c.l.b16 %v3726
    %v3862 = vunpack.c.l.b16 %v3727
    %v3863 = vunpack.c.l.b16 %v3728
    %v3864 = vunpack.c.l.b16 %v3729
    %v3865 = vunpack.c.l.b16 %v3730
    %v3866 = vunpack.c.l.b16 %v3731
    %v3867 = vunpack.c.l.b16 %v3732
    %v3868 = vunpack.c.l.b16 %v3733
    %v3869 = vunpack.c.l.b16 %v3734
    %v3870 = vunpack.c.l.b16 %v3735
    %v3871 = vunpack.c.l.b16 %v3736
    %v3872 = vunpack.c.l.b16 %v3737
    %v3873 = vunpack.c.l.b16 %v3738
    %v3874 = vunpack.c.l.b16 %v3739
    %v3875 = vunpack.c.l.b16 %v3740
    %v3876 = vunpack.c.l.b16 %v3741
    %v3877 = vunpack.c.l.b16 %v3742
    %v3878 = vunpack.c.l.b16 %v3743
    %v3879 = vunpack.c.l.b16 %v3744
    %v3880 = vunpack.c.l.b16 %v3745
    %v3881 = vunpack.c.l.b16 %v3746
    %v3882 = vunpack.c.l.b16 %v3747
    %v3883 = vunpack.c.l.b16 %v3748
    %v3884 = vunpack.c.l.b16 %v3749
    %v3885 = vunpack.c.l.b16 %v3750
    %v3886 = vunpack.c.l.b16 %v3751
    %v3887 = vunpack.c.l.b16 %v3752
    %v3888 = vunpack.c.l.b16 %v3753
    %v3889 = vunpack.c.l.b16 %v3754
    %v3890 = vunpack.c.l.b16 %v3755
    %v3891 = vunpack.c.l.b16 %v3756
    %v3892 = vunpack.c.l.b16 %v3757
    %v3893 = vunpack.c.l.b16 %v3758
    %v3894 = vunpack.c.l.b16 %v3759
    %v3895 = vunpack.c.l.b16 %v3760
    %v3896 = vunpack.c.l.b16 %v3761
    %v3897 = vunpack.c.l.b16 %v3762
    %v3898 = vunpack.c.l.b16 %v3763
    %v3899 = vunpack.c.l.b16 %v3764
    %v3900 = vunpack.c.l.b16 %v3765
    %v3901 = vunpack.c.l.b16 %v3766
    %v3902 = vunpack.c.l.b16 %v3767
    %v3903 = vunpack.c.l.b16 %v3768
    %v3904 = vunpack.c.l.b16 %v3769
    %v3905 = vunpack.c.l.b16 %v3770
    %v3906 = vunpack.c.l.b16 %v3771
    %v3907 = vunpack.c.l.b16 %v3772
    %v3908 = vunpack.c.l.b16 %v3773
    %v3909 = vunpack.c.l.b16 %v3774
    %v3910 = vunpack.c.l.b16 %v3775
    %v3911 = vunpack.c.l.b16 %v3776
    %v3912 = vunpack.c.l.b16 %v3777
    %v3913 = vunpack.c.l.b16 %v3778
    %v3914 = vunpack.c.l.b16 %v3779
    %v3915 = vunpack.c.l.b16 %v3780
    %v3916 = vunpack.c.l.b16 %v3781
    %v3917 = vunpack.c.l.b16 %v3782
    %v3918 = vunpack.c.l.b16 %v3783
    %v3919 = vunpack.c.l.b16 %v3784
    %v3920 = vunpack.c.l.b16 %v3785
    %v3921 = vunpack.c.l.b16 %v3786
    %v3922 = vunpack.c.l.b16 %v3787
    %v3923 = vpack.c.b16 %v3860, %v3859
    %v3924 = vpack.c.b16 %v3862, %v3861
    %v3925 = vpack.c.b16 %v3864, %v3863
    %v3926 = vpack.c.b16 %v3866, %v3865
    %v3927 = vpack.c.b16 %v3868, %v3867
    %v3928 = vpack.c.b16 %v3870, %v3869
    %v3929 = vpack.c.b16 %v3872, %v3871
    %v3930 = vpack.c.b16 %v3874, %v3873
    %v3931 = vpack.c.b16 %v3876, %v3875
    %v3932 = vpack.c.b16 %v3878, %v3877
    %v3933 = vpack.c.b16 %v3880, %v3879
    %v3934 = vpack.c.b16 %v3882, %v3881
    %v3935 = vpack.c.b16 %v3884, %v3883
    %v3936 = vpack.c.b16 %v3886, %v3885
    %v3937 = vpack.c.b16 %v3888, %v3887
    %v3938 = vpack.c.b16 %v3890, %v3889
    %v3939 = vpack.c.b16 %v3892, %v3891
    %v3940 = vpack.c.b16 %v3894, %v3893
    %v3941 = vpack.c.b16 %v3896, %v3895
    %v3942 = vpack.c.b16 %v3898, %v3897
    %v3943 = vpack.c.b16 %v3900, %v3899
    %v3944 = vpack.c.b16 %v3902, %v3901
    %v3945 = vpack.c.b16 %v3904, %v3903
    %v3946 = vpack.c.b16 %v3906, %v3905
    %v3947 = vpack.c.b16 %v3908, %v3907
    %v3948 = vpack.c.b16 %v3910, %v3909
    %v3949 = vpack.c.b16 %v3912, %v3911
    %v3950 = vpack.c.b16 %v3914, %v3913
    %v3951 = vpack.c.b16 %v3916, %v3915
    %v3952 = vpack.c.b16 %v3918, %v3917
    %v3953 = vpack.c.b16 %v3920, %v3919
    %v3954 = vpack.c.b16 %v3922, %v3921
    %3987 = vmatprep.subr.bf16.mxu0 0
    %3988 = vmatpush1.bf16.msra.mxu0 %v3923
    %3989 = vmatprep.subr.bf16.mxu0 0
    %3990 = vmatpush1.bf16.msra.mxu0 %v3924
    %3991 = vmatprep.subr.bf16.mxu0 0
    %3992 = vmatpush1.bf16.msra.mxu0 %v3925
    %3993 = vmatprep.subr.bf16.mxu0 0
    %3994 = vmatpush1.bf16.msra.mxu0 %v3926
    %3995 = vmatprep.subr.bf16.mxu0 0
    %3996 = vmatpush1.bf16.msra.mxu0 %v3927
    %3997 = vmatprep.subr.bf16.mxu0 0
    %3998 = vmatpush1.bf16.msra.mxu0 %v3928
    %3999 = vmatprep.subr.bf16.mxu0 0
    %4000 = vmatpush1.bf16.msra.mxu0 %v3929
    %4001 = vmatprep.subr.bf16.mxu0 0
    %4002 = vmatpush1.bf16.msra.mxu0 %v3930
    %4003 = vmatprep.subr.bf16.mxu0 0
    %4004 = vmatpush1.bf16.msra.mxu0 %v3931
    %4005 = vmatprep.subr.bf16.mxu0 0
    %4006 = vmatpush1.bf16.msra.mxu0 %v3932
    %4007 = vmatprep.subr.bf16.mxu0 0
    %4008 = vmatpush1.bf16.msra.mxu0 %v3933
    %4009 = vmatprep.subr.bf16.mxu0 0
    %4010 = vmatpush1.bf16.msra.mxu0 %v3934
    %4011 = vmatprep.subr.bf16.mxu0 0
    %4012 = vmatpush1.bf16.msra.mxu0 %v3935
    %4013 = vmatprep.subr.bf16.mxu0 0
    %4014 = vmatpush1.bf16.msra.mxu0 %v3936
    %4015 = vmatprep.subr.bf16.mxu0 0
    %4016 = vmatpush1.bf16.msra.mxu0 %v3937
    %4017 = vmatprep.subr.bf16.mxu0 0
    %4018 = vmatpush1.bf16.msra.mxu0 %v3938
    %4019 = vmatprep.mubr.bf16.mxu0 %v3721
    %4020 = vmatmul.mubr.bf16.gmra.mrb[0].mxu0 %v3720
    %v4021 = vpop.f32.mrb[0].mxu0
    %v4022 = vadd.f32 %v3793, %v4021
    %v4023 = vpop.f32.mrb[0].mxu0
    %v4024 = vpop.f32.mrb[0].mxu0
    %v4025 = vpop.f32.mrb[0].mxu0
    %4026 = vdwg.mxu0
    %4027 = vmatprep.subr.bf16.mxu0 0
    %4028 = vmatpush1.bf16.msra.mxu0 %v3939
    %4029 = vmatprep.subr.bf16.mxu0 0
    %4030 = vmatpush1.bf16.msra.mxu0 %v3940
    %4031 = vmatprep.subr.bf16.mxu0 0
    %4032 = vmatpush1.bf16.msra.mxu0 %v3941
    %4033 = vmatprep.subr.bf16.mxu0 0
    %4034 = vmatpush1.bf16.msra.mxu0 %v3942
    %4035 = vmatprep.subr.bf16.mxu0 0
    %4036 = vmatpush1.bf16.msra.mxu0 %v3943
    %4037 = vmatprep.subr.bf16.mxu0 0
    %4038 = vmatpush1.bf16.msra.mxu0 %v3944
    %4039 = vmatprep.subr.bf16.mxu0 0
    %4040 = vmatpush1.bf16.msra.mxu0 %v3945
    %4041 = vmatprep.subr.bf16.mxu0 0
    %4042 = vmatpush1.bf16.msra.mxu0 %v3946
    %4043 = vmatprep.subr.bf16.mxu0 0
    %4044 = vmatpush1.bf16.msra.mxu0 %v3947
    %4045 = vmatprep.subr.bf16.mxu0 0
    %4046 = vmatpush1.bf16.msra.mxu0 %v3948
    %4047 = vmatprep.subr.bf16.mxu0 0
    %4048 = vmatpush1.bf16.msra.mxu0 %v3949
    %4049 = vmatprep.subr.bf16.mxu0 0
    %4050 = vmatpush1.bf16.msra.mxu0 %v3950
    %4051 = vmatprep.subr.bf16.mxu0 0
    %4052 = vmatpush1.bf16.msra.mxu0 %v3951
    %4053 = vmatprep.subr.bf16.mxu0 0
    %4054 = vmatpush1.bf16.msra.mxu0 %v3952
    %4055 = vmatprep.subr.bf16.mxu0 0
    %4056 = vmatpush1.bf16.msra.mxu0 %v3953
    %4057 = vmatprep.subr.bf16.mxu0 0
    %4058 = vmatpush1.bf16.msra.mxu0 %v3954
    %4059 = vmatprep.mubr.bf16.mxu0 %v3723
    %4060 = vmatmul.mubr.bf16.gmra.mrb[0].mxu0 %v3722
    %v4061 = vpop.f32.mrb[0].mxu0
    %v4062 = vadd.f32 %v4022, %v4061
    %v4063 = vpop.f32.mrb[0].mxu0
    %v4064 = vpop.f32.mrb[0].mxu0
    %v4065 = vpop.f32.mrb[0].mxu0
    %4066 = vdwg.mxu0
    %4067 = vst [vmem:[#allocation14] sm:$0xff] %v4062
    // Predicated region
    $region90: #{cnn_forward.1} parent=1 // pred_check
      _
    $region91: #{cnn_forward.1} parent=1 // pred_check_branch
      %4069 = sbr.rel (0) target = $region93
    $region92: #{cnn_forward.1} parent=1 // pred_region
      %s4071 = ssub.s32 128, 128
      %4072 = vsyncadd [#allocation4], %s4071
      %s4074 = sshll.u32 [#allocation14], 4
      %s4075 = int_to_ptr.vmem [resolvable:$true] %s4074
      %4077 = dma.vmem_to_hbm [thread:$0]  %s4075, 128, %s15, [#allocation4]
    $region93: #{cnn_forward.1} parent=1 // pred_fallthru
      _
    // Predicated region
    $region94: #{cnn_forward.1} parent=1 // pred_check
      _
    $region95: #{cnn_forward.1} parent=1 // pred_check_branch
      %4079 = sbr.rel (0) target = $region97
    $region96: #{cnn_forward.1} parent=1 // pred_region
      %4080 = dma.done [#allocation4], 128
    $region97: #{cnn_forward.1} parent=1 // pred_fallthru
      _
    %4081 = vsyncpa [#allocation3], 1
    %4082 = vsyncpa [#allocation6], 1
    %4083 = vsyncpa [#allocation9], 1
    %4084 = vsyncpa [#allocation12], 1
    %4085 = vsyncpa [#allocation4], 1

</llo_original>
